<compile_context>
chip_gen: v7x
topology: tpu7x:2x2x1
jax: 0.10.0
libtpu: 0.0.40
codegen_flags: <defaults>
</compile_context>

<pallas_src>
import functools
import math

import jax
import jax.numpy as jnp
from jax.experimental import pallas as pl
from jax.experimental.pallas import tpu as pltpu


# ----------------------------------------------------------------------------
# Single fused kernel for the whole RGTLayer forward
# ----------------------------------------------------------------------------
def _rgt_kernel(x_ref, adj_ref, wproj_ref, bproj_ref, wgu_ref,
                perm_ref, sw1_ref, sb1_ref, sw2_ref, out_ref,
                *, num_relations, num_heads, dim, num_nodes):
    R, Hd, D, N = num_relations, num_heads, dim, num_nodes

    x = x_ref[...]                                   # [N, D] f32
    xb = x.astype(jnp.bfloat16)

    # One stacked, lane-dense projection: [ Q | K | V | skip | gate_x ]
    proj = jnp.dot(xb, wproj_ref[...],
                   preferred_element_type=jnp.float32) + bproj_ref[...]  # [N, P]

    q_off = 0
    k_off = R * Hd * D
    v_off = 2 * R * Hd * D
    s_off = 3 * R * Hd * D
    g_off = 3 * R * Hd * D + R * D

    gate_x = proj[:, g_off:g_off + D]                # x @ Wg_x + bg  (shared)

    inv_sqrt_d = 1.0 / math.sqrt(D)
    inv_heads = 1.0 / float(Hd)

    # ---- per-relation TransformerConv (head-mean + root skip) -------------
    u_parts = []
    for r in range(R):                               # unrolled: R is small/static
        adj = adj_ref[r] > 0.0                       # [N, N] bool, adj[dst, src]
        acc = jnp.zeros((N, D), jnp.float32)
        for h in range(Hd):
            o = (r * Hd + h) * D
            q = proj[:, q_off + o:q_off + o + D]     # [N, D]
            k = proj[:, k_off + o:k_off + o + D]
            v = proj[:, v_off + o:v_off + o + D]
            # s[i, j] = <q_i, k_j> / sqrt(D)   (contract lane dims, no .T)
            s = jax.lax.dot_general(
                q, k, (((1,), (1,)), ((), ())),
                preferred_element_type=jnp.float32) * inv_sqrt_d
            s = jnp.where(adj, s, -1e30)
            m = jnp.max(s, axis=1, keepdims=True)
            p = jnp.where(adj, jnp.exp(s - m), 0.0)
            denom = jnp.sum(p, axis=1, keepdims=True)
            inv = jnp.where(denom > 0.0,
                            pl.reciprocal(denom, approx=True), 0.0)
            acc = acc + jnp.dot(p * inv, v, preferred_element_type=jnp.float32)
        skip = proj[:, s_off + r * D:s_off + (r + 1) * D]
        u_parts.append(acc * inv_heads + skip)       # concat=False mean + root skip

    # ---- gated residual, batched across relations along sublanes ----------
    u_all = jnp.concatenate(u_parts, axis=0)                     # [R*N, D] f32
    gate_x_rep = jnp.concatenate([gate_x] * R, axis=0)           # [R*N, D]
    x_rep = jnp.concatenate([x] * R, axis=0)                     # [R*N, D]
    z_all = jax.nn.sigmoid(
        jnp.dot(u_all.astype(jnp.bfloat16), wgu_ref[...],
                preferred_element_type=jnp.float32) + gate_x_rep)
    h_all = jnp.tanh(u_all) * z_all + x_rep * (1.0 - z_all)      # [R*N, D]

    # flat == H.reshape(N, R*D)
    flat = jnp.concatenate([h_all[r * N:(r + 1) * N, :] for r in range(R)],
                           axis=1)                               # [N, R*D]

    # `transpose(H, R)` scramble as a static permutation matmul:
    #   hs[:, j*D + i] = flat[:, i*R + j]
    hs = jnp.dot(flat, perm_ref[...], preferred_element_type=jnp.float32)

    # ---- Semantic relation attention (first layer batched over relations) -
    hs_stack = jnp.concatenate([hs[:, j * D:(j + 1) * D] for j in range(R)],
                               axis=0)                           # [R*N, D]
    t_all = jnp.tanh(jnp.dot(hs_stack.astype(jnp.bfloat16), sw1_ref[...],
                             preferred_element_type=jnp.float32) + sb1_ref[...])
    prod = t_all * sw2_ref[...]                                  # [R*N, Hd*D]

    inv_n = 1.0 / float(N)
    scores = []                                      # scores[j][d] : [1, 1]
    for j in range(R):
        # mean over nodes first (sublane reduce), then per-head lane sums
        colsum = jnp.sum(prod[j * N:(j + 1) * N, :], axis=0,
                         keepdims=True) * inv_n                  # [1, Hd*D]
        scores.append([jnp.sum(colsum[:, d * D:(d + 1) * D], axis=1,
                               keepdims=True) for d in range(Hd)])

    # gamma[j] = sum_d softmax_over_j(scores[., d])[j]
    gammas = [jnp.zeros((1, 1), jnp.float32) for _ in range(R)]
    for d in range(Hd):
        col = [scores[j][d] for j in range(R)]
        mx = col[0]
        for j in range(1, R):
            mx = jnp.maximum(mx, col[j])
        ex = [jnp.exp(c - mx) for c in col]
        den = ex[0]
        for j in range(1, R):
            den = den + ex[j]
        for j in range(R):
            gammas[j] = gammas[j] + ex[j] / den

    out = jnp.zeros((N, D), jnp.float32)
    for j in range(R):
        out = out + (gammas[j] * inv_heads) * hs[:, j * D:(j + 1) * D]
    out_ref[...] = out                               # lane-dense [N, 128] store


# ----------------------------------------------------------------------------
# Wrapper
# ----------------------------------------------------------------------------
def rgt_layer_forward(params, x, adj, *, num_heads, num_relations):
    N, D = x.shape
    R, Hd = num_relations, num_heads
    P = params["w_proj"].shape[1]

    kern = functools.partial(_rgt_kernel, num_relations=R, num_heads=Hd,
                             dim=D, num_nodes=N)
    return pl.pallas_call(
        kern,
        out_shape=jax.ShapeDtypeStruct((N, D), jnp.float32),
        grid=(1,),
        in_specs=[
            pl.BlockSpec((N, D), lambda i: (0, 0)),            # x
            pl.BlockSpec((R, N, N), lambda i: (0, 0, 0)),      # adjacency masks
            pl.BlockSpec((D, P), lambda i: (0, 0)),            # stacked proj W (bf16)
            pl.BlockSpec((1, P), lambda i: (0, 0)),            # stacked proj b (f32)
            pl.BlockSpec((D, D), lambda i: (0, 0)),            # gate W_u (bf16)
            pl.BlockSpec((R * D, R * D), lambda i: (0, 0)),    # permutation matrix
            pl.BlockSpec((D, Hd * D), lambda i: (0, 0)),       # semantic W1 (bf16)
            pl.BlockSpec((1, Hd * D), lambda i: (0, 0)),       # semantic b1
            pl.BlockSpec((1, Hd * D), lambda i: (0, 0)),       # semantic w2
        ],
        out_specs=pl.BlockSpec((N, D), lambda i: (0, 0)),
        compiler_params=pltpu.CompilerParams(
            dimension_semantics=("arbitrary",)),
    )(x, adj, params["w_proj"], params["b_proj"], params["wg_u"],
      params["perm"], params["sem_w1"], params["sem_b1"], params["sem_w2"])


# ----------------------------------------------------------------------------
# Deterministic synthetic parameters (torch-Linear-style shapes, stacked)
# ----------------------------------------------------------------------------
def make_params(key, dim, num_heads, num_relations):
    D, Hd, R = dim, num_heads, num_relations
    keys = iter(jax.random.split(key, 64))

    def unif(shape, bound):
        return jax.random.uniform(next(keys), shape, jnp.float32, -bound, bound)

    bnd = 1.0 / math.sqrt(D)
    wq, bq, wk, bk, wv, bv, ws, bs = [], [], [], [], [], [], [], []
    for _ in range(R):                                   # per-relation TransformerConv
        wq.append(unif((D, Hd * D), bnd)); bq.append(unif((1, Hd * D), bnd))
        wk.append(unif((D, Hd * D), bnd)); bk.append(unif((1, Hd * D), bnd))
        wv.append(unif((D, Hd * D), bnd)); bv.append(unif((1, Hd * D), bnd))
        ws.append(unif((D, D), bnd));      bs.append(unif((1, D), bnd))

    gbnd = 1.0 / math.sqrt(2 * D)                        # gate: Linear(in+out, in)
    wg_u = unif((D, D), gbnd)                            # U-part of the gate weight
    wg_x = unif((D, D), gbnd)                            # x-part of the gate weight
    bg = unif((1, D), gbnd)

    sem_w1 = [unif((D, D), bnd) for _ in range(Hd)]      # Semantic Wd[d] linear1
    sem_b1 = [unif((1, D), bnd) for _ in range(Hd)]
    sem_w2 = [unif((1, D), bnd) for _ in range(Hd)]      # linear2 (no bias)

    # Stack every x-projection into one lane-dense slab: [Q | K | V | skip | gate_x]
    w_proj = jnp.concatenate(
        [jnp.concatenate(wq, axis=1), jnp.concatenate(wk, axis=1),
         jnp.concatenate(wv, axis=1), jnp.concatenate(ws, axis=1), wg_x], axis=1)
    b_proj = jnp.concatenate(
        [jnp.concatenate(bq, axis=1), jnp.concatenate(bk, axis=1),
         jnp.concatenate(bv, axis=1), jnp.concatenate(bs, axis=1), bg], axis=1)

    # Static permutation matrix implementing transpose(H, R):
    #   hs[:, (g % R)*D + g//R] = flat[:, g]
    g = jnp.arange(R * D)
    perm = jnp.zeros((R * D, R * D), jnp.float32).at[
        g, (g % R) * D + (g // R)].set(1.0)

    return dict(
        w_proj=w_proj.astype(jnp.bfloat16),
        b_proj=b_proj,
        wg_u=wg_u.astype(jnp.bfloat16),
        perm=perm,
        sem_w1=jnp.concatenate(sem_w1, axis=1).astype(jnp.bfloat16),
        sem_b1=jnp.concatenate(sem_b1, axis=1),
        sem_w2=jnp.concatenate(sem_w2, axis=1),
    )


# ----------------------------------------------------------------------------
if __name__ == "__main__":
    # Small shapes consistent with the module (in_dim == out_dim required by
    # RGTLayer's gating arithmetic); D=128 keeps all stores lane-dense.
    N, D, Hd, R = 16, 128, 2, 3
    n_edges = 48

    key = jax.random.PRNGKey(0)
    kx, kedge, kparam = jax.random.split(key, 3)

    x = jax.random.normal(kx, (N, D), jnp.float32)

    # edge_index_list -> per-relation dense adjacency masks adj[r, dst, src]
    # TODO(synk): TransformerConv does not add self loops; none are added here.
    ek = jax.random.split(kedge, R)
    adjs = []
    for r in range(R):
        ks, kd = jax.random.split(ek[r])
        src = jax.random.randint(ks, (n_edges,), 0, N)
        dst = jax.random.randint(kd, (n_edges,), 0, N)
        adjs.append(jnp.zeros((N, N), jnp.float32).at[dst, src].set(1.0))
    adj = jnp.stack(adjs, axis=0)

    params = make_params(kparam, D, Hd, R)

    out = rgt_layer_forward(params, x, adj, num_heads=Hd, num_relations=R)
    jax.block_until_ready(out)
    assert out.shape == (N, D)
    assert bool(jnp.all(jnp.isfinite(out)))
    print("KERNEL_OK")
</pallas_src>

<mosaic_0001>
module attributes {stable_mosaic.version = 11 : i64} {
  func.func @_rgt_kernel(%arg0: i32, %arg1: memref<16x128xf32, #tpu.memory_space<vmem>>, %arg2: memref<3x16x16xf32, #tpu.memory_space<vmem>>, %arg3: memref<128x2816xbf16, #tpu.memory_space<vmem>>, %arg4: memref<1x2816xf32, #tpu.memory_space<vmem>>, %arg5: memref<128x128xbf16, #tpu.memory_space<vmem>>, %arg6: memref<384x384xf32, #tpu.memory_space<vmem>>, %arg7: memref<128x256xbf16, #tpu.memory_space<vmem>>, %arg8: memref<1x256xf32, #tpu.memory_space<vmem>>, %arg9: memref<1x256xf32, #tpu.memory_space<vmem>>, %arg10: memref<16x128xf32, #tpu.memory_space<vmem>>) attributes {dimension_semantics = [#tpu.dimension_semantics<arbitrary>], iteration_bounds = array<i64: 1>, scalar_prefetch = 0 : i64, scratch_operands = 0 : i64, tpu.core_type = #tpu.core_type<tc>, window_params = [{pipeline_mode = #tpu.pipeline_mode<synchronous>, transform_indices = @transform_0, window_bounds = array<i64: 16, 128>}, {pipeline_mode = #tpu.pipeline_mode<synchronous>, transform_indices = @transform_1, window_bounds = array<i64: 3, 16, 16>}, {pipeline_mode = #tpu.pipeline_mode<synchronous>, transform_indices = @transform_2, window_bounds = array<i64: 128, 2816>}, {pipeline_mode = #tpu.pipeline_mode<synchronous>, transform_indices = @transform_3, window_bounds = array<i64: 1, 2816>}, {pipeline_mode = #tpu.pipeline_mode<synchronous>, transform_indices = @transform_4, window_bounds = array<i64: 128, 128>}, {pipeline_mode = #tpu.pipeline_mode<synchronous>, transform_indices = @transform_5, window_bounds = array<i64: 384, 384>}, {pipeline_mode = #tpu.pipeline_mode<synchronous>, transform_indices = @transform_6, window_bounds = array<i64: 128, 256>}, {pipeline_mode = #tpu.pipeline_mode<synchronous>, transform_indices = @transform_7, window_bounds = array<i64: 1, 256>}, {pipeline_mode = #tpu.pipeline_mode<synchronous>, transform_indices = @transform_8, window_bounds = array<i64: 1, 256>}, {pipeline_mode = #tpu.pipeline_mode<synchronous>, transform_indices = @transform_9, window_bounds = array<i64: 16, 128>}]} {
    %c0 = arith.constant 0 : index
    %c0_0 = arith.constant 0 : index
    %0 = vector.load %arg1[%c0, %c0_0] : memref<16x128xf32, #tpu.memory_space<vmem>>, vector<16x128xf32>
    %1 = arith.truncf %0 : vector<16x128xf32> to vector<16x128xbf16>
    %c0_1 = arith.constant 0 : index
    %c0_2 = arith.constant 0 : index
    %2 = vector.load %arg3[%c0_1, %c0_2] : memref<128x2816xbf16, #tpu.memory_space<vmem>>, vector<128x2816xbf16>
    %cst = arith.constant dense<0.000000e+00> : vector<16x2816xf32>
    %3 = tpu.matmul %1, %2, %cst {dimension_numbers = #tpu.dot_dimension_numbers<[1], [0], [0], [1], [0, 0, 1, 1], [], []>} : vector<16x128xbf16>, vector<128x2816xbf16>, vector<16x2816xf32> -> vector<16x2816xf32>
    %c0_3 = arith.constant 0 : index
    %c0_4 = arith.constant 0 : index
    %4 = vector.load %arg4[%c0_3, %c0_4] : memref<1x2816xf32, #tpu.memory_space<vmem>>, vector<1x2816xf32>
    %5 = vector.broadcast %4 : vector<1x2816xf32> to vector<16x2816xf32>
    %6 = arith.addf %3, %5 : vector<16x2816xf32>
    %7 = vector.extract_strided_slice %6 {offsets = [0, 2688], sizes = [16, 128], strides = [1, 1]} : vector<16x2816xf32> to vector<16x128xf32>
    %c0_5 = arith.constant 0 : index
    %c0_6 = arith.constant 0 : index
    %c0_7 = arith.constant 0 : index
    %8 = vector.load %arg2[%c0_5, %c0_6, %c0_7] : memref<3x16x16xf32, #tpu.memory_space<vmem>>, vector<1x16x16xf32>
    %9 = vector.shape_cast %8 : vector<1x16x16xf32> to vector<16x16xf32>
    %cst_8 = arith.constant 0.000000e+00 : f32
    %10 = vector.broadcast %cst_8 : f32 to vector<16x16xf32>
    %11 = arith.cmpf ogt, %9, %10 : vector<16x16xf32>
    %cst_9 = arith.constant 0.000000e+00 : f32
    %12 = vector.broadcast %cst_9 : f32 to vector<16x128xf32>
    %13 = vector.extract_strided_slice %6 {offsets = [0, 0], sizes = [16, 128], strides = [1, 1]} : vector<16x2816xf32> to vector<16x128xf32>
    %14 = vector.extract_strided_slice %6 {offsets = [0, 768], sizes = [16, 128], strides = [1, 1]} : vector<16x2816xf32> to vector<16x128xf32>
    %15 = vector.extract_strided_slice %6 {offsets = [0, 1536], sizes = [16, 128], strides = [1, 1]} : vector<16x2816xf32> to vector<16x128xf32>
    %cst_10 = arith.constant dense<0.000000e+00> : vector<16x16xf32>
    %16 = tpu.matmul %13, %14, %cst_10 {dimension_numbers = #tpu.dot_dimension_numbers<[1], [1], [0], [0], [0, 0, 1, 0], [], []>} : vector<16x128xf32>, vector<16x128xf32>, vector<16x16xf32> -> vector<16x16xf32>
    %cst_11 = arith.constant 0.0883883461 : f32
    %17 = vector.broadcast %cst_11 : f32 to vector<16x16xf32>
    %18 = arith.mulf %16, %17 : vector<16x16xf32>
    %cst_12 = arith.constant -1.000000e+30 : f32
    %19 = vector.broadcast %cst_12 : f32 to vector<16x16xf32>
    %20 = arith.select %11, %18, %19 : vector<16x16xi1>, vector<16x16xf32>
    %cst_13 = arith.constant dense<0xFF800000> : vector<16xf32>
    %21 = vector.multi_reduction <maximumf>, %20, %cst_13 [1] : vector<16x16xf32> to vector<16xf32>
    %22 = vector.shape_cast %21 : vector<16xf32> to vector<16x1xf32>
    %23 = vector.broadcast %22 : vector<16x1xf32> to vector<16x16xf32>
    %24 = arith.subf %20, %23 : vector<16x16xf32>
    %25 = math.exp %24 : vector<16x16xf32>
    %cst_14 = arith.constant 0.000000e+00 : f32
    %26 = vector.broadcast %cst_14 : f32 to vector<16x16xf32>
    %27 = arith.select %11, %25, %26 : vector<16x16xi1>, vector<16x16xf32>
    %cst_15 = arith.constant dense<0.000000e+00> : vector<16xf32>
    %28 = vector.multi_reduction <add>, %27, %cst_15 [1] : vector<16x16xf32> to vector<16xf32>
    %29 = vector.shape_cast %28 : vector<16xf32> to vector<16x1xf32>
    %cst_16 = arith.constant 0.000000e+00 : f32
    %30 = vector.broadcast %cst_16 : f32 to vector<16x1xf32>
    %31 = arith.cmpf ogt, %29, %30 : vector<16x1xf32>
    %32 = tpu.reciprocal %29 {approx = true} : vector<16x1xf32> -> vector<16x1xf32>
    %cst_17 = arith.constant 0.000000e+00 : f32
    %33 = vector.broadcast %cst_17 : f32 to vector<16x1xf32>
    %34 = arith.select %31, %32, %33 : vector<16x1xi1>, vector<16x1xf32>
    %35 = vector.broadcast %34 : vector<16x1xf32> to vector<16x16xf32>
    %36 = arith.mulf %27, %35 : vector<16x16xf32>
    %cst_18 = arith.constant dense<0.000000e+00> : vector<16x128xf32>
    %37 = tpu.matmul %36, %15, %cst_18 {dimension_numbers = #tpu.dot_dimension_numbers<[1], [0], [0], [1], [0, 0, 1, 1], [], []>} : vector<16x16xf32>, vector<16x128xf32>, vector<16x128xf32> -> vector<16x128xf32>
    %38 = arith.addf %12, %37 : vector<16x128xf32>
    %39 = vector.extract_strided_slice %6 {offsets = [0, 128], sizes = [16, 128], strides = [1, 1]} : vector<16x2816xf32> to vector<16x128xf32>
    %40 = vector.extract_strided_slice %6 {offsets = [0, 896], sizes = [16, 128], strides = [1, 1]} : vector<16x2816xf32> to vector<16x128xf32>
    %41 = vector.extract_strided_slice %6 {offsets = [0, 1664], sizes = [16, 128], strides = [1, 1]} : vector<16x2816xf32> to vector<16x128xf32>
    %cst_19 = arith.constant dense<0.000000e+00> : vector<16x16xf32>
    %42 = tpu.matmul %39, %40, %cst_19 {dimension_numbers = #tpu.dot_dimension_numbers<[1], [1], [0], [0], [0, 0, 1, 0], [], []>} : vector<16x128xf32>, vector<16x128xf32>, vector<16x16xf32> -> vector<16x16xf32>
    %cst_20 = arith.constant 0.0883883461 : f32
    %43 = vector.broadcast %cst_20 : f32 to vector<16x16xf32>
    %44 = arith.mulf %42, %43 : vector<16x16xf32>
    %cst_21 = arith.constant -1.000000e+30 : f32
    %45 = vector.broadcast %cst_21 : f32 to vector<16x16xf32>
    %46 = arith.select %11, %44, %45 : vector<16x16xi1>, vector<16x16xf32>
    %cst_22 = arith.constant dense<0xFF800000> : vector<16xf32>
    %47 = vector.multi_reduction <maximumf>, %46, %cst_22 [1] : vector<16x16xf32> to vector<16xf32>
    %48 = vector.shape_cast %47 : vector<16xf32> to vector<16x1xf32>
    %49 = vector.broadcast %48 : vector<16x1xf32> to vector<16x16xf32>
    %50 = arith.subf %46, %49 : vector<16x16xf32>
    %51 = math.exp %50 : vector<16x16xf32>
    %cst_23 = arith.constant 0.000000e+00 : f32
    %52 = vector.broadcast %cst_23 : f32 to vector<16x16xf32>
    %53 = arith.select %11, %51, %52 : vector<16x16xi1>, vector<16x16xf32>
    %cst_24 = arith.constant dense<0.000000e+00> : vector<16xf32>
    %54 = vector.multi_reduction <add>, %53, %cst_24 [1] : vector<16x16xf32> to vector<16xf32>
    %55 = vector.shape_cast %54 : vector<16xf32> to vector<16x1xf32>
    %cst_25 = arith.constant 0.000000e+00 : f32
    %56 = vector.broadcast %cst_25 : f32 to vector<16x1xf32>
    %57 = arith.cmpf ogt, %55, %56 : vector<16x1xf32>
    %58 = tpu.reciprocal %55 {approx = true} : vector<16x1xf32> -> vector<16x1xf32>
    %cst_26 = arith.constant 0.000000e+00 : f32
    %59 = vector.broadcast %cst_26 : f32 to vector<16x1xf32>
    %60 = arith.select %57, %58, %59 : vector<16x1xi1>, vector<16x1xf32>
    %61 = vector.broadcast %60 : vector<16x1xf32> to vector<16x16xf32>
    %62 = arith.mulf %53, %61 : vector<16x16xf32>
    %cst_27 = arith.constant dense<0.000000e+00> : vector<16x128xf32>
    %63 = tpu.matmul %62, %41, %cst_27 {dimension_numbers = #tpu.dot_dimension_numbers<[1], [0], [0], [1], [0, 0, 1, 1], [], []>} : vector<16x16xf32>, vector<16x128xf32>, vector<16x128xf32> -> vector<16x128xf32>
    %64 = arith.addf %38, %63 : vector<16x128xf32>
    %65 = vector.extract_strided_slice %6 {offsets = [0, 2304], sizes = [16, 128], strides = [1, 1]} : vector<16x2816xf32> to vector<16x128xf32>
    %cst_28 = arith.constant 5.000000e-01 : f32
    %66 = vector.broadcast %cst_28 : f32 to vector<16x128xf32>
    %67 = arith.mulf %64, %66 : vector<16x128xf32>
    %68 = arith.addf %67, %65 : vector<16x128xf32>
    %c1 = arith.constant 1 : index
    %c0_29 = arith.constant 0 : index
    %c0_30 = arith.constant 0 : index
    %69 = vector.load %arg2[%c1, %c0_29, %c0_30] : memref<3x16x16xf32, #tpu.memory_space<vmem>>, vector<1x16x16xf32>
    %70 = vector.shape_cast %69 : vector<1x16x16xf32> to vector<16x16xf32>
    %cst_31 = arith.constant 0.000000e+00 : f32
    %71 = vector.broadcast %cst_31 : f32 to vector<16x16xf32>
    %72 = arith.cmpf ogt, %70, %71 : vector<16x16xf32>
    %cst_32 = arith.constant 0.000000e+00 : f32
    %73 = vector.broadcast %cst_32 : f32 to vector<16x128xf32>
    %74 = vector.extract_strided_slice %6 {offsets = [0, 256], sizes = [16, 128], strides = [1, 1]} : vector<16x2816xf32> to vector<16x128xf32>
    %75 = vector.extract_strided_slice %6 {offsets = [0, 1024], sizes = [16, 128], strides = [1, 1]} : vector<16x2816xf32> to vector<16x128xf32>
    %76 = vector.extract_strided_slice %6 {offsets = [0, 1792], sizes = [16, 128], strides = [1, 1]} : vector<16x2816xf32> to vector<16x128xf32>
    %cst_33 = arith.constant dense<0.000000e+00> : vector<16x16xf32>
    %77 = tpu.matmul %74, %75, %cst_33 {dimension_numbers = #tpu.dot_dimension_numbers<[1], [1], [0], [0], [0, 0, 1, 0], [], []>} : vector<16x128xf32>, vector<16x128xf32>, vector<16x16xf32> -> vector<16x16xf32>
    %cst_34 = arith.constant 0.0883883461 : f32
    %78 = vector.broadcast %cst_34 : f32 to vector<16x16xf32>
    %79 = arith.mulf %77, %78 : vector<16x16xf32>
    %cst_35 = arith.constant -1.000000e+30 : f32
    %80 = vector.broadcast %cst_35 : f32 to vector<16x16xf32>
    %81 = arith.select %72, %79, %80 : vector<16x16xi1>, vector<16x16xf32>
    %cst_36 = arith.constant dense<0xFF800000> : vector<16xf32>
    %82 = vector.multi_reduction <maximumf>, %81, %cst_36 [1] : vector<16x16xf32> to vector<16xf32>
    %83 = vector.shape_cast %82 : vector<16xf32> to vector<16x1xf32>
    %84 = vector.broadcast %83 : vector<16x1xf32> to vector<16x16xf32>
    %85 = arith.subf %81, %84 : vector<16x16xf32>
    %86 = math.exp %85 : vector<16x16xf32>
    %cst_37 = arith.constant 0.000000e+00 : f32
    %87 = vector.broadcast %cst_37 : f32 to vector<16x16xf32>
    %88 = arith.select %72, %86, %87 : vector<16x16xi1>, vector<16x16xf32>
    %cst_38 = arith.constant dense<0.000000e+00> : vector<16xf32>
    %89 = vector.multi_reduction <add>, %88, %cst_38 [1] : vector<16x16xf32> to vector<16xf32>
    %90 = vector.shape_cast %89 : vector<16xf32> to vector<16x1xf32>
    %cst_39 = arith.constant 0.000000e+00 : f32
    %91 = vector.broadcast %cst_39 : f32 to vector<16x1xf32>
    %92 = arith.cmpf ogt, %90, %91 : vector<16x1xf32>
    %93 = tpu.reciprocal %90 {approx = true} : vector<16x1xf32> -> vector<16x1xf32>
    %cst_40 = arith.constant 0.000000e+00 : f32
    %94 = vector.broadcast %cst_40 : f32 to vector<16x1xf32>
    %95 = arith.select %92, %93, %94 : vector<16x1xi1>, vector<16x1xf32>
    %96 = vector.broadcast %95 : vector<16x1xf32> to vector<16x16xf32>
    %97 = arith.mulf %88, %96 : vector<16x16xf32>
    %cst_41 = arith.constant dense<0.000000e+00> : vector<16x128xf32>
    %98 = tpu.matmul %97, %76, %cst_41 {dimension_numbers = #tpu.dot_dimension_numbers<[1], [0], [0], [1], [0, 0, 1, 1], [], []>} : vector<16x16xf32>, vector<16x128xf32>, vector<16x128xf32> -> vector<16x128xf32>
    %99 = arith.addf %73, %98 : vector<16x128xf32>
    %100 = vector.extract_strided_slice %6 {offsets = [0, 384], sizes = [16, 128], strides = [1, 1]} : vector<16x2816xf32> to vector<16x128xf32>
    %101 = vector.extract_strided_slice %6 {offsets = [0, 1152], sizes = [16, 128], strides = [1, 1]} : vector<16x2816xf32> to vector<16x128xf32>
    %102 = vector.extract_strided_slice %6 {offsets = [0, 1920], sizes = [16, 128], strides = [1, 1]} : vector<16x2816xf32> to vector<16x128xf32>
    %cst_42 = arith.constant dense<0.000000e+00> : vector<16x16xf32>
    %103 = tpu.matmul %100, %101, %cst_42 {dimension_numbers = #tpu.dot_dimension_numbers<[1], [1], [0], [0], [0, 0, 1, 0], [], []>} : vector<16x128xf32>, vector<16x128xf32>, vector<16x16xf32> -> vector<16x16xf32>
    %cst_43 = arith.constant 0.0883883461 : f32
    %104 = vector.broadcast %cst_43 : f32 to vector<16x16xf32>
    %105 = arith.mulf %103, %104 : vector<16x16xf32>
    %cst_44 = arith.constant -1.000000e+30 : f32
    %106 = vector.broadcast %cst_44 : f32 to vector<16x16xf32>
    %107 = arith.select %72, %105, %106 : vector<16x16xi1>, vector<16x16xf32>
    %cst_45 = arith.constant dense<0xFF800000> : vector<16xf32>
    %108 = vector.multi_reduction <maximumf>, %107, %cst_45 [1] : vector<16x16xf32> to vector<16xf32>
    %109 = vector.shape_cast %108 : vector<16xf32> to vector<16x1xf32>
    %110 = vector.broadcast %109 : vector<16x1xf32> to vector<16x16xf32>
    %111 = arith.subf %107, %110 : vector<16x16xf32>
    %112 = math.exp %111 : vector<16x16xf32>
    %cst_46 = arith.constant 0.000000e+00 : f32
    %113 = vector.broadcast %cst_46 : f32 to vector<16x16xf32>
    %114 = arith.select %72, %112, %113 : vector<16x16xi1>, vector<16x16xf32>
    %cst_47 = arith.constant dense<0.000000e+00> : vector<16xf32>
    %115 = vector.multi_reduction <add>, %114, %cst_47 [1] : vector<16x16xf32> to vector<16xf32>
    %116 = vector.shape_cast %115 : vector<16xf32> to vector<16x1xf32>
    %cst_48 = arith.constant 0.000000e+00 : f32
    %117 = vector.broadcast %cst_48 : f32 to vector<16x1xf32>
    %118 = arith.cmpf ogt, %116, %117 : vector<16x1xf32>
    %119 = tpu.reciprocal %116 {approx = true} : vector<16x1xf32> -> vector<16x1xf32>
    %cst_49 = arith.constant 0.000000e+00 : f32
    %120 = vector.broadcast %cst_49 : f32 to vector<16x1xf32>
    %121 = arith.select %118, %119, %120 : vector<16x1xi1>, vector<16x1xf32>
    %122 = vector.broadcast %121 : vector<16x1xf32> to vector<16x16xf32>
    %123 = arith.mulf %114, %122 : vector<16x16xf32>
    %cst_50 = arith.constant dense<0.000000e+00> : vector<16x128xf32>
    %124 = tpu.matmul %123, %102, %cst_50 {dimension_numbers = #tpu.dot_dimension_numbers<[1], [0], [0], [1], [0, 0, 1, 1], [], []>} : vector<16x16xf32>, vector<16x128xf32>, vector<16x128xf32> -> vector<16x128xf32>
    %125 = arith.addf %99, %124 : vector<16x128xf32>
    %126 = vector.extract_strided_slice %6 {offsets = [0, 2432], sizes = [16, 128], strides = [1, 1]} : vector<16x2816xf32> to vector<16x128xf32>
    %cst_51 = arith.constant 5.000000e-01 : f32
    %127 = vector.broadcast %cst_51 : f32 to vector<16x128xf32>
    %128 = arith.mulf %125, %127 : vector<16x128xf32>
    %129 = arith.addf %128, %126 : vector<16x128xf32>
    %c2 = arith.constant 2 : index
    %c0_52 = arith.constant 0 : index
    %c0_53 = arith.constant 0 : index
    %130 = vector.load %arg2[%c2, %c0_52, %c0_53] : memref<3x16x16xf32, #tpu.memory_space<vmem>>, vector<1x16x16xf32>
    %131 = vector.shape_cast %130 : vector<1x16x16xf32> to vector<16x16xf32>
    %cst_54 = arith.constant 0.000000e+00 : f32
    %132 = vector.broadcast %cst_54 : f32 to vector<16x16xf32>
    %133 = arith.cmpf ogt, %131, %132 : vector<16x16xf32>
    %cst_55 = arith.constant 0.000000e+00 : f32
    %134 = vector.broadcast %cst_55 : f32 to vector<16x128xf32>
    %135 = vector.extract_strided_slice %6 {offsets = [0, 512], sizes = [16, 128], strides = [1, 1]} : vector<16x2816xf32> to vector<16x128xf32>
    %136 = vector.extract_strided_slice %6 {offsets = [0, 1280], sizes = [16, 128], strides = [1, 1]} : vector<16x2816xf32> to vector<16x128xf32>
    %137 = vector.extract_strided_slice %6 {offsets = [0, 2048], sizes = [16, 128], strides = [1, 1]} : vector<16x2816xf32> to vector<16x128xf32>
    %cst_56 = arith.constant dense<0.000000e+00> : vector<16x16xf32>
    %138 = tpu.matmul %135, %136, %cst_56 {dimension_numbers = #tpu.dot_dimension_numbers<[1], [1], [0], [0], [0, 0, 1, 0], [], []>} : vector<16x128xf32>, vector<16x128xf32>, vector<16x16xf32> -> vector<16x16xf32>
    %cst_57 = arith.constant 0.0883883461 : f32
    %139 = vector.broadcast %cst_57 : f32 to vector<16x16xf32>
    %140 = arith.mulf %138, %139 : vector<16x16xf32>
    %cst_58 = arith.constant -1.000000e+30 : f32
    %141 = vector.broadcast %cst_58 : f32 to vector<16x16xf32>
    %142 = arith.select %133, %140, %141 : vector<16x16xi1>, vector<16x16xf32>
    %cst_59 = arith.constant dense<0xFF800000> : vector<16xf32>
    %143 = vector.multi_reduction <maximumf>, %142, %cst_59 [1] : vector<16x16xf32> to vector<16xf32>
    %144 = vector.shape_cast %143 : vector<16xf32> to vector<16x1xf32>
    %145 = vector.broadcast %144 : vector<16x1xf32> to vector<16x16xf32>
    %146 = arith.subf %142, %145 : vector<16x16xf32>
    %147 = math.exp %146 : vector<16x16xf32>
    %cst_60 = arith.constant 0.000000e+00 : f32
    %148 = vector.broadcast %cst_60 : f32 to vector<16x16xf32>
    %149 = arith.select %133, %147, %148 : vector<16x16xi1>, vector<16x16xf32>
    %cst_61 = arith.constant dense<0.000000e+00> : vector<16xf32>
    %150 = vector.multi_reduction <add>, %149, %cst_61 [1] : vector<16x16xf32> to vector<16xf32>
    %151 = vector.shape_cast %150 : vector<16xf32> to vector<16x1xf32>
    %cst_62 = arith.constant 0.000000e+00 : f32
    %152 = vector.broadcast %cst_62 : f32 to vector<16x1xf32>
    %153 = arith.cmpf ogt, %151, %152 : vector<16x1xf32>
    %154 = tpu.reciprocal %151 {approx = true} : vector<16x1xf32> -> vector<16x1xf32>
    %cst_63 = arith.constant 0.000000e+00 : f32
    %155 = vector.broadcast %cst_63 : f32 to vector<16x1xf32>
    %156 = arith.select %153, %154, %155 : vector<16x1xi1>, vector<16x1xf32>
    %157 = vector.broadcast %156 : vector<16x1xf32> to vector<16x16xf32>
    %158 = arith.mulf %149, %157 : vector<16x16xf32>
    %cst_64 = arith.constant dense<0.000000e+00> : vector<16x128xf32>
    %159 = tpu.matmul %158, %137, %cst_64 {dimension_numbers = #tpu.dot_dimension_numbers<[1], [0], [0], [1], [0, 0, 1, 1], [], []>} : vector<16x16xf32>, vector<16x128xf32>, vector<16x128xf32> -> vector<16x128xf32>
    %160 = arith.addf %134, %159 : vector<16x128xf32>
    %161 = vector.extract_strided_slice %6 {offsets = [0, 640], sizes = [16, 128], strides = [1, 1]} : vector<16x2816xf32> to vector<16x128xf32>
    %162 = vector.extract_strided_slice %6 {offsets = [0, 1408], sizes = [16, 128], strides = [1, 1]} : vector<16x2816xf32> to vector<16x128xf32>
    %163 = vector.extract_strided_slice %6 {offsets = [0, 2176], sizes = [16, 128], strides = [1, 1]} : vector<16x2816xf32> to vector<16x128xf32>
    %cst_65 = arith.constant dense<0.000000e+00> : vector<16x16xf32>
    %164 = tpu.matmul %161, %162, %cst_65 {dimension_numbers = #tpu.dot_dimension_numbers<[1], [1], [0], [0], [0, 0, 1, 0], [], []>} : vector<16x128xf32>, vector<16x128xf32>, vector<16x16xf32> -> vector<16x16xf32>
    %cst_66 = arith.constant 0.0883883461 : f32
    %165 = vector.broadcast %cst_66 : f32 to vector<16x16xf32>
    %166 = arith.mulf %164, %165 : vector<16x16xf32>
    %cst_67 = arith.constant -1.000000e+30 : f32
    %167 = vector.broadcast %cst_67 : f32 to vector<16x16xf32>
    %168 = arith.select %133, %166, %167 : vector<16x16xi1>, vector<16x16xf32>
    %cst_68 = arith.constant dense<0xFF800000> : vector<16xf32>
    %169 = vector.multi_reduction <maximumf>, %168, %cst_68 [1] : vector<16x16xf32> to vector<16xf32>
    %170 = vector.shape_cast %169 : vector<16xf32> to vector<16x1xf32>
    %171 = vector.broadcast %170 : vector<16x1xf32> to vector<16x16xf32>
    %172 = arith.subf %168, %171 : vector<16x16xf32>
    %173 = math.exp %172 : vector<16x16xf32>
    %cst_69 = arith.constant 0.000000e+00 : f32
    %174 = vector.broadcast %cst_69 : f32 to vector<16x16xf32>
    %175 = arith.select %133, %173, %174 : vector<16x16xi1>, vector<16x16xf32>
    %cst_70 = arith.constant dense<0.000000e+00> : vector<16xf32>
    %176 = vector.multi_reduction <add>, %175, %cst_70 [1] : vector<16x16xf32> to vector<16xf32>
    %177 = vector.shape_cast %176 : vector<16xf32> to vector<16x1xf32>
    %cst_71 = arith.constant 0.000000e+00 : f32
    %178 = vector.broadcast %cst_71 : f32 to vector<16x1xf32>
    %179 = arith.cmpf ogt, %177, %178 : vector<16x1xf32>
    %180 = tpu.reciprocal %177 {approx = true} : vector<16x1xf32> -> vector<16x1xf32>
    %cst_72 = arith.constant 0.000000e+00 : f32
    %181 = vector.broadcast %cst_72 : f32 to vector<16x1xf32>
    %182 = arith.select %179, %180, %181 : vector<16x1xi1>, vector<16x1xf32>
    %183 = vector.broadcast %182 : vector<16x1xf32> to vector<16x16xf32>
    %184 = arith.mulf %175, %183 : vector<16x16xf32>
    %cst_73 = arith.constant dense<0.000000e+00> : vector<16x128xf32>
    %185 = tpu.matmul %184, %163, %cst_73 {dimension_numbers = #tpu.dot_dimension_numbers<[1], [0], [0], [1], [0, 0, 1, 1], [], []>} : vector<16x16xf32>, vector<16x128xf32>, vector<16x128xf32> -> vector<16x128xf32>
    %186 = arith.addf %160, %185 : vector<16x128xf32>
    %187 = vector.extract_strided_slice %6 {offsets = [0, 2560], sizes = [16, 128], strides = [1, 1]} : vector<16x2816xf32> to vector<16x128xf32>
    %cst_74 = arith.constant 5.000000e-01 : f32
    %188 = vector.broadcast %cst_74 : f32 to vector<16x128xf32>
    %189 = arith.mulf %186, %188 : vector<16x128xf32>
    %190 = arith.addf %189, %187 : vector<16x128xf32>
    %191 = tpu.concatenate %68, %129, %190 in 0 : vector<16x128xf32>, vector<16x128xf32>, vector<16x128xf32> -> vector<48x128xf32>
    %192 = tpu.concatenate %7, %7, %7 in 0 : vector<16x128xf32>, vector<16x128xf32>, vector<16x128xf32> -> vector<48x128xf32>
    %193 = tpu.concatenate %0, %0, %0 in 0 : vector<16x128xf32>, vector<16x128xf32>, vector<16x128xf32> -> vector<48x128xf32>
    %194 = arith.truncf %191 : vector<48x128xf32> to vector<48x128xbf16>
    %c0_75 = arith.constant 0 : index
    %c0_76 = arith.constant 0 : index
    %195 = vector.load %arg5[%c0_75, %c0_76] : memref<128x128xbf16, #tpu.memory_space<vmem>>, vector<128x128xbf16>
    %cst_77 = arith.constant dense<0.000000e+00> : vector<48x128xf32>
    %196 = tpu.matmul %194, %195, %cst_77 {dimension_numbers = #tpu.dot_dimension_numbers<[1], [0], [0], [1], [0, 0, 1, 1], [], []>} : vector<48x128xbf16>, vector<128x128xbf16>, vector<48x128xf32> -> vector<48x128xf32>
    %197 = arith.addf %196, %192 : vector<48x128xf32>
    %198 = arith.negf %197 : vector<48x128xf32>
    %199 = math.exp %198 : vector<48x128xf32>
    %cst_78 = arith.constant 1.000000e+00 : f32
    %200 = vector.broadcast %cst_78 : f32 to vector<48x128xf32>
    %201 = arith.addf %200, %199 : vector<48x128xf32>
    %202 = arith.divf %200, %201 : vector<48x128xf32>
    %203 = math.tanh %191 : vector<48x128xf32>
    %204 = arith.mulf %203, %202 : vector<48x128xf32>
    %cst_79 = arith.constant 1.000000e+00 : f32
    %205 = vector.broadcast %cst_79 : f32 to vector<48x128xf32>
    %206 = arith.subf %205, %202 : vector<48x128xf32>
    %207 = arith.mulf %193, %206 : vector<48x128xf32>
    %208 = arith.addf %204, %207 : vector<48x128xf32>
    %209 = vector.extract_strided_slice %208 {offsets = [0, 0], sizes = [16, 128], strides = [1, 1]} : vector<48x128xf32> to vector<16x128xf32>
    %210 = vector.extract_strided_slice %208 {offsets = [16, 0], sizes = [16, 128], strides = [1, 1]} : vector<48x128xf32> to vector<16x128xf32>
    %211 = vector.extract_strided_slice %208 {offsets = [32, 0], sizes = [16, 128], strides = [1, 1]} : vector<48x128xf32> to vector<16x128xf32>
    %212 = tpu.concatenate %209, %210, %211 in 1 : vector<16x128xf32>, vector<16x128xf32>, vector<16x128xf32> -> vector<16x384xf32>
    %c0_80 = arith.constant 0 : index
    %c0_81 = arith.constant 0 : index
    %213 = vector.load %arg6[%c0_80, %c0_81] : memref<384x384xf32, #tpu.memory_space<vmem>>, vector<384x384xf32>
    %cst_82 = arith.constant dense<0.000000e+00> : vector<16x384xf32>
    %214 = tpu.matmul %212, %213, %cst_82 {dimension_numbers = #tpu.dot_dimension_numbers<[1], [0], [0], [1], [0, 0, 1, 1], [], []>} : vector<16x384xf32>, vector<384x384xf32>, vector<16x384xf32> -> vector<16x384xf32>
    %215 = vector.extract_strided_slice %214 {offsets = [0, 0], sizes = [16, 128], strides = [1, 1]} : vector<16x384xf32> to vector<16x128xf32>
    %216 = vector.extract_strided_slice %214 {offsets = [0, 128], sizes = [16, 128], strides = [1, 1]} : vector<16x384xf32> to vector<16x128xf32>
    %217 = vector.extract_strided_slice %214 {offsets = [0, 256], sizes = [16, 128], strides = [1, 1]} : vector<16x384xf32> to vector<16x128xf32>
    %218 = tpu.concatenate %215, %216, %217 in 0 : vector<16x128xf32>, vector<16x128xf32>, vector<16x128xf32> -> vector<48x128xf32>
    %219 = arith.truncf %218 : vector<48x128xf32> to vector<48x128xbf16>
    %c0_83 = arith.constant 0 : index
    %c0_84 = arith.constant 0 : index
    %220 = vector.load %arg7[%c0_83, %c0_84] : memref<128x256xbf16, #tpu.memory_space<vmem>>, vector<128x256xbf16>
    %cst_85 = arith.constant dense<0.000000e+00> : vector<48x256xf32>
    %221 = tpu.matmul %219, %220, %cst_85 {dimension_numbers = #tpu.dot_dimension_numbers<[1], [0], [0], [1], [0, 0, 1, 1], [], []>} : vector<48x128xbf16>, vector<128x256xbf16>, vector<48x256xf32> -> vector<48x256xf32>
    %c0_86 = arith.constant 0 : index
    %c0_87 = arith.constant 0 : index
    %222 = vector.load %arg8[%c0_86, %c0_87] : memref<1x256xf32, #tpu.memory_space<vmem>>, vector<1x256xf32>
    %223 = vector.broadcast %222 : vector<1x256xf32> to vector<48x256xf32>
    %224 = arith.addf %221, %223 : vector<48x256xf32>
    %225 = math.tanh %224 : vector<48x256xf32>
    %c0_88 = arith.constant 0 : index
    %c0_89 = arith.constant 0 : index
    %226 = vector.load %arg9[%c0_88, %c0_89] : memref<1x256xf32, #tpu.memory_space<vmem>>, vector<1x256xf32>
    %227 = vector.broadcast %226 : vector<1x256xf32> to vector<48x256xf32>
    %228 = arith.mulf %225, %227 : vector<48x256xf32>
    %229 = vector.extract_strided_slice %228 {offsets = [0, 0], sizes = [16, 256], strides = [1, 1]} : vector<48x256xf32> to vector<16x256xf32>
    %cst_90 = arith.constant dense<0.000000e+00> : vector<256xf32>
    %230 = vector.multi_reduction <add>, %229, %cst_90 [0] : vector<16x256xf32> to vector<256xf32>
    %231 = vector.shape_cast %230 : vector<256xf32> to vector<1x256xf32>
    %cst_91 = arith.constant 6.250000e-02 : f32
    %232 = vector.broadcast %cst_91 : f32 to vector<1x256xf32>
    %233 = arith.mulf %231, %232 : vector<1x256xf32>
    %234 = vector.extract_strided_slice %233 {offsets = [0, 0], sizes = [1, 128], strides = [1, 1]} : vector<1x256xf32> to vector<1x128xf32>
    %cst_92 = arith.constant dense<0.000000e+00> : vector<1xf32>
    %235 = vector.multi_reduction <add>, %234, %cst_92 [1] : vector<1x128xf32> to vector<1xf32>
    %236 = vector.shape_cast %235 : vector<1xf32> to vector<1x1xf32>
    %237 = vector.extract_strided_slice %233 {offsets = [0, 128], sizes = [1, 128], strides = [1, 1]} : vector<1x256xf32> to vector<1x128xf32>
    %cst_93 = arith.constant dense<0.000000e+00> : vector<1xf32>
    %238 = vector.multi_reduction <add>, %237, %cst_93 [1] : vector<1x128xf32> to vector<1xf32>
    %239 = vector.shape_cast %238 : vector<1xf32> to vector<1x1xf32>
    %240 = vector.extract_strided_slice %228 {offsets = [16, 0], sizes = [16, 256], strides = [1, 1]} : vector<48x256xf32> to vector<16x256xf32>
    %cst_94 = arith.constant dense<0.000000e+00> : vector<256xf32>
    %241 = vector.multi_reduction <add>, %240, %cst_94 [0] : vector<16x256xf32> to vector<256xf32>
    %242 = vector.shape_cast %241 : vector<256xf32> to vector<1x256xf32>
    %cst_95 = arith.constant 6.250000e-02 : f32
    %243 = vector.broadcast %cst_95 : f32 to vector<1x256xf32>
    %244 = arith.mulf %242, %243 : vector<1x256xf32>
    %245 = vector.extract_strided_slice %244 {offsets = [0, 0], sizes = [1, 128], strides = [1, 1]} : vector<1x256xf32> to vector<1x128xf32>
    %cst_96 = arith.constant dense<0.000000e+00> : vector<1xf32>
    %246 = vector.multi_reduction <add>, %245, %cst_96 [1] : vector<1x128xf32> to vector<1xf32>
    %247 = vector.shape_cast %246 : vector<1xf32> to vector<1x1xf32>
    %248 = vector.extract_strided_slice %244 {offsets = [0, 128], sizes = [1, 128], strides = [1, 1]} : vector<1x256xf32> to vector<1x128xf32>
    %cst_97 = arith.constant dense<0.000000e+00> : vector<1xf32>
    %249 = vector.multi_reduction <add>, %248, %cst_97 [1] : vector<1x128xf32> to vector<1xf32>
    %250 = vector.shape_cast %249 : vector<1xf32> to vector<1x1xf32>
    %251 = vector.extract_strided_slice %228 {offsets = [32, 0], sizes = [16, 256], strides = [1, 1]} : vector<48x256xf32> to vector<16x256xf32>
    %cst_98 = arith.constant dense<0.000000e+00> : vector<256xf32>
    %252 = vector.multi_reduction <add>, %251, %cst_98 [0] : vector<16x256xf32> to vector<256xf32>
    %253 = vector.shape_cast %252 : vector<256xf32> to vector<1x256xf32>
    %cst_99 = arith.constant 6.250000e-02 : f32
    %254 = vector.broadcast %cst_99 : f32 to vector<1x256xf32>
    %255 = arith.mulf %253, %254 : vector<1x256xf32>
    %256 = vector.extract_strided_slice %255 {offsets = [0, 0], sizes = [1, 128], strides = [1, 1]} : vector<1x256xf32> to vector<1x128xf32>
    %cst_100 = arith.constant dense<0.000000e+00> : vector<1xf32>
    %257 = vector.multi_reduction <add>, %256, %cst_100 [1] : vector<1x128xf32> to vector<1xf32>
    %258 = vector.shape_cast %257 : vector<1xf32> to vector<1x1xf32>
    %259 = vector.extract_strided_slice %255 {offsets = [0, 128], sizes = [1, 128], strides = [1, 1]} : vector<1x256xf32> to vector<1x128xf32>
    %cst_101 = arith.constant dense<0.000000e+00> : vector<1xf32>
    %260 = vector.multi_reduction <add>, %259, %cst_101 [1] : vector<1x128xf32> to vector<1xf32>
    %261 = vector.shape_cast %260 : vector<1xf32> to vector<1x1xf32>
    %cst_102 = arith.constant 0.000000e+00 : f32
    %262 = vector.broadcast %cst_102 : f32 to vector<1x1xf32>
    %cst_103 = arith.constant 0.000000e+00 : f32
    %263 = vector.broadcast %cst_103 : f32 to vector<1x1xf32>
    %cst_104 = arith.constant 0.000000e+00 : f32
    %264 = vector.broadcast %cst_104 : f32 to vector<1x1xf32>
    %265 = arith.maximumf %236, %247 : vector<1x1xf32>
    %266 = arith.maximumf %265, %258 : vector<1x1xf32>
    %267 = arith.subf %236, %266 : vector<1x1xf32>
    %268 = math.exp %267 : vector<1x1xf32>
    %269 = arith.subf %247, %266 : vector<1x1xf32>
    %270 = math.exp %269 : vector<1x1xf32>
    %271 = arith.subf %258, %266 : vector<1x1xf32>
    %272 = math.exp %271 : vector<1x1xf32>
    %273 = arith.addf %268, %270 : vector<1x1xf32>
    %274 = arith.addf %273, %272 : vector<1x1xf32>
    %275 = arith.divf %268, %274 : vector<1x1xf32>
    %276 = arith.addf %262, %275 : vector<1x1xf32>
    %277 = arith.divf %270, %274 : vector<1x1xf32>
    %278 = arith.addf %263, %277 : vector<1x1xf32>
    %279 = arith.divf %272, %274 : vector<1x1xf32>
    %280 = arith.addf %264, %279 : vector<1x1xf32>
    %281 = arith.maximumf %239, %250 : vector<1x1xf32>
    %282 = arith.maximumf %281, %261 : vector<1x1xf32>
    %283 = arith.subf %239, %282 : vector<1x1xf32>
    %284 = math.exp %283 : vector<1x1xf32>
    %285 = arith.subf %250, %282 : vector<1x1xf32>
    %286 = math.exp %285 : vector<1x1xf32>
    %287 = arith.subf %261, %282 : vector<1x1xf32>
    %288 = math.exp %287 : vector<1x1xf32>
    %289 = arith.addf %284, %286 : vector<1x1xf32>
    %290 = arith.addf %289, %288 : vector<1x1xf32>
    %291 = arith.divf %284, %290 : vector<1x1xf32>
    %292 = arith.addf %276, %291 : vector<1x1xf32>
    %293 = arith.divf %286, %290 : vector<1x1xf32>
    %294 = arith.addf %278, %293 : vector<1x1xf32>
    %295 = arith.divf %288, %290 : vector<1x1xf32>
    %296 = arith.addf %280, %295 : vector<1x1xf32>
    %cst_105 = arith.constant 0.000000e+00 : f32
    %297 = vector.broadcast %cst_105 : f32 to vector<16x128xf32>
    %cst_106 = arith.constant 5.000000e-01 : f32
    %298 = vector.broadcast %cst_106 : f32 to vector<1x1xf32>
    %299 = arith.mulf %292, %298 : vector<1x1xf32>
    %300 = vector.extract_strided_slice %214 {offsets = [0, 0], sizes = [16, 128], strides = [1, 1]} : vector<16x384xf32> to vector<16x128xf32>
    %301 = vector.broadcast %299 : vector<1x1xf32> to vector<16x128xf32>
    %302 = arith.mulf %301, %300 : vector<16x128xf32>
    %303 = arith.addf %297, %302 : vector<16x128xf32>
    %cst_107 = arith.constant 5.000000e-01 : f32
    %304 = vector.broadcast %cst_107 : f32 to vector<1x1xf32>
    %305 = arith.mulf %294, %304 : vector<1x1xf32>
    %306 = vector.extract_strided_slice %214 {offsets = [0, 128], sizes = [16, 128], strides = [1, 1]} : vector<16x384xf32> to vector<16x128xf32>
    %307 = vector.broadcast %305 : vector<1x1xf32> to vector<16x128xf32>
    %308 = arith.mulf %307, %306 : vector<16x128xf32>
    %309 = arith.addf %303, %308 : vector<16x128xf32>
    %cst_108 = arith.constant 5.000000e-01 : f32
    %310 = vector.broadcast %cst_108 : f32 to vector<1x1xf32>
    %311 = arith.mulf %296, %310 : vector<1x1xf32>
    %312 = vector.extract_strided_slice %214 {offsets = [0, 256], sizes = [16, 128], strides = [1, 1]} : vector<16x384xf32> to vector<16x128xf32>
    %313 = vector.broadcast %311 : vector<1x1xf32> to vector<16x128xf32>
    %314 = arith.mulf %313, %312 : vector<16x128xf32>
    %315 = arith.addf %309, %314 : vector<16x128xf32>
    %c0_109 = arith.constant 0 : index
    %c0_110 = arith.constant 0 : index
    %316 = vector.load %arg10[%c0_109, %c0_110] : memref<16x128xf32, #tpu.memory_space<vmem>>, vector<16x128xf32>
    tpu.vector_store %arg10[%c0_109, %c0_110], %315 {strides = array<i32>} : memref<16x128xf32, #tpu.memory_space<vmem>>, vector<16x128xf32>,
    return
  }
  func.func @transform_0(%arg0: i32) -> (i32, i32) {
    %c0_i32 = arith.constant 0 : i32
    %c0_i32_0 = arith.constant 0 : i32
    %c0_i32_1 = arith.constant 0 : i32
    return %c0_i32, %c0_i32_0 : i32, i32
  }
  func.func @transform_1(%arg0: i32) -> (i32, i32, i32) {
    %c0_i32 = arith.constant 0 : i32
    %c0_i32_0 = arith.constant 0 : i32
    %c0_i32_1 = arith.constant 0 : i32
    %c0_i32_2 = arith.constant 0 : i32
    return %c0_i32, %c0_i32_0, %c0_i32_1 : i32, i32, i32
  }
  func.func @transform_2(%arg0: i32) -> (i32, i32) {
    %c0_i32 = arith.constant 0 : i32
    %c0_i32_0 = arith.constant 0 : i32
    %c0_i32_1 = arith.constant 0 : i32
    return %c0_i32, %c0_i32_0 : i32, i32
  }
  func.func @transform_3(%arg0: i32) -> (i32, i32) {
    %c0_i32 = arith.constant 0 : i32
    %c0_i32_0 = arith.constant 0 : i32
    %c0_i32_1 = arith.constant 0 : i32
    return %c0_i32, %c0_i32_0 : i32, i32
  }
  func.func @transform_4(%arg0: i32) -> (i32, i32) {
    %c0_i32 = arith.constant 0 : i32
    %c0_i32_0 = arith.constant 0 : i32
    %c0_i32_1 = arith.constant 0 : i32
    return %c0_i32, %c0_i32_0 : i32, i32
  }
  func.func @transform_5(%arg0: i32) -> (i32, i32) {
    %c0_i32 = arith.constant 0 : i32
    %c0_i32_0 = arith.constant 0 : i32
    %c0_i32_1 = arith.constant 0 : i32
    return %c0_i32, %c0_i32_0 : i32, i32
  }
  func.func @transform_6(%arg0: i32) -> (i32, i32) {
    %c0_i32 = arith.constant 0 : i32
    %c0_i32_0 = arith.constant 0 : i32
    %c0_i32_1 = arith.constant 0 : i32
    return %c0_i32, %c0_i32_0 : i32, i32
  }
  func.func @transform_7(%arg0: i32) -> (i32, i32) {
    %c0_i32 = arith.constant 0 : i32
    %c0_i32_0 = arith.constant 0 : i32
    %c0_i32_1 = arith.constant 0 : i32
    return %c0_i32, %c0_i32_0 : i32, i32
  }
  func.func @transform_8(%arg0: i32) -> (i32, i32) {
    %c0_i32 = arith.constant 0 : i32
    %c0_i32_0 = arith.constant 0 : i32
    %c0_i32_1 = arith.constant 0 : i32
    return %c0_i32, %c0_i32_0 : i32, i32
  }
  func.func @transform_9(%arg0: i32) -> (i32, i32) {
    %c0_i32 = arith.constant 0 : i32
    %c0_i32_0 = arith.constant 0 : i32
    %c0_i32_1 = arith.constant 0 : i32
    return %c0_i32, %c0_i32_0 : i32, i32
  }
}

</mosaic_0001>

<llo_original>
// kernel: tpu_custom_call.1
$region0: #{tpu_custom_call.1}
  #allocation0 [shape = 'u32[]', space=smem, size = 0x4, offset = 0x4, fixed_abs, tag = 'smem constant byte address 0x4 - core index']
  #allocation1 [shape = 'u32[144,128]{1,0:T(1,128)}', space=vmem, size = 0x12000, scoped, tag = 'internal scratch']
  %s0 = inlined_call_operand.hbm [shape: f32[16,128], index: 0, kind: input, shape index: {}]
  %s1 = inlined_call_operand.hbm [shape: f32[3,16,16], index: 1, kind: input, shape index: {}]
  %s2 = inlined_call_operand.hbm [shape: bf16[128,2816], index: 2, kind: input, shape index: {}]
  %s3 = inlined_call_operand.hbm [shape: f32[1,2816], index: 3, kind: input, shape index: {}]
  %s4 = inlined_call_operand.hbm [shape: bf16[128,128], index: 4, kind: input, shape index: {}]
  %s5 = inlined_call_operand.hbm [shape: f32[384,384], index: 5, kind: input, shape index: {}]
  %s6 = inlined_call_operand.hbm [shape: bf16[128,256], index: 6, kind: input, shape index: {}]
  %s7 = inlined_call_operand.vmem [shape: f32[1,256], index: 7, kind: input, shape index: {}]
  %s8 = inlined_call_operand.vmem [shape: f32[1,256], index: 8, kind: input, shape index: {}]
  %s9 = inlined_call_operand.hbm [shape: f32[16,128], index: 9, kind: output, shape index: {}]
  %s10 = sld [smem:[#allocation0]]
  $region74: #{tpu_custom_call.1} parent=0
    _
  %s12 = ssub.s32 1, %s10
  %s13 = scalar_select 0, %s12, %s10
  $region1: #{tpu_custom_call.1} parent=0
    #allocation2 [shape = 'u8[8192]{0}', space=vmem, size = 0x2000, scoped, tag = 'input window, operand 0, single buffered']
    #allocation3 [shape = 's32[1]{0}', space=sflag, size = 0x4, scoped, tag = 'scoped memory for tpu_custom_call.1']
    #allocation4 [shape = 's32[1]{0}', space=sflag, size = 0x4, scoped, tag = 'scoped memory for tpu_custom_call.1']
    #allocation5 [shape = 'u8[24576]{0}', space=vmem, size = 0x6000, scoped, tag = 'input window, operand 1, single buffered']
    #allocation6 [shape = 's32[1]{0}', space=sflag, size = 0x4, scoped, tag = 'scoped memory for tpu_custom_call.1']
    #allocation7 [shape = 'u8[720896]{0}', space=vmem, size = 0xb0000, scoped, tag = 'input window, operand 2, single buffered']
    #allocation8 [shape = 'u8[11264]{0}', space=vmem, size = 0x2c00, scoped, tag = 'input window, operand 3, single buffered']
    #allocation9 [shape = 's32[1]{0}', space=sflag, size = 0x4, scoped, tag = 'scoped memory for tpu_custom_call.1']
    #allocation10 [shape = 'u8[32768]{0}', space=vmem, size = 0x8000, scoped, tag = 'input window, operand 4, single buffered']
    #allocation11 [shape = 'u8[589824]{0}', space=vmem, size = 0x90000, scoped, tag = 'input window, operand 5, single buffered']
    #allocation12 [shape = 's32[1]{0}', space=sflag, size = 0x4, scoped, tag = 'scoped memory for tpu_custom_call.1']
    #allocation13 [shape = 'u8[65536]{0}', space=vmem, size = 0x10000, scoped, tag = 'input window, operand 6, single buffered']
    #allocation14 [shape = 'u8[8192]{0}', space=vmem, size = 0x2000, scoped, tag = 'output window, operand 0, single buffered']
    %14 = vsyncpa [#allocation3], 0
    %15 = vsyncpa [#allocation6], 0
    %16 = vsyncpa [#allocation9], 0
    %17 = vsyncpa [#allocation12], 0
    %18 = vsyncpa [#allocation4], 0
    // Predicated region
    $region2: #{tpu_custom_call.1} parent=1 // pred_check
      _
    $region3: #{tpu_custom_call.1} parent=1 // pred_check_branch
      %20 = sbr.rel (0) target = $region5
    $region4: #{tpu_custom_call.1} parent=1 // pred_region
      %s22 = ssub.s32 256, 256
      %23 = vsyncadd [#allocation3], %s22
      %s24 = sshll.u32 [#allocation2], 4
      %s25 = int_to_ptr.vmem [resolvable:$true] %s24
      %30 = dma.hbm_to_vmem [thread:$0]  %s0, 256, %s25, [#allocation3], 128, 128, 8
    $region5: #{tpu_custom_call.1} parent=1 // pred_fallthru
      _
    // Predicated region
    $region6: #{tpu_custom_call.1} parent=1 // pred_check
      _
    $region7: #{tpu_custom_call.1} parent=1 // pred_check_branch
      %32 = sbr.rel (0) target = $region9
    $region8: #{tpu_custom_call.1} parent=1 // pred_region
      %s34 = ssub.s32 768, 768
      %35 = vsyncadd [#allocation6], %s34
      %s36 = sshll.u32 [#allocation5], 4
      %s37 = int_to_ptr.vmem [resolvable:$true] %s36
      %42 = dma.hbm_to_vmem [thread:$0]  %s1, 768, %s37, [#allocation6], 128, 128, 8
    $region9: #{tpu_custom_call.1} parent=1 // pred_fallthru
      _
    // Predicated region
    $region10: #{tpu_custom_call.1} parent=1 // pred_check
      _
    $region11: #{tpu_custom_call.1} parent=1 // pred_check_branch
      %44 = sbr.rel (0) target = $region13
    $region12: #{tpu_custom_call.1} parent=1 // pred_region
      %s46 = ssub.s32 22528, 22528
      %47 = vsyncadd [#allocation6], %s46
      %s48 = sshll.u32 [#allocation7], 4
      %s49 = int_to_ptr.vmem [resolvable:$true] %s48
      %54 = dma.hbm_to_vmem [thread:$0]  %s2, 22528, %s49, [#allocation6], 1408, 1408, 88
    $region13: #{tpu_custom_call.1} parent=1 // pred_fallthru
      _
    // Predicated region
    $region14: #{tpu_custom_call.1} parent=1 // pred_check
      _
    $region15: #{tpu_custom_call.1} parent=1 // pred_check_branch
      %56 = sbr.rel (0) target = $region17
    $region16: #{tpu_custom_call.1} parent=1 // pred_region
      %s58 = ssub.s32 352, 352
      %59 = vsyncadd [#allocation9], %s58
      %s61 = sshll.u32 [#allocation8], 4
      %s62 = int_to_ptr.vmem [resolvable:$true] %s61
      %64 = dma.hbm_to_vmem [thread:$0]  %s3, 352, %s62, [#allocation9]
    $region17: #{tpu_custom_call.1} parent=1 // pred_fallthru
      _
    // Predicated region
    $region18: #{tpu_custom_call.1} parent=1 // pred_check
      _
    $region19: #{tpu_custom_call.1} parent=1 // pred_check_branch
      %66 = sbr.rel (0) target = $region21
    $region20: #{tpu_custom_call.1} parent=1 // pred_region
      %s68 = ssub.s32 1024, 1024
      %69 = vsyncadd [#allocation9], %s68
      %s70 = sshll.u32 [#allocation10], 4
      %s71 = int_to_ptr.vmem [resolvable:$true] %s70
      %76 = dma.hbm_to_vmem [thread:$0]  %s4, 1024, %s71, [#allocation9], 64, 64, 4
    $region21: #{tpu_custom_call.1} parent=1 // pred_fallthru
      _
    // Predicated region
    $region22: #{tpu_custom_call.1} parent=1 // pred_check
      _
    $region23: #{tpu_custom_call.1} parent=1 // pred_check_branch
      %78 = sbr.rel (0) target = $region25
    $region24: #{tpu_custom_call.1} parent=1 // pred_region
      %s80 = ssub.s32 18432, 18432
      %81 = vsyncadd [#allocation12], %s80
      %s82 = sshll.u32 [#allocation11], 4
      %s83 = int_to_ptr.vmem [resolvable:$true] %s82
      %88 = dma.hbm_to_vmem [thread:$0]  %s5, 18432, %s83, [#allocation12], 384, 384, 24
    $region25: #{tpu_custom_call.1} parent=1 // pred_fallthru
      _
    // Predicated region
    $region26: #{tpu_custom_call.1} parent=1 // pred_check
      _
    $region27: #{tpu_custom_call.1} parent=1 // pred_check_branch
      %90 = sbr.rel (0) target = $region29
    $region28: #{tpu_custom_call.1} parent=1 // pred_region
      %s92 = ssub.s32 2048, 2048
      %93 = vsyncadd [#allocation12], %s92
      %s94 = sshll.u32 [#allocation13], 4
      %s95 = int_to_ptr.vmem [resolvable:$true] %s94
      %100 = dma.hbm_to_vmem [thread:$0]  %s6, 2048, %s95, [#allocation12], 128, 128, 8
    $region29: #{tpu_custom_call.1} parent=1 // pred_fallthru
      _
    // Predicated region
    $region30: #{tpu_custom_call.1} parent=1 // pred_check
      _
    $region31: #{tpu_custom_call.1} parent=1 // pred_check_branch
      %102 = sbr.rel (0) target = $region33
    $region32: #{tpu_custom_call.1} parent=1 // pred_region
      _
    $region33: #{tpu_custom_call.1} parent=1 // pred_fallthru
      _
    // Predicated region
    $region34: #{tpu_custom_call.1} parent=1 // pred_check
      _
    $region35: #{tpu_custom_call.1} parent=1 // pred_check_branch
      %104 = sbr.rel (0) target = $region37
    $region36: #{tpu_custom_call.1} parent=1 // pred_region
      _
    $region37: #{tpu_custom_call.1} parent=1 // pred_fallthru
      _
    // Predicated region
    $region38: #{tpu_custom_call.1} parent=1 // pred_check
      _
    $region39: #{tpu_custom_call.1} parent=1 // pred_check_branch
      %106 = sbr.rel (0) target = $region41
    $region40: #{tpu_custom_call.1} parent=1 // pred_region
      %107 = dma.done [#allocation3], 256
    $region41: #{tpu_custom_call.1} parent=1 // pred_fallthru
      _
    // Predicated region
    $region42: #{tpu_custom_call.1} parent=1 // pred_check
      _
    $region43: #{tpu_custom_call.1} parent=1 // pred_check_branch
      %109 = sbr.rel (0) target = $region45
    $region44: #{tpu_custom_call.1} parent=1 // pred_region
      %110 = dma.done [#allocation6], 768
    $region45: #{tpu_custom_call.1} parent=1 // pred_fallthru
      _
    // Predicated region
    $region46: #{tpu_custom_call.1} parent=1 // pred_check
      _
    $region47: #{tpu_custom_call.1} parent=1 // pred_check_branch
      %112 = sbr.rel (0) target = $region49
    $region48: #{tpu_custom_call.1} parent=1 // pred_region
      %113 = dma.done [#allocation6], 22528
    $region49: #{tpu_custom_call.1} parent=1 // pred_fallthru
      _
    // Predicated region
    $region50: #{tpu_custom_call.1} parent=1 // pred_check
      _
    $region51: #{tpu_custom_call.1} parent=1 // pred_check_branch
      %115 = sbr.rel (0) target = $region53
    $region52: #{tpu_custom_call.1} parent=1 // pred_region
      %116 = dma.done [#allocation9], 352
    $region53: #{tpu_custom_call.1} parent=1 // pred_fallthru
      _
    // Predicated region
    $region54: #{tpu_custom_call.1} parent=1 // pred_check
      _
    $region55: #{tpu_custom_call.1} parent=1 // pred_check_branch
      %118 = sbr.rel (0) target = $region57
    $region56: #{tpu_custom_call.1} parent=1 // pred_region
      %119 = dma.done [#allocation9], 1024
    $region57: #{tpu_custom_call.1} parent=1 // pred_fallthru
      _
    // Predicated region
    $region58: #{tpu_custom_call.1} parent=1 // pred_check
      _
    $region59: #{tpu_custom_call.1} parent=1 // pred_check_branch
      %121 = sbr.rel (0) target = $region61
    $region60: #{tpu_custom_call.1} parent=1 // pred_region
      %122 = dma.done [#allocation12], 18432
    $region61: #{tpu_custom_call.1} parent=1 // pred_fallthru
      _
    // Predicated region
    $region62: #{tpu_custom_call.1} parent=1 // pred_check
      _
    $region63: #{tpu_custom_call.1} parent=1 // pred_check_branch
      %124 = sbr.rel (0) target = $region65
    $region64: #{tpu_custom_call.1} parent=1 // pred_region
      %125 = dma.done [#allocation12], 2048
    $region65: #{tpu_custom_call.1} parent=1 // pred_fallthru
      _
    %v127 = vld [vmem:[#allocation2] sm:$0xff]
    %v128 = vld [vmem:[#allocation2 + $0x8] sm:$0xff]
    %v129 = vpack.c.bf16 %v128, %v127
    %v130 = vld [vmem:[#allocation7] sm:$0xff]
    %v131 = vld [vmem:[#allocation7 + $0x8] sm:$0xff]
    %v132 = vld [vmem:[#allocation7 + $0x10] sm:$0xff]
    %v133 = vld [vmem:[#allocation7 + $0x18] sm:$0xff]
    %v134 = vld [vmem:[#allocation7 + $0x20] sm:$0xff]
    %v135 = vld [vmem:[#allocation7 + $0x28] sm:$0xff]
    %v136 = vld [vmem:[#allocation7 + $0x30] sm:$0xff]
    %v137 = vld [vmem:[#allocation7 + $0x38] sm:$0xff]
    %v138 = vld [vmem:[#allocation7 + $0x40] sm:$0xff]
    %v139 = vld [vmem:[#allocation7 + $0x48] sm:$0xff]
    %v140 = vld [vmem:[#allocation7 + $0x50] sm:$0xff]
    %v141 = vld [vmem:[#allocation7 + $0x58] sm:$0xff]
    %v142 = vld [vmem:[#allocation7 + $0x60] sm:$0xff]
    %v143 = vld [vmem:[#allocation7 + $0x68] sm:$0xff]
    %v144 = vld [vmem:[#allocation7 + $0x70] sm:$0xff]
    %v145 = vld [vmem:[#allocation7 + $0x78] sm:$0xff]
    %v146 = vld [vmem:[#allocation7 + $0x80] sm:$0xff]
    %v147 = vld [vmem:[#allocation7 + $0x88] sm:$0xff]
    %v148 = vld [vmem:[#allocation7 + $0x90] sm:$0xff]
    %v149 = vld [vmem:[#allocation7 + $0x98] sm:$0xff]
    %v150 = vld [vmem:[#allocation7 + $0xa0] sm:$0xff]
    %v151 = vld [vmem:[#allocation7 + $0xa8] sm:$0xff]
    %v152 = vld [vmem:[#allocation7 + $0xb0] sm:$0xff]
    %v153 = vld [vmem:[#allocation7 + $0xb8] sm:$0xff]
    %v154 = vld [vmem:[#allocation7 + $0xc0] sm:$0xff]
    %v155 = vld [vmem:[#allocation7 + $0xc8] sm:$0xff]
    %v156 = vld [vmem:[#allocation7 + $0xd0] sm:$0xff]
    %v157 = vld [vmem:[#allocation7 + $0xd8] sm:$0xff]
    %v158 = vld [vmem:[#allocation7 + $0xe0] sm:$0xff]
    %v159 = vld [vmem:[#allocation7 + $0xe8] sm:$0xff]
    %v160 = vld [vmem:[#allocation7 + $0xf0] sm:$0xff]
    %v161 = vld [vmem:[#allocation7 + $0xf8] sm:$0xff]
    %v162 = vld [vmem:[#allocation7 + $0x100] sm:$0xff]
    %v163 = vld [vmem:[#allocation7 + $0x108] sm:$0xff]
    %v164 = vld [vmem:[#allocation7 + $0x110] sm:$0xff]
    %v165 = vld [vmem:[#allocation7 + $0x118] sm:$0xff]
    %v166 = vld [vmem:[#allocation7 + $0x120] sm:$0xff]
    %v167 = vld [vmem:[#allocation7 + $0x128] sm:$0xff]
    %v168 = vld [vmem:[#allocation7 + $0x130] sm:$0xff]
    %v169 = vld [vmem:[#allocation7 + $0x138] sm:$0xff]
    %v170 = vld [vmem:[#allocation7 + $0x140] sm:$0xff]
    %v171 = vld [vmem:[#allocation7 + $0x148] sm:$0xff]
    %v172 = vld [vmem:[#allocation7 + $0x150] sm:$0xff]
    %v173 = vld [vmem:[#allocation7 + $0x158] sm:$0xff]
    %v174 = vld [vmem:[#allocation7 + $0x160] sm:$0xff]
    %v175 = vld [vmem:[#allocation7 + $0x168] sm:$0xff]
    %v176 = vld [vmem:[#allocation7 + $0x170] sm:$0xff]
    %v177 = vld [vmem:[#allocation7 + $0x178] sm:$0xff]
    %v178 = vld [vmem:[#allocation7 + $0x180] sm:$0xff]
    %v179 = vld [vmem:[#allocation7 + $0x188] sm:$0xff]
    %v180 = vld [vmem:[#allocation7 + $0x190] sm:$0xff]
    %v181 = vld [vmem:[#allocation7 + $0x198] sm:$0xff]
    %v182 = vld [vmem:[#allocation7 + $0x1a0] sm:$0xff]
    %v183 = vld [vmem:[#allocation7 + $0x1a8] sm:$0xff]
    %v184 = vld [vmem:[#allocation7 + $0x1b0] sm:$0xff]
    %v185 = vld [vmem:[#allocation7 + $0x1b8] sm:$0xff]
    %v186 = vld [vmem:[#allocation7 + $0x1c0] sm:$0xff]
    %v187 = vld [vmem:[#allocation7 + $0x1c8] sm:$0xff]
    %v188 = vld [vmem:[#allocation7 + $0x1d0] sm:$0xff]
    %v189 = vld [vmem:[#allocation7 + $0x1d8] sm:$0xff]
    %v190 = vld [vmem:[#allocation7 + $0x1e0] sm:$0xff]
    %v191 = vld [vmem:[#allocation7 + $0x1e8] sm:$0xff]
    %v192 = vld [vmem:[#allocation7 + $0x1f0] sm:$0xff]
    %v193 = vld [vmem:[#allocation7 + $0x1f8] sm:$0xff]
    %v194 = vld [vmem:[#allocation7 + $0x200] sm:$0xff]
    %v195 = vld [vmem:[#allocation7 + $0x208] sm:$0xff]
    %v196 = vld [vmem:[#allocation7 + $0x210] sm:$0xff]
    %v197 = vld [vmem:[#allocation7 + $0x218] sm:$0xff]
    %v198 = vld [vmem:[#allocation7 + $0x220] sm:$0xff]
    %v199 = vld [vmem:[#allocation7 + $0x228] sm:$0xff]
    %v200 = vld [vmem:[#allocation7 + $0x230] sm:$0xff]
    %v201 = vld [vmem:[#allocation7 + $0x238] sm:$0xff]
    %v202 = vld [vmem:[#allocation7 + $0x240] sm:$0xff]
    %v203 = vld [vmem:[#allocation7 + $0x248] sm:$0xff]
    %v204 = vld [vmem:[#allocation7 + $0x250] sm:$0xff]
    %v205 = vld [vmem:[#allocation7 + $0x258] sm:$0xff]
    %v206 = vld [vmem:[#allocation7 + $0x260] sm:$0xff]
    %v207 = vld [vmem:[#allocation7 + $0x268] sm:$0xff]
    %v208 = vld [vmem:[#allocation7 + $0x270] sm:$0xff]
    %v209 = vld [vmem:[#allocation7 + $0x278] sm:$0xff]
    %v210 = vld [vmem:[#allocation7 + $0x280] sm:$0xff]
    %v211 = vld [vmem:[#allocation7 + $0x288] sm:$0xff]
    %v212 = vld [vmem:[#allocation7 + $0x290] sm:$0xff]
    %v213 = vld [vmem:[#allocation7 + $0x298] sm:$0xff]
    %v214 = vld [vmem:[#allocation7 + $0x2a0] sm:$0xff]
    %v215 = vld [vmem:[#allocation7 + $0x2a8] sm:$0xff]
    %v216 = vld [vmem:[#allocation7 + $0x2b0] sm:$0xff]
    %v217 = vld [vmem:[#allocation7 + $0x2b8] sm:$0xff]
    %v218 = vld [vmem:[#allocation7 + $0x2c0] sm:$0xff]
    %v219 = vld [vmem:[#allocation7 + $0x2c8] sm:$0xff]
    %v220 = vld [vmem:[#allocation7 + $0x2d0] sm:$0xff]
    %v221 = vld [vmem:[#allocation7 + $0x2d8] sm:$0xff]
    %v222 = vld [vmem:[#allocation7 + $0x2e0] sm:$0xff]
    %v223 = vld [vmem:[#allocation7 + $0x2e8] sm:$0xff]
    %v224 = vld [vmem:[#allocation7 + $0x2f0] sm:$0xff]
    %v225 = vld [vmem:[#allocation7 + $0x2f8] sm:$0xff]
    %v226 = vld [vmem:[#allocation7 + $0x300] sm:$0xff]
    %v227 = vld [vmem:[#allocation7 + $0x308] sm:$0xff]
    %v228 = vld [vmem:[#allocation7 + $0x310] sm:$0xff]
    %v229 = vld [vmem:[#allocation7 + $0x318] sm:$0xff]
    %v230 = vld [vmem:[#allocation7 + $0x320] sm:$0xff]
    %v231 = vld [vmem:[#allocation7 + $0x328] sm:$0xff]
    %v232 = vld [vmem:[#allocation7 + $0x330] sm:$0xff]
    %v233 = vld [vmem:[#allocation7 + $0x338] sm:$0xff]
    %v234 = vld [vmem:[#allocation7 + $0x340] sm:$0xff]
    %v235 = vld [vmem:[#allocation7 + $0x348] sm:$0xff]
    %v236 = vld [vmem:[#allocation7 + $0x350] sm:$0xff]
    %v237 = vld [vmem:[#allocation7 + $0x358] sm:$0xff]
    %v238 = vld [vmem:[#allocation7 + $0x360] sm:$0xff]
    %v239 = vld [vmem:[#allocation7 + $0x368] sm:$0xff]
    %v240 = vld [vmem:[#allocation7 + $0x370] sm:$0xff]
    %v241 = vld [vmem:[#allocation7 + $0x378] sm:$0xff]
    %v242 = vld [vmem:[#allocation7 + $0x380] sm:$0xff]
    %v243 = vld [vmem:[#allocation7 + $0x388] sm:$0xff]
    %v244 = vld [vmem:[#allocation7 + $0x390] sm:$0xff]
    %v245 = vld [vmem:[#allocation7 + $0x398] sm:$0xff]
    %v246 = vld [vmem:[#allocation7 + $0x3a0] sm:$0xff]
    %v247 = vld [vmem:[#allocation7 + $0x3a8] sm:$0xff]
    %v248 = vld [vmem:[#allocation7 + $0x3b0] sm:$0xff]
    %v249 = vld [vmem:[#allocation7 + $0x3b8] sm:$0xff]
    %v250 = vld [vmem:[#allocation7 + $0x3c0] sm:$0xff]
    %v251 = vld [vmem:[#allocation7 + $0x3c8] sm:$0xff]
    %v252 = vld [vmem:[#allocation7 + $0x3d0] sm:$0xff]
    %v253 = vld [vmem:[#allocation7 + $0x3d8] sm:$0xff]
    %v254 = vld [vmem:[#allocation7 + $0x3e0] sm:$0xff]
    %v255 = vld [vmem:[#allocation7 + $0x3e8] sm:$0xff]
    %v256 = vld [vmem:[#allocation7 + $0x3f0] sm:$0xff]
    %v257 = vld [vmem:[#allocation7 + $0x3f8] sm:$0xff]
    %v258 = vld [vmem:[#allocation7 + $0x400] sm:$0xff]
    %v259 = vld [vmem:[#allocation7 + $0x408] sm:$0xff]
    %v260 = vld [vmem:[#allocation7 + $0x410] sm:$0xff]
    %v261 = vld [vmem:[#allocation7 + $0x418] sm:$0xff]
    %v262 = vld [vmem:[#allocation7 + $0x420] sm:$0xff]
    %v263 = vld [vmem:[#allocation7 + $0x428] sm:$0xff]
    %v264 = vld [vmem:[#allocation7 + $0x430] sm:$0xff]
    %v265 = vld [vmem:[#allocation7 + $0x438] sm:$0xff]
    %v266 = vld [vmem:[#allocation7 + $0x440] sm:$0xff]
    %v267 = vld [vmem:[#allocation7 + $0x448] sm:$0xff]
    %v268 = vld [vmem:[#allocation7 + $0x450] sm:$0xff]
    %v269 = vld [vmem:[#allocation7 + $0x458] sm:$0xff]
    %v270 = vld [vmem:[#allocation7 + $0x460] sm:$0xff]
    %v271 = vld [vmem:[#allocation7 + $0x468] sm:$0xff]
    %v272 = vld [vmem:[#allocation7 + $0x470] sm:$0xff]
    %v273 = vld [vmem:[#allocation7 + $0x478] sm:$0xff]
    %v274 = vld [vmem:[#allocation7 + $0x480] sm:$0xff]
    %v275 = vld [vmem:[#allocation7 + $0x488] sm:$0xff]
    %v276 = vld [vmem:[#allocation7 + $0x490] sm:$0xff]
    %v277 = vld [vmem:[#allocation7 + $0x498] sm:$0xff]
    %v278 = vld [vmem:[#allocation7 + $0x4a0] sm:$0xff]
    %v279 = vld [vmem:[#allocation7 + $0x4a8] sm:$0xff]
    %v280 = vld [vmem:[#allocation7 + $0x4b0] sm:$0xff]
    %v281 = vld [vmem:[#allocation7 + $0x4b8] sm:$0xff]
    %v282 = vld [vmem:[#allocation7 + $0x4c0] sm:$0xff]
    %v283 = vld [vmem:[#allocation7 + $0x4c8] sm:$0xff]
    %v284 = vld [vmem:[#allocation7 + $0x4d0] sm:$0xff]
    %v285 = vld [vmem:[#allocation7 + $0x4d8] sm:$0xff]
    %v286 = vld [vmem:[#allocation7 + $0x4e0] sm:$0xff]
    %v287 = vld [vmem:[#allocation7 + $0x4e8] sm:$0xff]
    %v288 = vld [vmem:[#allocation7 + $0x4f0] sm:$0xff]
    %v289 = vld [vmem:[#allocation7 + $0x4f8] sm:$0xff]
    %v290 = vld [vmem:[#allocation7 + $0x500] sm:$0xff]
    %v291 = vld [vmem:[#allocation7 + $0x508] sm:$0xff]
    %v292 = vld [vmem:[#allocation7 + $0x510] sm:$0xff]
    %v293 = vld [vmem:[#allocation7 + $0x518] sm:$0xff]
    %v294 = vld [vmem:[#allocation7 + $0x520] sm:$0xff]
    %v295 = vld [vmem:[#allocation7 + $0x528] sm:$0xff]
    %v296 = vld [vmem:[#allocation7 + $0x530] sm:$0xff]
    %v297 = vld [vmem:[#allocation7 + $0x538] sm:$0xff]
    %v298 = vld [vmem:[#allocation7 + $0x540] sm:$0xff]
    %v299 = vld [vmem:[#allocation7 + $0x548] sm:$0xff]
    %v300 = vld [vmem:[#allocation7 + $0x550] sm:$0xff]
    %v301 = vld [vmem:[#allocation7 + $0x558] sm:$0xff]
    %v302 = vld [vmem:[#allocation7 + $0x560] sm:$0xff]
    %v303 = vld [vmem:[#allocation7 + $0x568] sm:$0xff]
    %v304 = vld [vmem:[#allocation7 + $0x570] sm:$0xff]
    %v305 = vld [vmem:[#allocation7 + $0x578] sm:$0xff]
    %v306 = vld [vmem:[#allocation8] sm:$0xff]
    %v307 = vld [vmem:[#allocation8 + $0x8] sm:$0xff]
    %v308 = vld [vmem:[#allocation8 + $0x10] sm:$0x3f]
    %v312 = vlaneseq
    %v313 = vshrl.u32 %v312, 7
    %v314 = vsub.s32 0, %v313
    %v315 = vrot.slane %v306, %v314
    %v316 = vlaneseq
    %v317 = vshrl.u32 %v316, 7
    %v318 = vsub.s32 1, %v317
    %v319 = vrot.slane %v306, %v318
    %v320 = vlaneseq
    %v321 = vshrl.u32 %v320, 7
    %v322 = vsub.s32 2, %v321
    %v323 = vrot.slane %v306, %v322
    %v324 = vlaneseq
    %v325 = vshrl.u32 %v324, 7
    %v326 = vsub.s32 3, %v325
    %v327 = vrot.slane %v306, %v326
    %v328 = vlaneseq
    %v329 = vshrl.u32 %v328, 7
    %v330 = vsub.s32 4, %v329
    %v331 = vrot.slane %v306, %v330
    %v332 = vlaneseq
    %v333 = vshrl.u32 %v332, 7
    %v334 = vsub.s32 5, %v333
    %v335 = vrot.slane %v306, %v334
    %v336 = vlaneseq
    %v337 = vshrl.u32 %v336, 7
    %v338 = vsub.s32 6, %v337
    %v339 = vrot.slane %v306, %v338
    %v340 = vlaneseq
    %v341 = vshrl.u32 %v340, 7
    %v342 = vsub.s32 7, %v341
    %v343 = vrot.slane %v306, %v342
    %v344 = vlaneseq
    %v345 = vshrl.u32 %v344, 7
    %v346 = vsub.s32 0, %v345
    %v347 = vrot.slane %v307, %v346
    %v348 = vlaneseq
    %v349 = vshrl.u32 %v348, 7
    %v350 = vsub.s32 1, %v349
    %v351 = vrot.slane %v307, %v350
    %v352 = vlaneseq
    %v353 = vshrl.u32 %v352, 7
    %v354 = vsub.s32 2, %v353
    %v355 = vrot.slane %v307, %v354
    %v356 = vlaneseq
    %v357 = vshrl.u32 %v356, 7
    %v358 = vsub.s32 3, %v357
    %v359 = vrot.slane %v307, %v358
    %v360 = vlaneseq
    %v361 = vshrl.u32 %v360, 7
    %v362 = vsub.s32 4, %v361
    %v363 = vrot.slane %v307, %v362
    %v364 = vlaneseq
    %v365 = vshrl.u32 %v364, 7
    %v366 = vsub.s32 5, %v365
    %v367 = vrot.slane %v307, %v366
    %v368 = vlaneseq
    %v369 = vshrl.u32 %v368, 7
    %v370 = vsub.s32 6, %v369
    %v371 = vrot.slane %v307, %v370
    %v372 = vlaneseq
    %v373 = vshrl.u32 %v372, 7
    %v374 = vsub.s32 7, %v373
    %v375 = vrot.slane %v307, %v374
    %v376 = vlaneseq
    %v377 = vshrl.u32 %v376, 7
    %v378 = vsub.s32 0, %v377
    %v379 = vrot.slane %v308, %v378
    %v380 = vlaneseq
    %v381 = vshrl.u32 %v380, 7
    %v382 = vsub.s32 1, %v381
    %v383 = vrot.slane %v308, %v382
    %v384 = vlaneseq
    %v385 = vshrl.u32 %v384, 7
    %v386 = vsub.s32 2, %v385
    %v387 = vrot.slane %v308, %v386
    %v388 = vlaneseq
    %v389 = vshrl.u32 %v388, 7
    %v390 = vsub.s32 3, %v389
    %v391 = vrot.slane %v308, %v390
    %v392 = vlaneseq
    %v393 = vshrl.u32 %v392, 7
    %v394 = vsub.s32 4, %v393
    %v395 = vrot.slane %v308, %v394
    %v396 = vlaneseq
    %v397 = vshrl.u32 %v396, 7
    %v398 = vsub.s32 5, %v397
    %v399 = vrot.slane %v308, %v398
    %v598 = vunpack.c.l.b16 %v130
    %v599 = vunpack.c.h.b16 %v130
    %v600 = vunpack.c.l.b16 %v131
    %v601 = vunpack.c.h.b16 %v131
    %v602 = vunpack.c.l.b16 %v132
    %v603 = vunpack.c.h.b16 %v132
    %v604 = vunpack.c.l.b16 %v133
    %v605 = vunpack.c.h.b16 %v133
    %v606 = vunpack.c.l.b16 %v134
    %v607 = vunpack.c.h.b16 %v134
    %v608 = vunpack.c.l.b16 %v135
    %v609 = vunpack.c.h.b16 %v135
    %v610 = vunpack.c.l.b16 %v136
    %v611 = vunpack.c.h.b16 %v136
    %v612 = vunpack.c.l.b16 %v137
    %v613 = vunpack.c.h.b16 %v137
    %v614 = vunpack.c.l.b16 %v138
    %v615 = vunpack.c.h.b16 %v138
    %v616 = vunpack.c.l.b16 %v139
    %v617 = vunpack.c.h.b16 %v139
    %v618 = vunpack.c.l.b16 %v140
    %v619 = vunpack.c.h.b16 %v140
    %v620 = vunpack.c.l.b16 %v141
    %v621 = vunpack.c.h.b16 %v141
    %v622 = vunpack.c.l.b16 %v142
    %v623 = vunpack.c.h.b16 %v142
    %v624 = vunpack.c.l.b16 %v143
    %v625 = vunpack.c.h.b16 %v143
    %v626 = vunpack.c.l.b16 %v144
    %v627 = vunpack.c.h.b16 %v144
    %v628 = vunpack.c.l.b16 %v145
    %v629 = vunpack.c.h.b16 %v145
    %v630 = vunpack.c.l.b16 %v146
    %v631 = vunpack.c.h.b16 %v146
    %v632 = vunpack.c.l.b16 %v147
    %v633 = vunpack.c.h.b16 %v147
    %v634 = vunpack.c.l.b16 %v148
    %v635 = vunpack.c.h.b16 %v148
    %v636 = vunpack.c.l.b16 %v149
    %v637 = vunpack.c.h.b16 %v149
    %v638 = vunpack.c.l.b16 %v150
    %v639 = vunpack.c.h.b16 %v150
    %v640 = vunpack.c.l.b16 %v151
    %v641 = vunpack.c.h.b16 %v151
    %v642 = vunpack.c.l.b16 %v152
    %v643 = vunpack.c.h.b16 %v152
    %v644 = vunpack.c.l.b16 %v153
    %v645 = vunpack.c.h.b16 %v153
    %v646 = vunpack.c.l.b16 %v154
    %v647 = vunpack.c.h.b16 %v154
    %v648 = vunpack.c.l.b16 %v155
    %v649 = vunpack.c.h.b16 %v155
    %v650 = vunpack.c.l.b16 %v156
    %v651 = vunpack.c.h.b16 %v156
    %v652 = vunpack.c.l.b16 %v157
    %v653 = vunpack.c.h.b16 %v157
    %v654 = vunpack.c.l.b16 %v158
    %v655 = vunpack.c.h.b16 %v158
    %v656 = vunpack.c.l.b16 %v159
    %v657 = vunpack.c.h.b16 %v159
    %v658 = vunpack.c.l.b16 %v160
    %v659 = vunpack.c.h.b16 %v160
    %v660 = vunpack.c.l.b16 %v161
    %v661 = vunpack.c.h.b16 %v161
    %v662 = vunpack.c.l.b16 %v162
    %v663 = vunpack.c.h.b16 %v162
    %v664 = vunpack.c.l.b16 %v163
    %v665 = vunpack.c.h.b16 %v163
    %v666 = vunpack.c.l.b16 %v164
    %v667 = vunpack.c.h.b16 %v164
    %v668 = vunpack.c.l.b16 %v165
    %v669 = vunpack.c.h.b16 %v165
    %v670 = vunpack.c.l.b16 %v166
    %v671 = vunpack.c.h.b16 %v166
    %v672 = vunpack.c.l.b16 %v167
    %v673 = vunpack.c.h.b16 %v167
    %v674 = vunpack.c.l.b16 %v168
    %v675 = vunpack.c.h.b16 %v168
    %v676 = vunpack.c.l.b16 %v169
    %v677 = vunpack.c.h.b16 %v169
    %v678 = vunpack.c.l.b16 %v170
    %v679 = vunpack.c.h.b16 %v170
    %v680 = vunpack.c.l.b16 %v171
    %v681 = vunpack.c.h.b16 %v171
    %v682 = vunpack.c.l.b16 %v172
    %v683 = vunpack.c.h.b16 %v172
    %v684 = vunpack.c.l.b16 %v173
    %v685 = vunpack.c.h.b16 %v173
    %v686 = vunpack.c.l.b16 %v174
    %v687 = vunpack.c.h.b16 %v174
    %v688 = vunpack.c.l.b16 %v175
    %v689 = vunpack.c.h.b16 %v175
    %v690 = vunpack.c.l.b16 %v176
    %v691 = vunpack.c.h.b16 %v176
    %v692 = vunpack.c.l.b16 %v177
    %v693 = vunpack.c.h.b16 %v177
    %v694 = vunpack.c.l.b16 %v178
    %v695 = vunpack.c.h.b16 %v178
    %v696 = vunpack.c.l.b16 %v179
    %v697 = vunpack.c.h.b16 %v179
    %v698 = vunpack.c.l.b16 %v180
    %v699 = vunpack.c.h.b16 %v180
    %v700 = vunpack.c.l.b16 %v181
    %v701 = vunpack.c.h.b16 %v181
    %v702 = vunpack.c.l.b16 %v182
    %v703 = vunpack.c.h.b16 %v182
    %v704 = vunpack.c.l.b16 %v183
    %v705 = vunpack.c.h.b16 %v183
    %v706 = vunpack.c.l.b16 %v184
    %v707 = vunpack.c.h.b16 %v184
    %v708 = vunpack.c.l.b16 %v185
    %v709 = vunpack.c.h.b16 %v185
    %v710 = vunpack.c.l.b16 %v186
    %v711 = vunpack.c.h.b16 %v186
    %v712 = vunpack.c.l.b16 %v187
    %v713 = vunpack.c.h.b16 %v187
    %v714 = vunpack.c.l.b16 %v188
    %v715 = vunpack.c.h.b16 %v188
    %v716 = vunpack.c.l.b16 %v189
    %v717 = vunpack.c.h.b16 %v189
    %v718 = vunpack.c.l.b16 %v190
    %v719 = vunpack.c.h.b16 %v190
    %v720 = vunpack.c.l.b16 %v191
    %v721 = vunpack.c.h.b16 %v191
    %v722 = vunpack.c.l.b16 %v192
    %v723 = vunpack.c.h.b16 %v192
    %v724 = vunpack.c.l.b16 %v193
    %v725 = vunpack.c.h.b16 %v193
    %v726 = vunpack.c.l.b16 %v194
    %v727 = vunpack.c.h.b16 %v194
    %v728 = vunpack.c.l.b16 %v195
    %v729 = vunpack.c.h.b16 %v195
    %v730 = vunpack.c.l.b16 %v196
    %v731 = vunpack.c.h.b16 %v196
    %v732 = vunpack.c.l.b16 %v197
    %v733 = vunpack.c.h.b16 %v197
    %v734 = vunpack.c.l.b16 %v198
    %v735 = vunpack.c.h.b16 %v198
    %v736 = vunpack.c.l.b16 %v199
    %v737 = vunpack.c.h.b16 %v199
    %v738 = vunpack.c.l.b16 %v200
    %v739 = vunpack.c.h.b16 %v200
    %v740 = vunpack.c.l.b16 %v201
    %v741 = vunpack.c.h.b16 %v201
    %v742 = vunpack.c.l.b16 %v202
    %v743 = vunpack.c.h.b16 %v202
    %v744 = vunpack.c.l.b16 %v203
    %v745 = vunpack.c.h.b16 %v203
    %v746 = vunpack.c.l.b16 %v204
    %v747 = vunpack.c.h.b16 %v204
    %v748 = vunpack.c.l.b16 %v205
    %v749 = vunpack.c.h.b16 %v205
    %v750 = vunpack.c.l.b16 %v206
    %v751 = vunpack.c.h.b16 %v206
    %v752 = vunpack.c.l.b16 %v207
    %v753 = vunpack.c.h.b16 %v207
    %v754 = vunpack.c.l.b16 %v208
    %v755 = vunpack.c.h.b16 %v208
    %v756 = vunpack.c.l.b16 %v209
    %v757 = vunpack.c.h.b16 %v209
    %v758 = vunpack.c.l.b16 %v210
    %v759 = vunpack.c.h.b16 %v210
    %v760 = vunpack.c.l.b16 %v211
    %v761 = vunpack.c.h.b16 %v211
    %v762 = vunpack.c.l.b16 %v212
    %v763 = vunpack.c.h.b16 %v212
    %v764 = vunpack.c.l.b16 %v213
    %v765 = vunpack.c.h.b16 %v213
    %v766 = vunpack.c.l.b16 %v214
    %v767 = vunpack.c.h.b16 %v214
    %v768 = vunpack.c.l.b16 %v215
    %v769 = vunpack.c.h.b16 %v215
    %v770 = vunpack.c.l.b16 %v216
    %v771 = vunpack.c.h.b16 %v216
    %v772 = vunpack.c.l.b16 %v217
    %v773 = vunpack.c.h.b16 %v217
    %v774 = vunpack.c.l.b16 %v218
    %v775 = vunpack.c.h.b16 %v218
    %v776 = vunpack.c.l.b16 %v219
    %v777 = vunpack.c.h.b16 %v219
    %v778 = vunpack.c.l.b16 %v220
    %v779 = vunpack.c.h.b16 %v220
    %v780 = vunpack.c.l.b16 %v221
    %v781 = vunpack.c.h.b16 %v221
    %v782 = vunpack.c.l.b16 %v222
    %v783 = vunpack.c.h.b16 %v222
    %v784 = vunpack.c.l.b16 %v223
    %v785 = vunpack.c.h.b16 %v223
    %v786 = vunpack.c.l.b16 %v224
    %v787 = vunpack.c.h.b16 %v224
    %v788 = vunpack.c.l.b16 %v225
    %v789 = vunpack.c.h.b16 %v225
    %v790 = vunpack.c.l.b16 %v226
    %v791 = vunpack.c.h.b16 %v226
    %v792 = vunpack.c.l.b16 %v227
    %v793 = vunpack.c.h.b16 %v227
    %v794 = vunpack.c.l.b16 %v228
    %v795 = vunpack.c.h.b16 %v228
    %v796 = vunpack.c.l.b16 %v229
    %v797 = vunpack.c.h.b16 %v229
    %v798 = vunpack.c.l.b16 %v230
    %v799 = vunpack.c.h.b16 %v230
    %v800 = vunpack.c.l.b16 %v231
    %v801 = vunpack.c.h.b16 %v231
    %v802 = vunpack.c.l.b16 %v232
    %v803 = vunpack.c.h.b16 %v232
    %v804 = vunpack.c.l.b16 %v233
    %v805 = vunpack.c.h.b16 %v233
    %v806 = vunpack.c.l.b16 %v234
    %v807 = vunpack.c.h.b16 %v234
    %v808 = vunpack.c.l.b16 %v235
    %v809 = vunpack.c.h.b16 %v235
    %v810 = vunpack.c.l.b16 %v236
    %v811 = vunpack.c.h.b16 %v236
    %v812 = vunpack.c.l.b16 %v237
    %v813 = vunpack.c.h.b16 %v237
    %v814 = vunpack.c.l.b16 %v238
    %v815 = vunpack.c.h.b16 %v238
    %v816 = vunpack.c.l.b16 %v239
    %v817 = vunpack.c.h.b16 %v239
    %v818 = vunpack.c.l.b16 %v240
    %v819 = vunpack.c.h.b16 %v240
    %v820 = vunpack.c.l.b16 %v241
    %v821 = vunpack.c.h.b16 %v241
    %v822 = vunpack.c.l.b16 %v242
    %v823 = vunpack.c.h.b16 %v242
    %v824 = vunpack.c.l.b16 %v243
    %v825 = vunpack.c.h.b16 %v243
    %v826 = vunpack.c.l.b16 %v244
    %v827 = vunpack.c.h.b16 %v244
    %v828 = vunpack.c.l.b16 %v245
    %v829 = vunpack.c.h.b16 %v245
    %v830 = vunpack.c.l.b16 %v246
    %v831 = vunpack.c.h.b16 %v246
    %v832 = vunpack.c.l.b16 %v247
    %v833 = vunpack.c.h.b16 %v247
    %v834 = vunpack.c.l.b16 %v248
    %v835 = vunpack.c.h.b16 %v248
    %v836 = vunpack.c.l.b16 %v249
    %v837 = vunpack.c.h.b16 %v249
    %v838 = vunpack.c.l.b16 %v250
    %v839 = vunpack.c.h.b16 %v250
    %v840 = vunpack.c.l.b16 %v251
    %v841 = vunpack.c.h.b16 %v251
    %v842 = vunpack.c.l.b16 %v252
    %v843 = vunpack.c.h.b16 %v252
    %v844 = vunpack.c.l.b16 %v253
    %v845 = vunpack.c.h.b16 %v253
    %v846 = vunpack.c.l.b16 %v254
    %v847 = vunpack.c.h.b16 %v254
    %v848 = vunpack.c.l.b16 %v255
    %v849 = vunpack.c.h.b16 %v255
    %v850 = vunpack.c.l.b16 %v256
    %v851 = vunpack.c.h.b16 %v256
    %v852 = vunpack.c.l.b16 %v257
    %v853 = vunpack.c.h.b16 %v257
    %v854 = vunpack.c.l.b16 %v258
    %v855 = vunpack.c.h.b16 %v258
    %v856 = vunpack.c.l.b16 %v259
    %v857 = vunpack.c.h.b16 %v259
    %v858 = vunpack.c.l.b16 %v260
    %v859 = vunpack.c.h.b16 %v260
    %v860 = vunpack.c.l.b16 %v261
    %v861 = vunpack.c.h.b16 %v261
    %v862 = vunpack.c.l.b16 %v262
    %v863 = vunpack.c.h.b16 %v262
    %v864 = vunpack.c.l.b16 %v263
    %v865 = vunpack.c.h.b16 %v263
    %v866 = vunpack.c.l.b16 %v264
    %v867 = vunpack.c.h.b16 %v264
    %v868 = vunpack.c.l.b16 %v265
    %v869 = vunpack.c.h.b16 %v265
    %v870 = vunpack.c.l.b16 %v266
    %v871 = vunpack.c.h.b16 %v266
    %v872 = vunpack.c.l.b16 %v267
    %v873 = vunpack.c.h.b16 %v267
    %v874 = vunpack.c.l.b16 %v268
    %v875 = vunpack.c.h.b16 %v268
    %v876 = vunpack.c.l.b16 %v269
    %v877 = vunpack.c.h.b16 %v269
    %v878 = vunpack.c.l.b16 %v270
    %v879 = vunpack.c.h.b16 %v270
    %v880 = vunpack.c.l.b16 %v271
    %v881 = vunpack.c.h.b16 %v271
    %v882 = vunpack.c.l.b16 %v272
    %v883 = vunpack.c.h.b16 %v272
    %v884 = vunpack.c.l.b16 %v273
    %v885 = vunpack.c.h.b16 %v273
    %v886 = vunpack.c.l.b16 %v274
    %v887 = vunpack.c.h.b16 %v274
    %v888 = vunpack.c.l.b16 %v275
    %v889 = vunpack.c.h.b16 %v275
    %v890 = vunpack.c.l.b16 %v276
    %v891 = vunpack.c.h.b16 %v276
    %v892 = vunpack.c.l.b16 %v277
    %v893 = vunpack.c.h.b16 %v277
    %v894 = vunpack.c.l.b16 %v278
    %v895 = vunpack.c.h.b16 %v278
    %v896 = vunpack.c.l.b16 %v279
    %v897 = vunpack.c.h.b16 %v279
    %v898 = vunpack.c.l.b16 %v280
    %v899 = vunpack.c.h.b16 %v280
    %v900 = vunpack.c.l.b16 %v281
    %v901 = vunpack.c.h.b16 %v281
    %v902 = vunpack.c.l.b16 %v282
    %v903 = vunpack.c.h.b16 %v282
    %v904 = vunpack.c.l.b16 %v283
    %v905 = vunpack.c.h.b16 %v283
    %v906 = vunpack.c.l.b16 %v284
    %v907 = vunpack.c.h.b16 %v284
    %v908 = vunpack.c.l.b16 %v285
    %v909 = vunpack.c.h.b16 %v285
    %v910 = vunpack.c.l.b16 %v286
    %v911 = vunpack.c.h.b16 %v286
    %v912 = vunpack.c.l.b16 %v287
    %v913 = vunpack.c.h.b16 %v287
    %v914 = vunpack.c.l.b16 %v288
    %v915 = vunpack.c.h.b16 %v288
    %v916 = vunpack.c.l.b16 %v289
    %v917 = vunpack.c.h.b16 %v289
    %v918 = vunpack.c.l.b16 %v290
    %v919 = vunpack.c.h.b16 %v290
    %v920 = vunpack.c.l.b16 %v291
    %v921 = vunpack.c.h.b16 %v291
    %v922 = vunpack.c.l.b16 %v292
    %v923 = vunpack.c.h.b16 %v292
    %v924 = vunpack.c.l.b16 %v293
    %v925 = vunpack.c.h.b16 %v293
    %v926 = vunpack.c.l.b16 %v294
    %v927 = vunpack.c.h.b16 %v294
    %v928 = vunpack.c.l.b16 %v295
    %v929 = vunpack.c.h.b16 %v295
    %v930 = vunpack.c.l.b16 %v296
    %v931 = vunpack.c.h.b16 %v296
    %v932 = vunpack.c.l.b16 %v297
    %v933 = vunpack.c.h.b16 %v297
    %v934 = vunpack.c.l.b16 %v298
    %v935 = vunpack.c.h.b16 %v298
    %v936 = vunpack.c.l.b16 %v299
    %v937 = vunpack.c.h.b16 %v299
    %v938 = vunpack.c.l.b16 %v300
    %v939 = vunpack.c.h.b16 %v300
    %v940 = vunpack.c.l.b16 %v301
    %v941 = vunpack.c.h.b16 %v301
    %v942 = vunpack.c.l.b16 %v302
    %v943 = vunpack.c.h.b16 %v302
    %v944 = vunpack.c.l.b16 %v303
    %v945 = vunpack.c.h.b16 %v303
    %v946 = vunpack.c.l.b16 %v304
    %v947 = vunpack.c.h.b16 %v304
    %v948 = vunpack.c.l.b16 %v305
    %v949 = vunpack.c.h.b16 %v305
    %v950 = vpack.c.b16 %v620, %v598
    %v951 = vpack.c.b16 %v621, %v599
    %v952 = vpack.c.b16 %v622, %v600
    %v953 = vpack.c.b16 %v623, %v601
    %v954 = vpack.c.b16 %v624, %v602
    %v955 = vpack.c.b16 %v625, %v603
    %v956 = vpack.c.b16 %v626, %v604
    %v957 = vpack.c.b16 %v627, %v605
    %v958 = vpack.c.b16 %v628, %v606
    %v959 = vpack.c.b16 %v629, %v607
    %v960 = vpack.c.b16 %v630, %v608
    %v961 = vpack.c.b16 %v631, %v609
    %v962 = vpack.c.b16 %v632, %v610
    %v963 = vpack.c.b16 %v633, %v611
    %v964 = vpack.c.b16 %v634, %v612
    %v965 = vpack.c.b16 %v635, %v613
    %v966 = vpack.c.b16 %v636, %v614
    %v967 = vpack.c.b16 %v637, %v615
    %v968 = vpack.c.b16 %v638, %v616
    %v969 = vpack.c.b16 %v639, %v617
    %v970 = vpack.c.b16 %v640, %v618
    %v971 = vpack.c.b16 %v641, %v619
    %v972 = vpack.c.b16 %v664, %v642
    %v973 = vpack.c.b16 %v665, %v643
    %v974 = vpack.c.b16 %v666, %v644
    %v975 = vpack.c.b16 %v667, %v645
    %v976 = vpack.c.b16 %v668, %v646
    %v977 = vpack.c.b16 %v669, %v647
    %v978 = vpack.c.b16 %v670, %v648
    %v979 = vpack.c.b16 %v671, %v649
    %v980 = vpack.c.b16 %v672, %v650
    %v981 = vpack.c.b16 %v673, %v651
    %v982 = vpack.c.b16 %v674, %v652
    %v983 = vpack.c.b16 %v675, %v653
    %v984 = vpack.c.b16 %v676, %v654
    %v985 = vpack.c.b16 %v677, %v655
    %v986 = vpack.c.b16 %v678, %v656
    %v987 = vpack.c.b16 %v679, %v657
    %v988 = vpack.c.b16 %v680, %v658
    %v989 = vpack.c.b16 %v681, %v659
    %v990 = vpack.c.b16 %v682, %v660
    %v991 = vpack.c.b16 %v683, %v661
    %v992 = vpack.c.b16 %v684, %v662
    %v993 = vpack.c.b16 %v685, %v663
    %v994 = vpack.c.b16 %v708, %v686
    %v995 = vpack.c.b16 %v709, %v687
    %v996 = vpack.c.b16 %v710, %v688
    %v997 = vpack.c.b16 %v711, %v689
    %v998 = vpack.c.b16 %v712, %v690
    %v999 = vpack.c.b16 %v713, %v691
    %v1000 = vpack.c.b16 %v714, %v692
    %v1001 = vpack.c.b16 %v715, %v693
    %v1002 = vpack.c.b16 %v716, %v694
    %v1003 = vpack.c.b16 %v717, %v695
    %v1004 = vpack.c.b16 %v718, %v696
    %v1005 = vpack.c.b16 %v719, %v697
    %v1006 = vpack.c.b16 %v720, %v698
    %v1007 = vpack.c.b16 %v721, %v699
    %v1008 = vpack.c.b16 %v722, %v700
    %v1009 = vpack.c.b16 %v723, %v701
    %v1010 = vpack.c.b16 %v724, %v702
    %v1011 = vpack.c.b16 %v725, %v703
    %v1012 = vpack.c.b16 %v726, %v704
    %v1013 = vpack.c.b16 %v727, %v705
    %v1014 = vpack.c.b16 %v728, %v706
    %v1015 = vpack.c.b16 %v729, %v707
    %v1016 = vpack.c.b16 %v752, %v730
    %v1017 = vpack.c.b16 %v753, %v731
    %v1018 = vpack.c.b16 %v754, %v732
    %v1019 = vpack.c.b16 %v755, %v733
    %v1020 = vpack.c.b16 %v756, %v734
    %v1021 = vpack.c.b16 %v757, %v735
    %v1022 = vpack.c.b16 %v758, %v736
    %v1023 = vpack.c.b16 %v759, %v737
    %v1024 = vpack.c.b16 %v760, %v738
    %v1025 = vpack.c.b16 %v761, %v739
    %v1026 = vpack.c.b16 %v762, %v740
    %v1027 = vpack.c.b16 %v763, %v741
    %v1028 = vpack.c.b16 %v764, %v742
    %v1029 = vpack.c.b16 %v765, %v743
    %v1030 = vpack.c.b16 %v766, %v744
    %v1031 = vpack.c.b16 %v767, %v745
    %v1032 = vpack.c.b16 %v768, %v746
    %v1033 = vpack.c.b16 %v769, %v747
    %v1034 = vpack.c.b16 %v770, %v748
    %v1035 = vpack.c.b16 %v771, %v749
    %v1036 = vpack.c.b16 %v772, %v750
    %v1037 = vpack.c.b16 %v773, %v751
    %v1038 = vpack.c.b16 %v796, %v774
    %v1039 = vpack.c.b16 %v797, %v775
    %v1040 = vpack.c.b16 %v798, %v776
    %v1041 = vpack.c.b16 %v799, %v777
    %v1042 = vpack.c.b16 %v800, %v778
    %v1043 = vpack.c.b16 %v801, %v779
    %v1044 = vpack.c.b16 %v802, %v780
    %v1045 = vpack.c.b16 %v803, %v781
    %v1046 = vpack.c.b16 %v804, %v782
    %v1047 = vpack.c.b16 %v805, %v783
    %v1048 = vpack.c.b16 %v806, %v784
    %v1049 = vpack.c.b16 %v807, %v785
    %v1050 = vpack.c.b16 %v808, %v786
    %v1051 = vpack.c.b16 %v809, %v787
    %v1052 = vpack.c.b16 %v810, %v788
    %v1053 = vpack.c.b16 %v811, %v789
    %v1054 = vpack.c.b16 %v812, %v790
    %v1055 = vpack.c.b16 %v813, %v791
    %v1056 = vpack.c.b16 %v814, %v792
    %v1057 = vpack.c.b16 %v815, %v793
    %v1058 = vpack.c.b16 %v816, %v794
    %v1059 = vpack.c.b16 %v817, %v795
    %v1060 = vpack.c.b16 %v840, %v818
    %v1061 = vpack.c.b16 %v841, %v819
    %v1062 = vpack.c.b16 %v842, %v820
    %v1063 = vpack.c.b16 %v843, %v821
    %v1064 = vpack.c.b16 %v844, %v822
    %v1065 = vpack.c.b16 %v845, %v823
    %v1066 = vpack.c.b16 %v846, %v824
    %v1067 = vpack.c.b16 %v847, %v825
    %v1068 = vpack.c.b16 %v848, %v826
    %v1069 = vpack.c.b16 %v849, %v827
    %v1070 = vpack.c.b16 %v850, %v828
    %v1071 = vpack.c.b16 %v851, %v829
    %v1072 = vpack.c.b16 %v852, %v830
    %v1073 = vpack.c.b16 %v853, %v831
    %v1074 = vpack.c.b16 %v854, %v832
    %v1075 = vpack.c.b16 %v855, %v833
    %v1076 = vpack.c.b16 %v856, %v834
    %v1077 = vpack.c.b16 %v857, %v835
    %v1078 = vpack.c.b16 %v858, %v836
    %v1079 = vpack.c.b16 %v859, %v837
    %v1080 = vpack.c.b16 %v860, %v838
    %v1081 = vpack.c.b16 %v861, %v839
    %v1082 = vpack.c.b16 %v884, %v862
    %v1083 = vpack.c.b16 %v885, %v863
    %v1084 = vpack.c.b16 %v886, %v864
    %v1085 = vpack.c.b16 %v887, %v865
    %v1086 = vpack.c.b16 %v888, %v866
    %v1087 = vpack.c.b16 %v889, %v867
    %v1088 = vpack.c.b16 %v890, %v868
    %v1089 = vpack.c.b16 %v891, %v869
    %v1090 = vpack.c.b16 %v892, %v870
    %v1091 = vpack.c.b16 %v893, %v871
    %v1092 = vpack.c.b16 %v894, %v872
    %v1093 = vpack.c.b16 %v895, %v873
    %v1094 = vpack.c.b16 %v896, %v874
    %v1095 = vpack.c.b16 %v897, %v875
    %v1096 = vpack.c.b16 %v898, %v876
    %v1097 = vpack.c.b16 %v899, %v877
    %v1098 = vpack.c.b16 %v900, %v878
    %v1099 = vpack.c.b16 %v901, %v879
    %v1100 = vpack.c.b16 %v902, %v880
    %v1101 = vpack.c.b16 %v903, %v881
    %v1102 = vpack.c.b16 %v904, %v882
    %v1103 = vpack.c.b16 %v905, %v883
    %v1104 = vpack.c.b16 %v928, %v906
    %v1105 = vpack.c.b16 %v929, %v907
    %v1106 = vpack.c.b16 %v930, %v908
    %v1107 = vpack.c.b16 %v931, %v909
    %v1108 = vpack.c.b16 %v932, %v910
    %v1109 = vpack.c.b16 %v933, %v911
    %v1110 = vpack.c.b16 %v934, %v912
    %v1111 = vpack.c.b16 %v935, %v913
    %v1112 = vpack.c.b16 %v936, %v914
    %v1113 = vpack.c.b16 %v937, %v915
    %v1114 = vpack.c.b16 %v938, %v916
    %v1115 = vpack.c.b16 %v939, %v917
    %v1116 = vpack.c.b16 %v940, %v918
    %v1117 = vpack.c.b16 %v941, %v919
    %v1118 = vpack.c.b16 %v942, %v920
    %v1119 = vpack.c.b16 %v943, %v921
    %v1120 = vpack.c.b16 %v944, %v922
    %v1121 = vpack.c.b16 %v945, %v923
    %v1122 = vpack.c.b16 %v946, %v924
    %v1123 = vpack.c.b16 %v947, %v925
    %v1124 = vpack.c.b16 %v948, %v926
    %v1125 = vpack.c.b16 %v949, %v927
    %1302 = vmatprep.subr.bf16.mxu0 %v951
    %1303 = vmatpush1.bf16.msra.mxu0 %v950
    %1304 = vmatprep.subr.bf16.mxu0 %v973
    %1305 = vmatpush1.bf16.msra.mxu0 %v972
    %1306 = vmatprep.subr.bf16.mxu0 %v995
    %1307 = vmatpush1.bf16.msra.mxu0 %v994
    %1308 = vmatprep.subr.bf16.mxu0 %v1017
    %1309 = vmatpush1.bf16.msra.mxu0 %v1016
    %1310 = vmatprep.subr.bf16.mxu0 %v1039
    %1311 = vmatpush1.bf16.msra.mxu0 %v1038
    %1312 = vmatprep.subr.bf16.mxu0 %v1061
    %1313 = vmatpush1.bf16.msra.mxu0 %v1060
    %1314 = vmatprep.subr.bf16.mxu0 %v1083
    %1315 = vmatpush1.bf16.msra.mxu0 %v1082
    %1316 = vmatprep.subr.bf16.mxu0 %v1105
    %1317 = vmatpush1.bf16.msra.mxu0 %v1104
    %1318 = vmatprep.subr.bf16.mxu0 0
    %1319 = vmatpush1.bf16.msra.mxu0 0
    %1320 = vmatprep.subr.bf16.mxu0 0
    %1321 = vmatpush1.bf16.msra.mxu0 0
    %1322 = vmatprep.subr.bf16.mxu0 0
    %1323 = vmatpush1.bf16.msra.mxu0 0
    %1324 = vmatprep.subr.bf16.mxu0 0
    %1325 = vmatpush1.bf16.msra.mxu0 0
    %1326 = vmatprep.subr.bf16.mxu0 0
    %1327 = vmatpush1.bf16.msra.mxu0 0
    %1328 = vmatprep.subr.bf16.mxu0 0
    %1329 = vmatpush1.bf16.msra.mxu0 0
    %1330 = vmatprep.subr.bf16.mxu0 0
    %1331 = vmatpush1.bf16.msra.mxu0 0
    %1332 = vmatprep.subr.bf16.mxu0 0
    %1333 = vmatpush1.bf16.msra.mxu0 0
    %1334 = vmatprep.mubr.bf16.mxu0 0
    %1335 = vmatmul.mubr.bf16.gmra.mrb[0].mxu0 %v129
    %v1336 = vpop.f32.mrb[0].mxu0
    %v1337 = vadd.f32 %v315, %v1336
    %v1338 = vpop.f32.mrb[0].mxu0
    %v1339 = vadd.f32 %v319, %v1338
    %v1340 = vpop.f32.mrb[0].mxu0
    %v1341 = vadd.f32 %v315, %v1340
    %v1342 = vpop.f32.mrb[0].mxu0
    %v1343 = vadd.f32 %v319, %v1342
    %1344 = vdwg.mxu0
    %1345 = vmatprep.subr.bf16.mxu0 %v953
    %1346 = vmatpush1.bf16.msra.mxu0 %v952
    %1347 = vmatprep.subr.bf16.mxu0 %v975
    %1348 = vmatpush1.bf16.msra.mxu0 %v974
    %1349 = vmatprep.subr.bf16.mxu0 %v997
    %1350 = vmatpush1.bf16.msra.mxu0 %v996
    %1351 = vmatprep.subr.bf16.mxu0 %v1019
    %1352 = vmatpush1.bf16.msra.mxu0 %v1018
    %1353 = vmatprep.subr.bf16.mxu0 %v1041
    %1354 = vmatpush1.bf16.msra.mxu0 %v1040
    %1355 = vmatprep.subr.bf16.mxu0 %v1063
    %1356 = vmatpush1.bf16.msra.mxu0 %v1062
    %1357 = vmatprep.subr.bf16.mxu0 %v1085
    %1358 = vmatpush1.bf16.msra.mxu0 %v1084
    %1359 = vmatprep.subr.bf16.mxu0 %v1107
    %1360 = vmatpush1.bf16.msra.mxu0 %v1106
    %1361 = vmatprep.subr.bf16.mxu0 0
    %1362 = vmatpush1.bf16.msra.mxu0 0
    %1363 = vmatprep.subr.bf16.mxu0 0
    %1364 = vmatpush1.bf16.msra.mxu0 0
    %1365 = vmatprep.subr.bf16.mxu0 0
    %1366 = vmatpush1.bf16.msra.mxu0 0
    %1367 = vmatprep.subr.bf16.mxu0 0
    %1368 = vmatpush1.bf16.msra.mxu0 0
    %1369 = vmatprep.subr.bf16.mxu0 0
    %1370 = vmatpush1.bf16.msra.mxu0 0
    %1371 = vmatprep.subr.bf16.mxu0 0
    %1372 = vmatpush1.bf16.msra.mxu0 0
    %1373 = vmatprep.subr.bf16.mxu0 0
    %1374 = vmatpush1.bf16.msra.mxu0 0
    %1375 = vmatprep.subr.bf16.mxu0 0
    %1376 = vmatpush1.bf16.msra.mxu0 0
    %1377 = vmatprep.mubr.bf16.mxu0 0
    %1378 = vmatmul.mubr.bf16.gmra.mrb[0].mxu0 %v129
    %v1379 = vpop.f32.mrb[0].mxu0
    %v1380 = vadd.f32 %v323, %v1379
    %v1381 = vpop.f32.mrb[0].mxu0
    %v1382 = vadd.f32 %v327, %v1381
    %v1383 = vpop.f32.mrb[0].mxu0
    %v1384 = vadd.f32 %v323, %v1383
    %v1385 = vpop.f32.mrb[0].mxu0
    %v1386 = vadd.f32 %v327, %v1385
    %1387 = vdwg.mxu0
    %1388 = vmatprep.subr.bf16.mxu0 %v955
    %1389 = vmatpush1.bf16.msra.mxu0 %v954
    %1390 = vmatprep.subr.bf16.mxu0 %v977
    %1391 = vmatpush1.bf16.msra.mxu0 %v976
    %1392 = vmatprep.subr.bf16.mxu0 %v999
    %1393 = vmatpush1.bf16.msra.mxu0 %v998
    %1394 = vmatprep.subr.bf16.mxu0 %v1021
    %1395 = vmatpush1.bf16.msra.mxu0 %v1020
    %1396 = vmatprep.subr.bf16.mxu0 %v1043
    %1397 = vmatpush1.bf16.msra.mxu0 %v1042
    %1398 = vmatprep.subr.bf16.mxu0 %v1065
    %1399 = vmatpush1.bf16.msra.mxu0 %v1064
    %1400 = vmatprep.subr.bf16.mxu0 %v1087
    %1401 = vmatpush1.bf16.msra.mxu0 %v1086
    %1402 = vmatprep.subr.bf16.mxu0 %v1109
    %1403 = vmatpush1.bf16.msra.mxu0 %v1108
    %1404 = vmatprep.subr.bf16.mxu0 0
    %1405 = vmatpush1.bf16.msra.mxu0 0
    %1406 = vmatprep.subr.bf16.mxu0 0
    %1407 = vmatpush1.bf16.msra.mxu0 0
    %1408 = vmatprep.subr.bf16.mxu0 0
    %1409 = vmatpush1.bf16.msra.mxu0 0
    %1410 = vmatprep.subr.bf16.mxu0 0
    %1411 = vmatpush1.bf16.msra.mxu0 0
    %1412 = vmatprep.subr.bf16.mxu0 0
    %1413 = vmatpush1.bf16.msra.mxu0 0
    %1414 = vmatprep.subr.bf16.mxu0 0
    %1415 = vmatpush1.bf16.msra.mxu0 0
    %1416 = vmatprep.subr.bf16.mxu0 0
    %1417 = vmatpush1.bf16.msra.mxu0 0
    %1418 = vmatprep.subr.bf16.mxu0 0
    %1419 = vmatpush1.bf16.msra.mxu0 0
    %1420 = vmatprep.mubr.bf16.mxu0 0
    %1421 = vmatmul.mubr.bf16.gmra.mrb[0].mxu0 %v129
    %v1422 = vpop.f32.mrb[0].mxu0
    %v1423 = vadd.f32 %v331, %v1422
    %v1424 = vpop.f32.mrb[0].mxu0
    %v1425 = vadd.f32 %v335, %v1424
    %v1426 = vpop.f32.mrb[0].mxu0
    %v1427 = vadd.f32 %v331, %v1426
    %v1428 = vpop.f32.mrb[0].mxu0
    %v1429 = vadd.f32 %v335, %v1428
    %1430 = vdwg.mxu0
    %1431 = vmatprep.subr.bf16.mxu0 %v957
    %1432 = vmatpush1.bf16.msra.mxu0 %v956
    %1433 = vmatprep.subr.bf16.mxu0 %v979
    %1434 = vmatpush1.bf16.msra.mxu0 %v978
    %1435 = vmatprep.subr.bf16.mxu0 %v1001
    %1436 = vmatpush1.bf16.msra.mxu0 %v1000
    %1437 = vmatprep.subr.bf16.mxu0 %v1023
    %1438 = vmatpush1.bf16.msra.mxu0 %v1022
    %1439 = vmatprep.subr.bf16.mxu0 %v1045
    %1440 = vmatpush1.bf16.msra.mxu0 %v1044
    %1441 = vmatprep.subr.bf16.mxu0 %v1067
    %1442 = vmatpush1.bf16.msra.mxu0 %v1066
    %1443 = vmatprep.subr.bf16.mxu0 %v1089
    %1444 = vmatpush1.bf16.msra.mxu0 %v1088
    %1445 = vmatprep.subr.bf16.mxu0 %v1111
    %1446 = vmatpush1.bf16.msra.mxu0 %v1110
    %1447 = vmatprep.subr.bf16.mxu0 0
    %1448 = vmatpush1.bf16.msra.mxu0 0
    %1449 = vmatprep.subr.bf16.mxu0 0
    %1450 = vmatpush1.bf16.msra.mxu0 0
    %1451 = vmatprep.subr.bf16.mxu0 0
    %1452 = vmatpush1.bf16.msra.mxu0 0
    %1453 = vmatprep.subr.bf16.mxu0 0
    %1454 = vmatpush1.bf16.msra.mxu0 0
    %1455 = vmatprep.subr.bf16.mxu0 0
    %1456 = vmatpush1.bf16.msra.mxu0 0
    %1457 = vmatprep.subr.bf16.mxu0 0
    %1458 = vmatpush1.bf16.msra.mxu0 0
    %1459 = vmatprep.subr.bf16.mxu0 0
    %1460 = vmatpush1.bf16.msra.mxu0 0
    %1461 = vmatprep.subr.bf16.mxu0 0
    %1462 = vmatpush1.bf16.msra.mxu0 0
    %1463 = vmatprep.mubr.bf16.mxu0 0
    %1464 = vmatmul.mubr.bf16.gmra.mrb[0].mxu0 %v129
    %v1465 = vpop.f32.mrb[0].mxu0
    %v1466 = vadd.f32 %v339, %v1465
    %v1467 = vpop.f32.mrb[0].mxu0
    %v1468 = vadd.f32 %v343, %v1467
    %v1469 = vpop.f32.mrb[0].mxu0
    %v1470 = vadd.f32 %v339, %v1469
    %v1471 = vpop.f32.mrb[0].mxu0
    %v1472 = vadd.f32 %v343, %v1471
    %1473 = vdwg.mxu0
    %1474 = vmatprep.subr.bf16.mxu0 %v959
    %1475 = vmatpush1.bf16.msra.mxu0 %v958
    %1476 = vmatprep.subr.bf16.mxu0 %v981
    %1477 = vmatpush1.bf16.msra.mxu0 %v980
    %1478 = vmatprep.subr.bf16.mxu0 %v1003
    %1479 = vmatpush1.bf16.msra.mxu0 %v1002
    %1480 = vmatprep.subr.bf16.mxu0 %v1025
    %1481 = vmatpush1.bf16.msra.mxu0 %v1024
    %1482 = vmatprep.subr.bf16.mxu0 %v1047
    %1483 = vmatpush1.bf16.msra.mxu0 %v1046
    %1484 = vmatprep.subr.bf16.mxu0 %v1069
    %1485 = vmatpush1.bf16.msra.mxu0 %v1068
    %1486 = vmatprep.subr.bf16.mxu0 %v1091
    %1487 = vmatpush1.bf16.msra.mxu0 %v1090
    %1488 = vmatprep.subr.bf16.mxu0 %v1113
    %1489 = vmatpush1.bf16.msra.mxu0 %v1112
    %1490 = vmatprep.subr.bf16.mxu0 0
    %1491 = vmatpush1.bf16.msra.mxu0 0
    %1492 = vmatprep.subr.bf16.mxu0 0
    %1493 = vmatpush1.bf16.msra.mxu0 0
    %1494 = vmatprep.subr.bf16.mxu0 0
    %1495 = vmatpush1.bf16.msra.mxu0 0
    %1496 = vmatprep.subr.bf16.mxu0 0
    %1497 = vmatpush1.bf16.msra.mxu0 0
    %1498 = vmatprep.subr.bf16.mxu0 0
    %1499 = vmatpush1.bf16.msra.mxu0 0
    %1500 = vmatprep.subr.bf16.mxu0 0
    %1501 = vmatpush1.bf16.msra.mxu0 0
    %1502 = vmatprep.subr.bf16.mxu0 0
    %1503 = vmatpush1.bf16.msra.mxu0 0
    %1504 = vmatprep.subr.bf16.mxu0 0
    %1505 = vmatpush1.bf16.msra.mxu0 0
    %1506 = vmatprep.mubr.bf16.mxu0 0
    %1507 = vmatmul.mubr.bf16.gmra.mrb[0].mxu0 %v129
    %v1508 = vpop.f32.mrb[0].mxu0
    %v1509 = vadd.f32 %v347, %v1508
    %v1510 = vpop.f32.mrb[0].mxu0
    %v1511 = vadd.f32 %v351, %v1510
    %v1512 = vpop.f32.mrb[0].mxu0
    %v1513 = vadd.f32 %v347, %v1512
    %v1514 = vpop.f32.mrb[0].mxu0
    %v1515 = vadd.f32 %v351, %v1514
    %1516 = vdwg.mxu0
    %1517 = vmatprep.subr.bf16.mxu0 %v961
    %1518 = vmatpush1.bf16.msra.mxu0 %v960
    %1519 = vmatprep.subr.bf16.mxu0 %v983
    %1520 = vmatpush1.bf16.msra.mxu0 %v982
    %1521 = vmatprep.subr.bf16.mxu0 %v1005
    %1522 = vmatpush1.bf16.msra.mxu0 %v1004
    %1523 = vmatprep.subr.bf16.mxu0 %v1027
    %1524 = vmatpush1.bf16.msra.mxu0 %v1026
    %1525 = vmatprep.subr.bf16.mxu0 %v1049
    %1526 = vmatpush1.bf16.msra.mxu0 %v1048
    %1527 = vmatprep.subr.bf16.mxu0 %v1071
    %1528 = vmatpush1.bf16.msra.mxu0 %v1070
    %1529 = vmatprep.subr.bf16.mxu0 %v1093
    %1530 = vmatpush1.bf16.msra.mxu0 %v1092
    %1531 = vmatprep.subr.bf16.mxu0 %v1115
    %1532 = vmatpush1.bf16.msra.mxu0 %v1114
    %1533 = vmatprep.subr.bf16.mxu0 0
    %1534 = vmatpush1.bf16.msra.mxu0 0
    %1535 = vmatprep.subr.bf16.mxu0 0
    %1536 = vmatpush1.bf16.msra.mxu0 0
    %1537 = vmatprep.subr.bf16.mxu0 0
    %1538 = vmatpush1.bf16.msra.mxu0 0
    %1539 = vmatprep.subr.bf16.mxu0 0
    %1540 = vmatpush1.bf16.msra.mxu0 0
    %1541 = vmatprep.subr.bf16.mxu0 0
    %1542 = vmatpush1.bf16.msra.mxu0 0
    %1543 = vmatprep.subr.bf16.mxu0 0
    %1544 = vmatpush1.bf16.msra.mxu0 0
    %1545 = vmatprep.subr.bf16.mxu0 0
    %1546 = vmatpush1.bf16.msra.mxu0 0
    %1547 = vmatprep.subr.bf16.mxu0 0
    %1548 = vmatpush1.bf16.msra.mxu0 0
    %1549 = vmatprep.mubr.bf16.mxu0 0
    %1550 = vmatmul.mubr.bf16.gmra.mrb[0].mxu0 %v129
    %v1551 = vpop.f32.mrb[0].mxu0
    %v1552 = vadd.f32 %v355, %v1551
    %v1553 = vpop.f32.mrb[0].mxu0
    %v1554 = vadd.f32 %v359, %v1553
    %v1555 = vpop.f32.mrb[0].mxu0
    %v1556 = vadd.f32 %v355, %v1555
    %v1557 = vpop.f32.mrb[0].mxu0
    %v1558 = vadd.f32 %v359, %v1557
    %1559 = vdwg.mxu0
    %1560 = vmatprep.subr.bf16.mxu0 %v963
    %1561 = vmatpush1.bf16.msra.mxu0 %v962
    %1562 = vmatprep.subr.bf16.mxu0 %v985
    %1563 = vmatpush1.bf16.msra.mxu0 %v984
    %1564 = vmatprep.subr.bf16.mxu0 %v1007
    %1565 = vmatpush1.bf16.msra.mxu0 %v1006
    %1566 = vmatprep.subr.bf16.mxu0 %v1029
    %1567 = vmatpush1.bf16.msra.mxu0 %v1028
    %1568 = vmatprep.subr.bf16.mxu0 %v1051
    %1569 = vmatpush1.bf16.msra.mxu0 %v1050
    %1570 = vmatprep.subr.bf16.mxu0 %v1073
    %1571 = vmatpush1.bf16.msra.mxu0 %v1072
    %1572 = vmatprep.subr.bf16.mxu0 %v1095
    %1573 = vmatpush1.bf16.msra.mxu0 %v1094
    %1574 = vmatprep.subr.bf16.mxu0 %v1117
    %1575 = vmatpush1.bf16.msra.mxu0 %v1116
    %1576 = vmatprep.subr.bf16.mxu0 0
    %1577 = vmatpush1.bf16.msra.mxu0 0
    %1578 = vmatprep.subr.bf16.mxu0 0
    %1579 = vmatpush1.bf16.msra.mxu0 0
    %1580 = vmatprep.subr.bf16.mxu0 0
    %1581 = vmatpush1.bf16.msra.mxu0 0
    %1582 = vmatprep.subr.bf16.mxu0 0
    %1583 = vmatpush1.bf16.msra.mxu0 0
    %1584 = vmatprep.subr.bf16.mxu0 0
    %1585 = vmatpush1.bf16.msra.mxu0 0
    %1586 = vmatprep.subr.bf16.mxu0 0
    %1587 = vmatpush1.bf16.msra.mxu0 0
    %1588 = vmatprep.subr.bf16.mxu0 0
    %1589 = vmatpush1.bf16.msra.mxu0 0
    %1590 = vmatprep.subr.bf16.mxu0 0
    %1591 = vmatpush1.bf16.msra.mxu0 0
    %1592 = vmatprep.mubr.bf16.mxu0 0
    %1593 = vmatmul.mubr.bf16.gmra.mrb[0].mxu0 %v129
    %v1594 = vpop.f32.mrb[0].mxu0
    %v1595 = vadd.f32 %v363, %v1594
    %v1596 = vpop.f32.mrb[0].mxu0
    %v1597 = vadd.f32 %v367, %v1596
    %v1598 = vpop.f32.mrb[0].mxu0
    %v1599 = vadd.f32 %v363, %v1598
    %v1600 = vpop.f32.mrb[0].mxu0
    %v1601 = vadd.f32 %v367, %v1600
    %1602 = vdwg.mxu0
    %1603 = vmatprep.subr.bf16.mxu0 %v965
    %1604 = vmatpush1.bf16.msra.mxu0 %v964
    %1605 = vmatprep.subr.bf16.mxu0 %v987
    %1606 = vmatpush1.bf16.msra.mxu0 %v986
    %1607 = vmatprep.subr.bf16.mxu0 %v1009
    %1608 = vmatpush1.bf16.msra.mxu0 %v1008
    %1609 = vmatprep.subr.bf16.mxu0 %v1031
    %1610 = vmatpush1.bf16.msra.mxu0 %v1030
    %1611 = vmatprep.subr.bf16.mxu0 %v1053
    %1612 = vmatpush1.bf16.msra.mxu0 %v1052
    %1613 = vmatprep.subr.bf16.mxu0 %v1075
    %1614 = vmatpush1.bf16.msra.mxu0 %v1074
    %1615 = vmatprep.subr.bf16.mxu0 %v1097
    %1616 = vmatpush1.bf16.msra.mxu0 %v1096
    %1617 = vmatprep.subr.bf16.mxu0 %v1119
    %1618 = vmatpush1.bf16.msra.mxu0 %v1118
    %1619 = vmatprep.subr.bf16.mxu0 0
    %1620 = vmatpush1.bf16.msra.mxu0 0
    %1621 = vmatprep.subr.bf16.mxu0 0
    %1622 = vmatpush1.bf16.msra.mxu0 0
    %1623 = vmatprep.subr.bf16.mxu0 0
    %1624 = vmatpush1.bf16.msra.mxu0 0
    %1625 = vmatprep.subr.bf16.mxu0 0
    %1626 = vmatpush1.bf16.msra.mxu0 0
    %1627 = vmatprep.subr.bf16.mxu0 0
    %1628 = vmatpush1.bf16.msra.mxu0 0
    %1629 = vmatprep.subr.bf16.mxu0 0
    %1630 = vmatpush1.bf16.msra.mxu0 0
    %1631 = vmatprep.subr.bf16.mxu0 0
    %1632 = vmatpush1.bf16.msra.mxu0 0
    %1633 = vmatprep.subr.bf16.mxu0 0
    %1634 = vmatpush1.bf16.msra.mxu0 0
    %1635 = vmatprep.mubr.bf16.mxu0 0
    %1636 = vmatmul.mubr.bf16.gmra.mrb[0].mxu0 %v129
    %v1637 = vpop.f32.mrb[0].mxu0
    %v1638 = vadd.f32 %v371, %v1637
    %v1639 = vpop.f32.mrb[0].mxu0
    %v1640 = vadd.f32 %v375, %v1639
    %v1641 = vpop.f32.mrb[0].mxu0
    %v1642 = vadd.f32 %v371, %v1641
    %v1643 = vpop.f32.mrb[0].mxu0
    %v1644 = vadd.f32 %v375, %v1643
    %1645 = vdwg.mxu0
    %1646 = vmatprep.subr.bf16.mxu0 %v967
    %1647 = vmatpush1.bf16.msra.mxu0 %v966
    %1648 = vmatprep.subr.bf16.mxu0 %v989
    %1649 = vmatpush1.bf16.msra.mxu0 %v988
    %1650 = vmatprep.subr.bf16.mxu0 %v1011
    %1651 = vmatpush1.bf16.msra.mxu0 %v1010
    %1652 = vmatprep.subr.bf16.mxu0 %v1033
    %1653 = vmatpush1.bf16.msra.mxu0 %v1032
    %1654 = vmatprep.subr.bf16.mxu0 %v1055
    %1655 = vmatpush1.bf16.msra.mxu0 %v1054
    %1656 = vmatprep.subr.bf16.mxu0 %v1077
    %1657 = vmatpush1.bf16.msra.mxu0 %v1076
    %1658 = vmatprep.subr.bf16.mxu0 %v1099
    %1659 = vmatpush1.bf16.msra.mxu0 %v1098
    %1660 = vmatprep.subr.bf16.mxu0 %v1121
    %1661 = vmatpush1.bf16.msra.mxu0 %v1120
    %1662 = vmatprep.subr.bf16.mxu0 0
    %1663 = vmatpush1.bf16.msra.mxu0 0
    %1664 = vmatprep.subr.bf16.mxu0 0
    %1665 = vmatpush1.bf16.msra.mxu0 0
    %1666 = vmatprep.subr.bf16.mxu0 0
    %1667 = vmatpush1.bf16.msra.mxu0 0
    %1668 = vmatprep.subr.bf16.mxu0 0
    %1669 = vmatpush1.bf16.msra.mxu0 0
    %1670 = vmatprep.subr.bf16.mxu0 0
    %1671 = vmatpush1.bf16.msra.mxu0 0
    %1672 = vmatprep.subr.bf16.mxu0 0
    %1673 = vmatpush1.bf16.msra.mxu0 0
    %1674 = vmatprep.subr.bf16.mxu0 0
    %1675 = vmatpush1.bf16.msra.mxu0 0
    %1676 = vmatprep.subr.bf16.mxu0 0
    %1677 = vmatpush1.bf16.msra.mxu0 0
    %1678 = vmatprep.mubr.bf16.mxu0 0
    %1679 = vmatmul.mubr.bf16.gmra.mrb[0].mxu0 %v129
    %v1680 = vpop.f32.mrb[0].mxu0
    %v1681 = vadd.f32 %v379, %v1680
    %v1682 = vpop.f32.mrb[0].mxu0
    %v1683 = vadd.f32 %v383, %v1682
    %v1684 = vpop.f32.mrb[0].mxu0
    %v1685 = vadd.f32 %v379, %v1684
    %v1686 = vpop.f32.mrb[0].mxu0
    %v1687 = vadd.f32 %v383, %v1686
    %1688 = vdwg.mxu0
    %1689 = vmatprep.subr.bf16.mxu0 %v969
    %1690 = vmatpush1.bf16.msra.mxu0 %v968
    %1691 = vmatprep.subr.bf16.mxu0 %v991
    %1692 = vmatpush1.bf16.msra.mxu0 %v990
    %1693 = vmatprep.subr.bf16.mxu0 %v1013
    %1694 = vmatpush1.bf16.msra.mxu0 %v1012
    %1695 = vmatprep.subr.bf16.mxu0 %v1035
    %1696 = vmatpush1.bf16.msra.mxu0 %v1034
    %1697 = vmatprep.subr.bf16.mxu0 %v1057
    %1698 = vmatpush1.bf16.msra.mxu0 %v1056
    %1699 = vmatprep.subr.bf16.mxu0 %v1079
    %1700 = vmatpush1.bf16.msra.mxu0 %v1078
    %1701 = vmatprep.subr.bf16.mxu0 %v1101
    %1702 = vmatpush1.bf16.msra.mxu0 %v1100
    %1703 = vmatprep.subr.bf16.mxu0 %v1123
    %1704 = vmatpush1.bf16.msra.mxu0 %v1122
    %1705 = vmatprep.subr.bf16.mxu0 0
    %1706 = vmatpush1.bf16.msra.mxu0 0
    %1707 = vmatprep.subr.bf16.mxu0 0
    %1708 = vmatpush1.bf16.msra.mxu0 0
    %1709 = vmatprep.subr.bf16.mxu0 0
    %1710 = vmatpush1.bf16.msra.mxu0 0
    %1711 = vmatprep.subr.bf16.mxu0 0
    %1712 = vmatpush1.bf16.msra.mxu0 0
    %1713 = vmatprep.subr.bf16.mxu0 0
    %1714 = vmatpush1.bf16.msra.mxu0 0
    %1715 = vmatprep.subr.bf16.mxu0 0
    %1716 = vmatpush1.bf16.msra.mxu0 0
    %1717 = vmatprep.subr.bf16.mxu0 0
    %1718 = vmatpush1.bf16.msra.mxu0 0
    %1719 = vmatprep.subr.bf16.mxu0 0
    %1720 = vmatpush1.bf16.msra.mxu0 0
    %1721 = vmatprep.mubr.bf16.mxu0 0
    %1722 = vmatmul.mubr.bf16.gmra.mrb[0].mxu0 %v129
    %v1723 = vpop.f32.mrb[0].mxu0
    %v1724 = vadd.f32 %v387, %v1723
    %v1725 = vpop.f32.mrb[0].mxu0
    %v1726 = vadd.f32 %v391, %v1725
    %v1727 = vpop.f32.mrb[0].mxu0
    %v1728 = vadd.f32 %v387, %v1727
    %v1729 = vpop.f32.mrb[0].mxu0
    %v1730 = vadd.f32 %v391, %v1729
    %1731 = vdwg.mxu0
    %1732 = vmatprep.subr.bf16.mxu0 %v971
    %1733 = vmatpush1.bf16.msra.mxu0 %v970
    %1734 = vmatprep.subr.bf16.mxu0 %v993
    %1735 = vmatpush1.bf16.msra.mxu0 %v992
    %1736 = vmatprep.subr.bf16.mxu0 %v1015
    %1737 = vmatpush1.bf16.msra.mxu0 %v1014
    %1738 = vmatprep.subr.bf16.mxu0 %v1037
    %1739 = vmatpush1.bf16.msra.mxu0 %v1036
    %1740 = vmatprep.subr.bf16.mxu0 %v1059
    %1741 = vmatpush1.bf16.msra.mxu0 %v1058
    %1742 = vmatprep.subr.bf16.mxu0 %v1081
    %1743 = vmatpush1.bf16.msra.mxu0 %v1080
    %1744 = vmatprep.subr.bf16.mxu0 %v1103
    %1745 = vmatpush1.bf16.msra.mxu0 %v1102
    %1746 = vmatprep.subr.bf16.mxu0 %v1125
    %1747 = vmatpush1.bf16.msra.mxu0 %v1124
    %1748 = vmatprep.subr.bf16.mxu0 0
    %1749 = vmatpush1.bf16.msra.mxu0 0
    %1750 = vmatprep.subr.bf16.mxu0 0
    %1751 = vmatpush1.bf16.msra.mxu0 0
    %1752 = vmatprep.subr.bf16.mxu0 0
    %1753 = vmatpush1.bf16.msra.mxu0 0
    %1754 = vmatprep.subr.bf16.mxu0 0
    %1755 = vmatpush1.bf16.msra.mxu0 0
    %1756 = vmatprep.subr.bf16.mxu0 0
    %1757 = vmatpush1.bf16.msra.mxu0 0
    %1758 = vmatprep.subr.bf16.mxu0 0
    %1759 = vmatpush1.bf16.msra.mxu0 0
    %1760 = vmatprep.subr.bf16.mxu0 0
    %1761 = vmatpush1.bf16.msra.mxu0 0
    %1762 = vmatprep.subr.bf16.mxu0 0
    %1763 = vmatpush1.bf16.msra.mxu0 0
    %1764 = vmatprep.mubr.bf16.mxu0 0
    %1765 = vmatmul.mubr.bf16.gmra.mrb[0].mxu0 %v129
    %v1766 = vpop.f32.mrb[0].mxu0
    %v1767 = vadd.f32 %v395, %v1766
    %v1768 = vpop.f32.mrb[0].mxu0
    %v1769 = vadd.f32 %v399, %v1768
    %v1770 = vpop.f32.mrb[0].mxu0
    %v1771 = vadd.f32 %v395, %v1770
    %v1772 = vpop.f32.mrb[0].mxu0
    %v1773 = vadd.f32 %v399, %v1772
    %1774 = vdwg.mxu0
    %v1775 = vld [vmem:[#allocation5] sm:$0xff]
    %v1776 = vld [vmem:[#allocation5 + $0x8] sm:$0xff]
    %vm1777 = vcmp.gt.f32.partialorder %v1775, 0.0
    %vm1778 = vcmp.gt.f32.partialorder %v1776, 0.0
    %1779 = vmatprep.subr.mxu0 0.0
    %1780 = vmatpush1.xpose.msra.mxu0 %v1466
    %1781 = vmatprep.subr.mxu0 0.0
    %1782 = vmatpush1.xpose.msra.mxu0 %v1470
    %1783 = vmatprep.subr.mxu0 0.0
    %1784 = vmatpush1.xpose.msra.mxu0 0.0
    %1785 = vmatprep.subr.mxu0 0.0
    %1786 = vmatpush1.xpose.msra.mxu0 0.0
    %1787 = vmatprep.subr.mxu0 0.0
    %1788 = vmatpush1.xpose.msra.mxu0 0.0
    %1789 = vmatprep.subr.mxu0 0.0
    %1790 = vmatpush1.xpose.msra.mxu0 0.0
    %1791 = vmatprep.subr.mxu0 0.0
    %1792 = vmatpush1.xpose.msra.mxu0 0.0
    %1793 = vmatprep.subr.mxu0 0.0
    %1794 = vmatpush1.xpose.msra.mxu0 0.0
    %1795 = vmatprep.subr.mxu0 0.0
    %1796 = vmatpush1.xpose.msra.mxu0 0.0
    %1797 = vmatprep.subr.mxu0 0.0
    %1798 = vmatpush1.xpose.msra.mxu0 0.0
    %1799 = vmatprep.subr.mxu0 0.0
    %1800 = vmatpush1.xpose.msra.mxu0 0.0
    %1801 = vmatprep.subr.mxu0 0.0
    %1802 = vmatpush1.xpose.msra.mxu0 0.0
    %1803 = vmatprep.subr.mxu0 0.0
    %1804 = vmatpush1.xpose.msra.mxu0 0.0
    %1805 = vmatprep.subr.mxu0 0.0
    %1806 = vmatpush1.xpose.msra.mxu0 0.0
    %1807 = vmatprep.subr.mxu0 0.0
    %1808 = vmatpush1.xpose.msra.mxu0 0.0
    %1809 = vmatprep.subr.mxu0 0.0
    %1810 = vmatpush1.xpose.msra.mxu0 0.0
    %1811 = vmatprep.subr.mxu0 0.0
    %1812 = vmatpush1.xpose.msra.mxu0 0.0
    %1813 = vmatprep.subr.mxu0 0.0
    %1814 = vmatpush1.xpose.msra.mxu0 0.0
    %1815 = vmatprep.subr.mxu0 0.0
    %1816 = vmatpush1.xpose.msra.mxu0 0.0
    %1817 = vmatprep.subr.mxu0 0.0
    %1818 = vmatpush1.xpose.msra.mxu0 0.0
    %1819 = vmatprep.subr.mxu0 0.0
    %1820 = vmatpush1.xpose.msra.mxu0 0.0
    %1821 = vmatprep.subr.mxu0 0.0
    %1822 = vmatpush1.xpose.msra.mxu0 0.0
    %1823 = vmatprep.subr.mxu0 0.0
    %1824 = vmatpush1.xpose.msra.mxu0 0.0
    %1825 = vmatprep.subr.mxu0 0.0
    %1826 = vmatpush1.xpose.msra.mxu0 0.0
    %1827 = vmatprep.subr.mxu0 0.0
    %1828 = vmatpush1.xpose.msra.mxu0 0.0
    %1829 = vmatprep.subr.mxu0 0.0
    %1830 = vmatpush1.xpose.msra.mxu0 0.0
    %1831 = vmatprep.subr.mxu0 0.0
    %1832 = vmatpush1.xpose.msra.mxu0 0.0
    %1833 = vmatprep.subr.mxu0 0.0
    %1834 = vmatpush1.xpose.msra.mxu0 0.0
    %1835 = vmatprep.subr.mxu0 0.0
    %1836 = vmatpush1.xpose.msra.mxu0 0.0
    %1837 = vmatprep.subr.mxu0 0.0
    %1838 = vmatpush1.xpose.msra.mxu0 0.0
    %1839 = vmatprep.subr.mxu0 0.0
    %1840 = vmatpush1.xpose.msra.mxu0 0.0
    %1841 = vmatprep.subr.mxu0 0.0
    %1842 = vmatpush1.xpose.msra.mxu0 0.0
    %1843 = vmatprep.mubr.f32.mxu0 0.0
    %1844 = vmatmul.mubr.f32.gmra.mrb[0].mxu0 %v1337
    %v1845 = vpop.f32.mrb[0].mxu0
    %v1846 = vadd.f32 0.0, %v1845
    %v1847 = vpop.f32.mrb[0].mxu0
    %1848 = vmatprep.mubr.f32.mxu0 0.0
    %1849 = vmatmul.mubr.f32.gmra.mrb[0].mxu0 %v1341
    %v1850 = vpop.f32.mrb[0].mxu0
    %v1851 = vadd.f32 0.0, %v1850
    %v1852 = vpop.f32.mrb[0].mxu0
    %1853 = vdwg.mxu0
    %v1854 = vmul.f32 %v1846, 0.088388346
    %v1855 = vmul.f32 %v1851, 0.088388346
    %v1856 = vsel %vm1777, %v1854, -1e+30
    %v1857 = vsel %vm1778, %v1855, -1e+30
    %vm1858 = vcmask 130048
    %v1859 = vsel %vm1858, %v1856, -inf
    %1860 = vmax.xlane.f32.xlu0 %v1859
    %v1861 = vpop.xlane.xlu0 %1860
    %v1862 = vsel %vm1858, %v1857, -inf
    %1863 = vmax.xlane.f32.xlu0 %v1862
    %v1864 = vpop.xlane.xlu0 %1863
    %v1865 = vsub.f32 %v1856, %v1861
    %v1866 = vsub.f32 %v1857, %v1864
    %v1867 = vmul.f32 %v1865, 1.442695
    %v1868 = vpow.pop %v1867
    %v1869 = vmul.f32 %v1866, 1.442695
    %v1870 = vpow.pop %v1869
    %v1871 = vsel %vm1777, %v1868, 0.0
    %v1872 = vsel %vm1778, %v1870, 0.0
    %v1873 = vsel %vm1858, %v1871, 0.0
    %1874 = vadd.xlane.f32.xlu0 %v1873
    %v1875 = vpop.xlane.xlu0 %1874
    %v1876 = vsel %vm1858, %v1872, 0.0
    %1877 = vadd.xlane.f32.xlu0 %v1876
    %v1878 = vpop.xlane.xlu0 %1877
    %vm1879 = vcmp.gt.f32.partialorder %v1875, 0.0
    %vm1880 = vcmp.gt.f32.partialorder %v1878, 0.0
    %v1881 = vrcp.pop %v1875
    %v1882 = vrcp.pop %v1878
    %v1883 = vsel %vm1879, %v1881, 0.0
    %v1884 = vsel %vm1880, %v1882, 0.0
    %v1885 = vmul.f32 %v1871, %v1883
    %v1886 = vmul.f32 %v1872, %v1884
    %1887 = vmatprep.subr.mxu0 0.0
    %1888 = vmatpush1.xpose.msra.mxu0 %v1468
    %1889 = vmatprep.subr.mxu0 0.0
    %1890 = vmatpush1.xpose.msra.mxu0 %v1472
    %1891 = vmatprep.subr.mxu0 0.0
    %1892 = vmatpush1.xpose.msra.mxu0 0.0
    %1893 = vmatprep.subr.mxu0 0.0
    %1894 = vmatpush1.xpose.msra.mxu0 0.0
    %1895 = vmatprep.subr.mxu0 0.0
    %1896 = vmatpush1.xpose.msra.mxu0 0.0
    %1897 = vmatprep.subr.mxu0 0.0
    %1898 = vmatpush1.xpose.msra.mxu0 0.0
    %1899 = vmatprep.subr.mxu0 0.0
    %1900 = vmatpush1.xpose.msra.mxu0 0.0
    %1901 = vmatprep.subr.mxu0 0.0
    %1902 = vmatpush1.xpose.msra.mxu0 0.0
    %1903 = vmatprep.subr.mxu0 0.0
    %1904 = vmatpush1.xpose.msra.mxu0 0.0
    %1905 = vmatprep.subr.mxu0 0.0
    %1906 = vmatpush1.xpose.msra.mxu0 0.0
    %1907 = vmatprep.subr.mxu0 0.0
    %1908 = vmatpush1.xpose.msra.mxu0 0.0
    %1909 = vmatprep.subr.mxu0 0.0
    %1910 = vmatpush1.xpose.msra.mxu0 0.0
    %1911 = vmatprep.subr.mxu0 0.0
    %1912 = vmatpush1.xpose.msra.mxu0 0.0
    %1913 = vmatprep.subr.mxu0 0.0
    %1914 = vmatpush1.xpose.msra.mxu0 0.0
    %1915 = vmatprep.subr.mxu0 0.0
    %1916 = vmatpush1.xpose.msra.mxu0 0.0
    %1917 = vmatprep.subr.mxu0 0.0
    %1918 = vmatpush1.xpose.msra.mxu0 0.0
    %1919 = vmatprep.subr.mxu0 0.0
    %1920 = vmatpush1.xpose.msra.mxu0 0.0
    %1921 = vmatprep.subr.mxu0 0.0
    %1922 = vmatpush1.xpose.msra.mxu0 0.0
    %1923 = vmatprep.subr.mxu0 0.0
    %1924 = vmatpush1.xpose.msra.mxu0 0.0
    %1925 = vmatprep.subr.mxu0 0.0
    %1926 = vmatpush1.xpose.msra.mxu0 0.0
    %1927 = vmatprep.subr.mxu0 0.0
    %1928 = vmatpush1.xpose.msra.mxu0 0.0
    %1929 = vmatprep.subr.mxu0 0.0
    %1930 = vmatpush1.xpose.msra.mxu0 0.0
    %1931 = vmatprep.subr.mxu0 0.0
    %1932 = vmatpush1.xpose.msra.mxu0 0.0
    %1933 = vmatprep.subr.mxu0 0.0
    %1934 = vmatpush1.xpose.msra.mxu0 0.0
    %1935 = vmatprep.subr.mxu0 0.0
    %1936 = vmatpush1.xpose.msra.mxu0 0.0
    %1937 = vmatprep.subr.mxu0 0.0
    %1938 = vmatpush1.xpose.msra.mxu0 0.0
    %1939 = vmatprep.subr.mxu0 0.0
    %1940 = vmatpush1.xpose.msra.mxu0 0.0
    %1941 = vmatprep.subr.mxu0 0.0
    %1942 = vmatpush1.xpose.msra.mxu0 0.0
    %1943 = vmatprep.subr.mxu0 0.0
    %1944 = vmatpush1.xpose.msra.mxu0 0.0
    %1945 = vmatprep.subr.mxu0 0.0
    %1946 = vmatpush1.xpose.msra.mxu0 0.0
    %1947 = vmatprep.subr.mxu0 0.0
    %1948 = vmatpush1.xpose.msra.mxu0 0.0
    %1949 = vmatprep.subr.mxu0 0.0
    %1950 = vmatpush1.xpose.msra.mxu0 0.0
    %1951 = vmatprep.mubr.f32.mxu0 0.0
    %1952 = vmatmul.mubr.f32.gmra.mrb[0].mxu0 %v1339
    %v1953 = vpop.f32.mrb[0].mxu0
    %v1954 = vadd.f32 0.0, %v1953
    %v1955 = vpop.f32.mrb[0].mxu0
    %1956 = vmatprep.mubr.f32.mxu0 0.0
    %1957 = vmatmul.mubr.f32.gmra.mrb[0].mxu0 %v1343
    %v1958 = vpop.f32.mrb[0].mxu0
    %v1959 = vadd.f32 0.0, %v1958
    %v1960 = vpop.f32.mrb[0].mxu0
    %1961 = vdwg.mxu0
    %v1962 = vmul.f32 %v1954, 0.088388346
    %v1963 = vmul.f32 %v1959, 0.088388346
    %v1964 = vsel %vm1777, %v1962, -1e+30
    %v1965 = vsel %vm1778, %v1963, -1e+30
    %v1966 = vsel %vm1858, %v1964, -inf
    %1967 = vmax.xlane.f32.xlu0 %v1966
    %v1968 = vpop.xlane.xlu0 %1967
    %v1969 = vsel %vm1858, %v1965, -inf
    %1970 = vmax.xlane.f32.xlu0 %v1969
    %v1971 = vpop.xlane.xlu0 %1970
    %v1972 = vsub.f32 %v1964, %v1968
    %v1973 = vsub.f32 %v1965, %v1971
    %v1974 = vmul.f32 %v1972, 1.442695
    %v1975 = vpow.pop %v1974
    %v1976 = vmul.f32 %v1973, 1.442695
    %v1977 = vpow.pop %v1976
    %v1978 = vsel %vm1777, %v1975, 0.0
    %v1979 = vsel %vm1778, %v1977, 0.0
    %v1980 = vsel %vm1858, %v1978, 0.0
    %1981 = vadd.xlane.f32.xlu0 %v1980
    %v1982 = vpop.xlane.xlu0 %1981
    %v1983 = vsel %vm1858, %v1979, 0.0
    %1984 = vadd.xlane.f32.xlu0 %v1983
    %v1985 = vpop.xlane.xlu0 %1984
    %vm1986 = vcmp.gt.f32.partialorder %v1982, 0.0
    %vm1987 = vcmp.gt.f32.partialorder %v1985, 0.0
    %v1988 = vrcp.pop %v1982
    %v1989 = vrcp.pop %v1985
    %v1990 = vsel %vm1986, %v1988, 0.0
    %v1991 = vsel %vm1987, %v1989, 0.0
    %v1992 = vmul.f32 %v1978, %v1990
    %v1993 = vmul.f32 %v1979, %v1991
    %v1995 = vsel %vm1858, %v1992, 0
    %v1998 = vsel %vm1858, %v1993, 0
    %2000 = vmatprep.subr.mxu0 0.0
    %2001 = vmatpush1.msra.mxu0 %v1597
    %2002 = vmatprep.subr.mxu0 0.0
    %2003 = vmatpush1.msra.mxu0 %v1601
    %2004 = vmatprep.subr.mxu0 0.0
    %2005 = vmatpush1.msra.mxu0 0.0
    %2006 = vmatprep.subr.mxu0 0.0
    %2007 = vmatpush1.msra.mxu0 0.0
    %2008 = vmatprep.subr.mxu0 0.0
    %2009 = vmatpush1.msra.mxu0 0.0
    %2010 = vmatprep.subr.mxu0 0.0
    %2011 = vmatpush1.msra.mxu0 0.0
    %2012 = vmatprep.subr.mxu0 0.0
    %2013 = vmatpush1.msra.mxu0 0.0
    %2014 = vmatprep.subr.mxu0 0.0
    %2015 = vmatpush1.msra.mxu0 0.0
    %2016 = vmatprep.subr.mxu0 0.0
    %2017 = vmatpush1.msra.mxu0 0.0
    %2018 = vmatprep.subr.mxu0 0.0
    %2019 = vmatpush1.msra.mxu0 0.0
    %2020 = vmatprep.subr.mxu0 0.0
    %2021 = vmatpush1.msra.mxu0 0.0
    %2022 = vmatprep.subr.mxu0 0.0
    %2023 = vmatpush1.msra.mxu0 0.0
    %2024 = vmatprep.subr.mxu0 0.0
    %2025 = vmatpush1.msra.mxu0 0.0
    %2026 = vmatprep.subr.mxu0 0.0
    %2027 = vmatpush1.msra.mxu0 0.0
    %2028 = vmatprep.subr.mxu0 0.0
    %2029 = vmatpush1.msra.mxu0 0.0
    %2030 = vmatprep.subr.mxu0 0.0
    %2031 = vmatpush1.msra.mxu0 0.0
    %2032 = vmatprep.subr.mxu0 0.0
    %2033 = vmatpush1.msra.mxu0 0.0
    %2034 = vmatprep.subr.mxu0 0.0
    %2035 = vmatpush1.msra.mxu0 0.0
    %2036 = vmatprep.subr.mxu0 0.0
    %2037 = vmatpush1.msra.mxu0 0.0
    %2038 = vmatprep.subr.mxu0 0.0
    %2039 = vmatpush1.msra.mxu0 0.0
    %2040 = vmatprep.subr.mxu0 0.0
    %2041 = vmatpush1.msra.mxu0 0.0
    %2042 = vmatprep.subr.mxu0 0.0
    %2043 = vmatpush1.msra.mxu0 0.0
    %2044 = vmatprep.subr.mxu0 0.0
    %2045 = vmatpush1.msra.mxu0 0.0
    %2046 = vmatprep.subr.mxu0 0.0
    %2047 = vmatpush1.msra.mxu0 0.0
    %2048 = vmatprep.subr.mxu0 0.0
    %2049 = vmatpush1.msra.mxu0 0.0
    %2050 = vmatprep.subr.mxu0 0.0
    %2051 = vmatpush1.msra.mxu0 0.0
    %2052 = vmatprep.subr.mxu0 0.0
    %2053 = vmatpush1.msra.mxu0 0.0
    %2054 = vmatprep.subr.mxu0 0.0
    %2055 = vmatpush1.msra.mxu0 0.0
    %2056 = vmatprep.subr.mxu0 0.0
    %2057 = vmatpush1.msra.mxu0 0.0
    %2058 = vmatprep.subr.mxu0 0.0
    %2059 = vmatpush1.msra.mxu0 0.0
    %2060 = vmatprep.subr.mxu0 0.0
    %2061 = vmatpush1.msra.mxu0 0.0
    %2062 = vmatprep.subr.mxu0 0.0
    %2063 = vmatpush1.msra.mxu0 0.0
    %2064 = vmatprep.mubr.f32.mxu0 0.0
    %2065 = vmatmul.mubr.f32.gmra.mrb[0].mxu0 %v1995
    %v2066 = vpop.f32.mrb[0].mxu0
    %v2067 = vadd.f32 0.0, %v2066
    %v2068 = vpop.f32.mrb[0].mxu0
    %2069 = vmatprep.mubr.f32.mxu0 0.0
    %2070 = vmatmul.mubr.f32.gmra.mrb[0].mxu0 %v1998
    %v2071 = vpop.f32.mrb[0].mxu0
    %v2072 = vadd.f32 0.0, %v2071
    %v2073 = vpop.f32.mrb[0].mxu0
    %2074 = vdwg.mxu0
    %v2076 = vsel %vm1858, %v1885, 0
    %v2079 = vsel %vm1858, %v1886, 0
    %2081 = vmatprep.subr.mxu0 0.0
    %2082 = vmatpush1.msra.mxu0 %v1595
    %2083 = vmatprep.subr.mxu0 0.0
    %2084 = vmatpush1.msra.mxu0 %v1599
    %2085 = vmatprep.subr.mxu0 0.0
    %2086 = vmatpush1.msra.mxu0 0.0
    %2087 = vmatprep.subr.mxu0 0.0
    %2088 = vmatpush1.msra.mxu0 0.0
    %2089 = vmatprep.subr.mxu0 0.0
    %2090 = vmatpush1.msra.mxu0 0.0
    %2091 = vmatprep.subr.mxu0 0.0
    %2092 = vmatpush1.msra.mxu0 0.0
    %2093 = vmatprep.subr.mxu0 0.0
    %2094 = vmatpush1.msra.mxu0 0.0
    %2095 = vmatprep.subr.mxu0 0.0
    %2096 = vmatpush1.msra.mxu0 0.0
    %2097 = vmatprep.subr.mxu0 0.0
    %2098 = vmatpush1.msra.mxu0 0.0
    %2099 = vmatprep.subr.mxu0 0.0
    %2100 = vmatpush1.msra.mxu0 0.0
    %2101 = vmatprep.subr.mxu0 0.0
    %2102 = vmatpush1.msra.mxu0 0.0
    %2103 = vmatprep.subr.mxu0 0.0
    %2104 = vmatpush1.msra.mxu0 0.0
    %2105 = vmatprep.subr.mxu0 0.0
    %2106 = vmatpush1.msra.mxu0 0.0
    %2107 = vmatprep.subr.mxu0 0.0
    %2108 = vmatpush1.msra.mxu0 0.0
    %2109 = vmatprep.subr.mxu0 0.0
    %2110 = vmatpush1.msra.mxu0 0.0
    %2111 = vmatprep.subr.mxu0 0.0
    %2112 = vmatpush1.msra.mxu0 0.0
    %2113 = vmatprep.subr.mxu0 0.0
    %2114 = vmatpush1.msra.mxu0 0.0
    %2115 = vmatprep.subr.mxu0 0.0
    %2116 = vmatpush1.msra.mxu0 0.0
    %2117 = vmatprep.subr.mxu0 0.0
    %2118 = vmatpush1.msra.mxu0 0.0
    %2119 = vmatprep.subr.mxu0 0.0
    %2120 = vmatpush1.msra.mxu0 0.0
    %2121 = vmatprep.subr.mxu0 0.0
    %2122 = vmatpush1.msra.mxu0 0.0
    %2123 = vmatprep.subr.mxu0 0.0
    %2124 = vmatpush1.msra.mxu0 0.0
    %2125 = vmatprep.subr.mxu0 0.0
    %2126 = vmatpush1.msra.mxu0 0.0
    %2127 = vmatprep.subr.mxu0 0.0
    %2128 = vmatpush1.msra.mxu0 0.0
    %2129 = vmatprep.subr.mxu0 0.0
    %2130 = vmatpush1.msra.mxu0 0.0
    %2131 = vmatprep.subr.mxu0 0.0
    %2132 = vmatpush1.msra.mxu0 0.0
    %2133 = vmatprep.subr.mxu0 0.0
    %2134 = vmatpush1.msra.mxu0 0.0
    %2135 = vmatprep.subr.mxu0 0.0
    %2136 = vmatpush1.msra.mxu0 0.0
    %2137 = vmatprep.subr.mxu0 0.0
    %2138 = vmatpush1.msra.mxu0 0.0
    %2139 = vmatprep.subr.mxu0 0.0
    %2140 = vmatpush1.msra.mxu0 0.0
    %2141 = vmatprep.subr.mxu0 0.0
    %2142 = vmatpush1.msra.mxu0 0.0
    %2143 = vmatprep.subr.mxu0 0.0
    %2144 = vmatpush1.msra.mxu0 0.0
    %2145 = vmatprep.mubr.f32.mxu0 0.0
    %2146 = vmatmul.mubr.f32.gmra.mrb[0].mxu0 %v2076
    %v2147 = vpop.f32.mrb[0].mxu0
    %v2148 = vadd.f32 %v2067, %v2147
    %v2149 = vpop.f32.mrb[0].mxu0
    %2150 = vmatprep.mubr.f32.mxu0 0.0
    %2151 = vmatmul.mubr.f32.gmra.mrb[0].mxu0 %v2079
    %v2152 = vpop.f32.mrb[0].mxu0
    %v2153 = vadd.f32 %v2072, %v2152
    %v2154 = vpop.f32.mrb[0].mxu0
    %2155 = vdwg.mxu0
    %v2156 = vmul.f32 %v2148, 0.5
    %v2157 = vmul.f32 %v2153, 0.5
    %v2158 = vadd.f32 %v2156, %v1724
    %v2159 = vadd.f32 %v2157, %v1728
    %s2160 = scalar_lea.vmem [#allocation5], 16
    %v2161 = vld [vmem:[%s2160] sm:$0xff]
    %v2162 = vld [vmem:[%s2160 + $0x8] sm:$0xff]
    %vm2163 = vcmp.gt.f32.partialorder %v2161, 0.0
    %vm2164 = vcmp.gt.f32.partialorder %v2162, 0.0
    %2165 = vmatprep.subr.mxu0 0.0
    %2166 = vmatpush1.xpose.msra.mxu0 %v1509
    %2167 = vmatprep.subr.mxu0 0.0
    %2168 = vmatpush1.xpose.msra.mxu0 %v1513
    %2169 = vmatprep.subr.mxu0 0.0
    %2170 = vmatpush1.xpose.msra.mxu0 0.0
    %2171 = vmatprep.subr.mxu0 0.0
    %2172 = vmatpush1.xpose.msra.mxu0 0.0
    %2173 = vmatprep.subr.mxu0 0.0
    %2174 = vmatpush1.xpose.msra.mxu0 0.0
    %2175 = vmatprep.subr.mxu0 0.0
    %2176 = vmatpush1.xpose.msra.mxu0 0.0
    %2177 = vmatprep.subr.mxu0 0.0
    %2178 = vmatpush1.xpose.msra.mxu0 0.0
    %2179 = vmatprep.subr.mxu0 0.0
    %2180 = vmatpush1.xpose.msra.mxu0 0.0
    %2181 = vmatprep.subr.mxu0 0.0
    %2182 = vmatpush1.xpose.msra.mxu0 0.0
    %2183 = vmatprep.subr.mxu0 0.0
    %2184 = vmatpush1.xpose.msra.mxu0 0.0
    %2185 = vmatprep.subr.mxu0 0.0
    %2186 = vmatpush1.xpose.msra.mxu0 0.0
    %2187 = vmatprep.subr.mxu0 0.0
    %2188 = vmatpush1.xpose.msra.mxu0 0.0
    %2189 = vmatprep.subr.mxu0 0.0
    %2190 = vmatpush1.xpose.msra.mxu0 0.0
    %2191 = vmatprep.subr.mxu0 0.0
    %2192 = vmatpush1.xpose.msra.mxu0 0.0
    %2193 = vmatprep.subr.mxu0 0.0
    %2194 = vmatpush1.xpose.msra.mxu0 0.0
    %2195 = vmatprep.subr.mxu0 0.0
    %2196 = vmatpush1.xpose.msra.mxu0 0.0
    %2197 = vmatprep.subr.mxu0 0.0
    %2198 = vmatpush1.xpose.msra.mxu0 0.0
    %2199 = vmatprep.subr.mxu0 0.0
    %2200 = vmatpush1.xpose.msra.mxu0 0.0
    %2201 = vmatprep.subr.mxu0 0.0
    %2202 = vmatpush1.xpose.msra.mxu0 0.0
    %2203 = vmatprep.subr.mxu0 0.0
    %2204 = vmatpush1.xpose.msra.mxu0 0.0
    %2205 = vmatprep.subr.mxu0 0.0
    %2206 = vmatpush1.xpose.msra.mxu0 0.0
    %2207 = vmatprep.subr.mxu0 0.0
    %2208 = vmatpush1.xpose.msra.mxu0 0.0
    %2209 = vmatprep.subr.mxu0 0.0
    %2210 = vmatpush1.xpose.msra.mxu0 0.0
    %2211 = vmatprep.subr.mxu0 0.0
    %2212 = vmatpush1.xpose.msra.mxu0 0.0
    %2213 = vmatprep.subr.mxu0 0.0
    %2214 = vmatpush1.xpose.msra.mxu0 0.0
    %2215 = vmatprep.subr.mxu0 0.0
    %2216 = vmatpush1.xpose.msra.mxu0 0.0
    %2217 = vmatprep.subr.mxu0 0.0
    %2218 = vmatpush1.xpose.msra.mxu0 0.0
    %2219 = vmatprep.subr.mxu0 0.0
    %2220 = vmatpush1.xpose.msra.mxu0 0.0
    %2221 = vmatprep.subr.mxu0 0.0
    %2222 = vmatpush1.xpose.msra.mxu0 0.0
    %2223 = vmatprep.subr.mxu0 0.0
    %2224 = vmatpush1.xpose.msra.mxu0 0.0
    %2225 = vmatprep.subr.mxu0 0.0
    %2226 = vmatpush1.xpose.msra.mxu0 0.0
    %2227 = vmatprep.subr.mxu0 0.0
    %2228 = vmatpush1.xpose.msra.mxu0 0.0
    %2229 = vmatprep.mubr.f32.mxu0 0.0
    %2230 = vmatmul.mubr.f32.gmra.mrb[0].mxu0 %v1380
    %v2231 = vpop.f32.mrb[0].mxu0
    %v2232 = vadd.f32 0.0, %v2231
    %v2233 = vpop.f32.mrb[0].mxu0
    %2234 = vmatprep.mubr.f32.mxu0 0.0
    %2235 = vmatmul.mubr.f32.gmra.mrb[0].mxu0 %v1384
    %v2236 = vpop.f32.mrb[0].mxu0
    %v2237 = vadd.f32 0.0, %v2236
    %v2238 = vpop.f32.mrb[0].mxu0
    %2239 = vdwg.mxu0
    %v2240 = vmul.f32 %v2232, 0.088388346
    %v2241 = vmul.f32 %v2237, 0.088388346
    %v2242 = vsel %vm2163, %v2240, -1e+30
    %v2243 = vsel %vm2164, %v2241, -1e+30
    %v2244 = vsel %vm1858, %v2242, -inf
    %2245 = vmax.xlane.f32.xlu0 %v2244
    %v2246 = vpop.xlane.xlu0 %2245
    %v2247 = vsel %vm1858, %v2243, -inf
    %2248 = vmax.xlane.f32.xlu0 %v2247
    %v2249 = vpop.xlane.xlu0 %2248
    %v2250 = vsub.f32 %v2242, %v2246
    %v2251 = vsub.f32 %v2243, %v2249
    %v2252 = vmul.f32 %v2250, 1.442695
    %v2253 = vpow.pop %v2252
    %v2254 = vmul.f32 %v2251, 1.442695
    %v2255 = vpow.pop %v2254
    %v2256 = vsel %vm2163, %v2253, 0.0
    %v2257 = vsel %vm2164, %v2255, 0.0
    %v2258 = vsel %vm1858, %v2256, 0.0
    %2259 = vadd.xlane.f32.xlu0 %v2258
    %v2260 = vpop.xlane.xlu0 %2259
    %v2261 = vsel %vm1858, %v2257, 0.0
    %2262 = vadd.xlane.f32.xlu0 %v2261
    %v2263 = vpop.xlane.xlu0 %2262
    %vm2264 = vcmp.gt.f32.partialorder %v2260, 0.0
    %vm2265 = vcmp.gt.f32.partialorder %v2263, 0.0
    %v2266 = vrcp.pop %v2260
    %v2267 = vrcp.pop %v2263
    %v2268 = vsel %vm2264, %v2266, 0.0
    %v2269 = vsel %vm2265, %v2267, 0.0
    %v2270 = vmul.f32 %v2256, %v2268
    %v2271 = vmul.f32 %v2257, %v2269
    %2272 = vmatprep.subr.mxu0 0.0
    %2273 = vmatpush1.xpose.msra.mxu0 %v1511
    %2274 = vmatprep.subr.mxu0 0.0
    %2275 = vmatpush1.xpose.msra.mxu0 %v1515
    %2276 = vmatprep.subr.mxu0 0.0
    %2277 = vmatpush1.xpose.msra.mxu0 0.0
    %2278 = vmatprep.subr.mxu0 0.0
    %2279 = vmatpush1.xpose.msra.mxu0 0.0
    %2280 = vmatprep.subr.mxu0 0.0
    %2281 = vmatpush1.xpose.msra.mxu0 0.0
    %2282 = vmatprep.subr.mxu0 0.0
    %2283 = vmatpush1.xpose.msra.mxu0 0.0
    %2284 = vmatprep.subr.mxu0 0.0
    %2285 = vmatpush1.xpose.msra.mxu0 0.0
    %2286 = vmatprep.subr.mxu0 0.0
    %2287 = vmatpush1.xpose.msra.mxu0 0.0
    %2288 = vmatprep.subr.mxu0 0.0
    %2289 = vmatpush1.xpose.msra.mxu0 0.0
    %2290 = vmatprep.subr.mxu0 0.0
    %2291 = vmatpush1.xpose.msra.mxu0 0.0
    %2292 = vmatprep.subr.mxu0 0.0
    %2293 = vmatpush1.xpose.msra.mxu0 0.0
    %2294 = vmatprep.subr.mxu0 0.0
    %2295 = vmatpush1.xpose.msra.mxu0 0.0
    %2296 = vmatprep.subr.mxu0 0.0
    %2297 = vmatpush1.xpose.msra.mxu0 0.0
    %2298 = vmatprep.subr.mxu0 0.0
    %2299 = vmatpush1.xpose.msra.mxu0 0.0
    %2300 = vmatprep.subr.mxu0 0.0
    %2301 = vmatpush1.xpose.msra.mxu0 0.0
    %2302 = vmatprep.subr.mxu0 0.0
    %2303 = vmatpush1.xpose.msra.mxu0 0.0
    %2304 = vmatprep.subr.mxu0 0.0
    %2305 = vmatpush1.xpose.msra.mxu0 0.0
    %2306 = vmatprep.subr.mxu0 0.0
    %2307 = vmatpush1.xpose.msra.mxu0 0.0
    %2308 = vmatprep.subr.mxu0 0.0
    %2309 = vmatpush1.xpose.msra.mxu0 0.0
    %2310 = vmatprep.subr.mxu0 0.0
    %2311 = vmatpush1.xpose.msra.mxu0 0.0
    %2312 = vmatprep.subr.mxu0 0.0
    %2313 = vmatpush1.xpose.msra.mxu0 0.0
    %2314 = vmatprep.subr.mxu0 0.0
    %2315 = vmatpush1.xpose.msra.mxu0 0.0
    %2316 = vmatprep.subr.mxu0 0.0
    %2317 = vmatpush1.xpose.msra.mxu0 0.0
    %2318 = vmatprep.subr.mxu0 0.0
    %2319 = vmatpush1.xpose.msra.mxu0 0.0
    %2320 = vmatprep.subr.mxu0 0.0
    %2321 = vmatpush1.xpose.msra.mxu0 0.0
    %2322 = vmatprep.subr.mxu0 0.0
    %2323 = vmatpush1.xpose.msra.mxu0 0.0
    %2324 = vmatprep.subr.mxu0 0.0
    %2325 = vmatpush1.xpose.msra.mxu0 0.0
    %2326 = vmatprep.subr.mxu0 0.0
    %2327 = vmatpush1.xpose.msra.mxu0 0.0
    %2328 = vmatprep.subr.mxu0 0.0
    %2329 = vmatpush1.xpose.msra.mxu0 0.0
    %2330 = vmatprep.subr.mxu0 0.0
    %2331 = vmatpush1.xpose.msra.mxu0 0.0
    %2332 = vmatprep.subr.mxu0 0.0
    %2333 = vmatpush1.xpose.msra.mxu0 0.0
    %2334 = vmatprep.subr.mxu0 0.0
    %2335 = vmatpush1.xpose.msra.mxu0 0.0
    %2336 = vmatprep.mubr.f32.mxu0 0.0
    %2337 = vmatmul.mubr.f32.gmra.mrb[0].mxu0 %v1382
    %v2338 = vpop.f32.mrb[0].mxu0
    %v2339 = vadd.f32 0.0, %v2338
    %v2340 = vpop.f32.mrb[0].mxu0
    %2341 = vmatprep.mubr.f32.mxu0 0.0
    %2342 = vmatmul.mubr.f32.gmra.mrb[0].mxu0 %v1386
    %v2343 = vpop.f32.mrb[0].mxu0
    %v2344 = vadd.f32 0.0, %v2343
    %v2345 = vpop.f32.mrb[0].mxu0
    %2346 = vdwg.mxu0
    %v2347 = vmul.f32 %v2339, 0.088388346
    %v2348 = vmul.f32 %v2344, 0.088388346
    %v2349 = vsel %vm2163, %v2347, -1e+30
    %v2350 = vsel %vm2164, %v2348, -1e+30
    %v2351 = vsel %vm1858, %v2349, -inf
    %2352 = vmax.xlane.f32.xlu0 %v2351
    %v2353 = vpop.xlane.xlu0 %2352
    %v2354 = vsel %vm1858, %v2350, -inf
    %2355 = vmax.xlane.f32.xlu0 %v2354
    %v2356 = vpop.xlane.xlu0 %2355
    %v2357 = vsub.f32 %v2349, %v2353
    %v2358 = vsub.f32 %v2350, %v2356
    %v2359 = vmul.f32 %v2357, 1.442695
    %v2360 = vpow.pop %v2359
    %v2361 = vmul.f32 %v2358, 1.442695
    %v2362 = vpow.pop %v2361
    %v2363 = vsel %vm2163, %v2360, 0.0
    %v2364 = vsel %vm2164, %v2362, 0.0
    %v2365 = vsel %vm1858, %v2363, 0.0
    %2366 = vadd.xlane.f32.xlu0 %v2365
    %v2367 = vpop.xlane.xlu0 %2366
    %v2368 = vsel %vm1858, %v2364, 0.0
    %2369 = vadd.xlane.f32.xlu0 %v2368
    %v2370 = vpop.xlane.xlu0 %2369
    %vm2371 = vcmp.gt.f32.partialorder %v2367, 0.0
    %vm2372 = vcmp.gt.f32.partialorder %v2370, 0.0
    %v2373 = vrcp.pop %v2367
    %v2374 = vrcp.pop %v2370
    %v2375 = vsel %vm2371, %v2373, 0.0
    %v2376 = vsel %vm2372, %v2374, 0.0
    %v2377 = vmul.f32 %v2363, %v2375
    %v2378 = vmul.f32 %v2364, %v2376
    %v2380 = vsel %vm1858, %v2377, 0
    %v2383 = vsel %vm1858, %v2378, 0
    %2385 = vmatprep.subr.mxu0 0.0
    %2386 = vmatpush1.msra.mxu0 %v1640
    %2387 = vmatprep.subr.mxu0 0.0
    %2388 = vmatpush1.msra.mxu0 %v1644
    %2389 = vmatprep.subr.mxu0 0.0
    %2390 = vmatpush1.msra.mxu0 0.0
    %2391 = vmatprep.subr.mxu0 0.0
    %2392 = vmatpush1.msra.mxu0 0.0
    %2393 = vmatprep.subr.mxu0 0.0
    %2394 = vmatpush1.msra.mxu0 0.0
    %2395 = vmatprep.subr.mxu0 0.0
    %2396 = vmatpush1.msra.mxu0 0.0
    %2397 = vmatprep.subr.mxu0 0.0
    %2398 = vmatpush1.msra.mxu0 0.0
    %2399 = vmatprep.subr.mxu0 0.0
    %2400 = vmatpush1.msra.mxu0 0.0
    %2401 = vmatprep.subr.mxu0 0.0
    %2402 = vmatpush1.msra.mxu0 0.0
    %2403 = vmatprep.subr.mxu0 0.0
    %2404 = vmatpush1.msra.mxu0 0.0
    %2405 = vmatprep.subr.mxu0 0.0
    %2406 = vmatpush1.msra.mxu0 0.0
    %2407 = vmatprep.subr.mxu0 0.0
    %2408 = vmatpush1.msra.mxu0 0.0
    %2409 = vmatprep.subr.mxu0 0.0
    %2410 = vmatpush1.msra.mxu0 0.0
    %2411 = vmatprep.subr.mxu0 0.0
    %2412 = vmatpush1.msra.mxu0 0.0
    %2413 = vmatprep.subr.mxu0 0.0
    %2414 = vmatpush1.msra.mxu0 0.0
    %2415 = vmatprep.subr.mxu0 0.0
    %2416 = vmatpush1.msra.mxu0 0.0
    %2417 = vmatprep.subr.mxu0 0.0
    %2418 = vmatpush1.msra.mxu0 0.0
    %2419 = vmatprep.subr.mxu0 0.0
    %2420 = vmatpush1.msra.mxu0 0.0
    %2421 = vmatprep.subr.mxu0 0.0
    %2422 = vmatpush1.msra.mxu0 0.0
    %2423 = vmatprep.subr.mxu0 0.0
    %2424 = vmatpush1.msra.mxu0 0.0
    %2425 = vmatprep.subr.mxu0 0.0
    %2426 = vmatpush1.msra.mxu0 0.0
    %2427 = vmatprep.subr.mxu0 0.0
    %2428 = vmatpush1.msra.mxu0 0.0
    %2429 = vmatprep.subr.mxu0 0.0
    %2430 = vmatpush1.msra.mxu0 0.0
    %2431 = vmatprep.subr.mxu0 0.0
    %2432 = vmatpush1.msra.mxu0 0.0
    %2433 = vmatprep.subr.mxu0 0.0
    %2434 = vmatpush1.msra.mxu0 0.0
    %2435 = vmatprep.subr.mxu0 0.0
    %2436 = vmatpush1.msra.mxu0 0.0
    %2437 = vmatprep.subr.mxu0 0.0
    %2438 = vmatpush1.msra.mxu0 0.0
    %2439 = vmatprep.subr.mxu0 0.0
    %2440 = vmatpush1.msra.mxu0 0.0
    %2441 = vmatprep.subr.mxu0 0.0
    %2442 = vmatpush1.msra.mxu0 0.0
    %2443 = vmatprep.subr.mxu0 0.0
    %2444 = vmatpush1.msra.mxu0 0.0
    %2445 = vmatprep.subr.mxu0 0.0
    %2446 = vmatpush1.msra.mxu0 0.0
    %2447 = vmatprep.subr.mxu0 0.0
    %2448 = vmatpush1.msra.mxu0 0.0
    %2449 = vmatprep.mubr.f32.mxu0 0.0
    %2450 = vmatmul.mubr.f32.gmra.mrb[0].mxu0 %v2380
    %v2451 = vpop.f32.mrb[0].mxu0
    %v2452 = vadd.f32 0.0, %v2451
    %v2453 = vpop.f32.mrb[0].mxu0
    %2454 = vmatprep.mubr.f32.mxu0 0.0
    %2455 = vmatmul.mubr.f32.gmra.mrb[0].mxu0 %v2383
    %v2456 = vpop.f32.mrb[0].mxu0
    %v2457 = vadd.f32 0.0, %v2456
    %v2458 = vpop.f32.mrb[0].mxu0
    %2459 = vdwg.mxu0
    %v2461 = vsel %vm1858, %v2270, 0
    %v2464 = vsel %vm1858, %v2271, 0
    %2466 = vmatprep.subr.mxu0 0.0
    %2467 = vmatpush1.msra.mxu0 %v1638
    %2468 = vmatprep.subr.mxu0 0.0
    %2469 = vmatpush1.msra.mxu0 %v1642
    %2470 = vmatprep.subr.mxu0 0.0
    %2471 = vmatpush1.msra.mxu0 0.0
    %2472 = vmatprep.subr.mxu0 0.0
    %2473 = vmatpush1.msra.mxu0 0.0
    %2474 = vmatprep.subr.mxu0 0.0
    %2475 = vmatpush1.msra.mxu0 0.0
    %2476 = vmatprep.subr.mxu0 0.0
    %2477 = vmatpush1.msra.mxu0 0.0
    %2478 = vmatprep.subr.mxu0 0.0
    %2479 = vmatpush1.msra.mxu0 0.0
    %2480 = vmatprep.subr.mxu0 0.0
    %2481 = vmatpush1.msra.mxu0 0.0
    %2482 = vmatprep.subr.mxu0 0.0
    %2483 = vmatpush1.msra.mxu0 0.0
    %2484 = vmatprep.subr.mxu0 0.0
    %2485 = vmatpush1.msra.mxu0 0.0
    %2486 = vmatprep.subr.mxu0 0.0
    %2487 = vmatpush1.msra.mxu0 0.0
    %2488 = vmatprep.subr.mxu0 0.0
    %2489 = vmatpush1.msra.mxu0 0.0
    %2490 = vmatprep.subr.mxu0 0.0
    %2491 = vmatpush1.msra.mxu0 0.0
    %2492 = vmatprep.subr.mxu0 0.0
    %2493 = vmatpush1.msra.mxu0 0.0
    %2494 = vmatprep.subr.mxu0 0.0
    %2495 = vmatpush1.msra.mxu0 0.0
    %2496 = vmatprep.subr.mxu0 0.0
    %2497 = vmatpush1.msra.mxu0 0.0
    %2498 = vmatprep.subr.mxu0 0.0
    %2499 = vmatpush1.msra.mxu0 0.0
    %2500 = vmatprep.subr.mxu0 0.0
    %2501 = vmatpush1.msra.mxu0 0.0
    %2502 = vmatprep.subr.mxu0 0.0
    %2503 = vmatpush1.msra.mxu0 0.0
    %2504 = vmatprep.subr.mxu0 0.0
    %2505 = vmatpush1.msra.mxu0 0.0
    %2506 = vmatprep.subr.mxu0 0.0
    %2507 = vmatpush1.msra.mxu0 0.0
    %2508 = vmatprep.subr.mxu0 0.0
    %2509 = vmatpush1.msra.mxu0 0.0
    %2510 = vmatprep.subr.mxu0 0.0
    %2511 = vmatpush1.msra.mxu0 0.0
    %2512 = vmatprep.subr.mxu0 0.0
    %2513 = vmatpush1.msra.mxu0 0.0
    %2514 = vmatprep.subr.mxu0 0.0
    %2515 = vmatpush1.msra.mxu0 0.0
    %2516 = vmatprep.subr.mxu0 0.0
    %2517 = vmatpush1.msra.mxu0 0.0
    %2518 = vmatprep.subr.mxu0 0.0
    %2519 = vmatpush1.msra.mxu0 0.0
    %2520 = vmatprep.subr.mxu0 0.0
    %2521 = vmatpush1.msra.mxu0 0.0
    %2522 = vmatprep.subr.mxu0 0.0
    %2523 = vmatpush1.msra.mxu0 0.0
    %2524 = vmatprep.subr.mxu0 0.0
    %2525 = vmatpush1.msra.mxu0 0.0
    %2526 = vmatprep.subr.mxu0 0.0
    %2527 = vmatpush1.msra.mxu0 0.0
    %2528 = vmatprep.subr.mxu0 0.0
    %2529 = vmatpush1.msra.mxu0 0.0
    %2530 = vmatprep.mubr.f32.mxu0 0.0
    %2531 = vmatmul.mubr.f32.gmra.mrb[0].mxu0 %v2461
    %v2532 = vpop.f32.mrb[0].mxu0
    %v2533 = vadd.f32 %v2452, %v2532
    %v2534 = vpop.f32.mrb[0].mxu0
    %2535 = vmatprep.mubr.f32.mxu0 0.0
    %2536 = vmatmul.mubr.f32.gmra.mrb[0].mxu0 %v2464
    %v2537 = vpop.f32.mrb[0].mxu0
    %v2538 = vadd.f32 %v2457, %v2537
    %v2539 = vpop.f32.mrb[0].mxu0
    %2540 = vdwg.mxu0
    %v2541 = vmul.f32 %v2533, 0.5
    %v2542 = vmul.f32 %v2538, 0.5
    %v2543 = vadd.f32 %v2541, %v1726
    %v2544 = vadd.f32 %v2542, %v1730
    %s2545 = scalar_lea.vmem [#allocation5], 32
    %v2546 = vld [vmem:[%s2545] sm:$0xff]
    %v2547 = vld [vmem:[%s2545 + $0x8] sm:$0xff]
    %vm2548 = vcmp.gt.f32.partialorder %v2546, 0.0
    %vm2549 = vcmp.gt.f32.partialorder %v2547, 0.0
    %2550 = vmatprep.subr.mxu0 0.0
    %2551 = vmatpush1.xpose.msra.mxu0 %v1552
    %2552 = vmatprep.subr.mxu0 0.0
    %2553 = vmatpush1.xpose.msra.mxu0 %v1556
    %2554 = vmatprep.subr.mxu0 0.0
    %2555 = vmatpush1.xpose.msra.mxu0 0.0
    %2556 = vmatprep.subr.mxu0 0.0
    %2557 = vmatpush1.xpose.msra.mxu0 0.0
    %2558 = vmatprep.subr.mxu0 0.0
    %2559 = vmatpush1.xpose.msra.mxu0 0.0
    %2560 = vmatprep.subr.mxu0 0.0
    %2561 = vmatpush1.xpose.msra.mxu0 0.0
    %2562 = vmatprep.subr.mxu0 0.0
    %2563 = vmatpush1.xpose.msra.mxu0 0.0
    %2564 = vmatprep.subr.mxu0 0.0
    %2565 = vmatpush1.xpose.msra.mxu0 0.0
    %2566 = vmatprep.subr.mxu0 0.0
    %2567 = vmatpush1.xpose.msra.mxu0 0.0
    %2568 = vmatprep.subr.mxu0 0.0
    %2569 = vmatpush1.xpose.msra.mxu0 0.0
    %2570 = vmatprep.subr.mxu0 0.0
    %2571 = vmatpush1.xpose.msra.mxu0 0.0
    %2572 = vmatprep.subr.mxu0 0.0
    %2573 = vmatpush1.xpose.msra.mxu0 0.0
    %2574 = vmatprep.subr.mxu0 0.0
    %2575 = vmatpush1.xpose.msra.mxu0 0.0
    %2576 = vmatprep.subr.mxu0 0.0
    %2577 = vmatpush1.xpose.msra.mxu0 0.0
    %2578 = vmatprep.subr.mxu0 0.0
    %2579 = vmatpush1.xpose.msra.mxu0 0.0
    %2580 = vmatprep.subr.mxu0 0.0
    %2581 = vmatpush1.xpose.msra.mxu0 0.0
    %2582 = vmatprep.subr.mxu0 0.0
    %2583 = vmatpush1.xpose.msra.mxu0 0.0
    %2584 = vmatprep.subr.mxu0 0.0
    %2585 = vmatpush1.xpose.msra.mxu0 0.0
    %2586 = vmatprep.subr.mxu0 0.0
    %2587 = vmatpush1.xpose.msra.mxu0 0.0
    %2588 = vmatprep.subr.mxu0 0.0
    %2589 = vmatpush1.xpose.msra.mxu0 0.0
    %2590 = vmatprep.subr.mxu0 0.0
    %2591 = vmatpush1.xpose.msra.mxu0 0.0
    %2592 = vmatprep.subr.mxu0 0.0
    %2593 = vmatpush1.xpose.msra.mxu0 0.0
    %2594 = vmatprep.subr.mxu0 0.0
    %2595 = vmatpush1.xpose.msra.mxu0 0.0
    %2596 = vmatprep.subr.mxu0 0.0
    %2597 = vmatpush1.xpose.msra.mxu0 0.0
    %2598 = vmatprep.subr.mxu0 0.0
    %2599 = vmatpush1.xpose.msra.mxu0 0.0
    %2600 = vmatprep.subr.mxu0 0.0
    %2601 = vmatpush1.xpose.msra.mxu0 0.0
    %2602 = vmatprep.subr.mxu0 0.0
    %2603 = vmatpush1.xpose.msra.mxu0 0.0
    %2604 = vmatprep.subr.mxu0 0.0
    %2605 = vmatpush1.xpose.msra.mxu0 0.0
    %2606 = vmatprep.subr.mxu0 0.0
    %2607 = vmatpush1.xpose.msra.mxu0 0.0
    %2608 = vmatprep.subr.mxu0 0.0
    %2609 = vmatpush1.xpose.msra.mxu0 0.0
    %2610 = vmatprep.subr.mxu0 0.0
    %2611 = vmatpush1.xpose.msra.mxu0 0.0
    %2612 = vmatprep.subr.mxu0 0.0
    %2613 = vmatpush1.xpose.msra.mxu0 0.0
    %2614 = vmatprep.mubr.f32.mxu0 0.0
    %2615 = vmatmul.mubr.f32.gmra.mrb[0].mxu0 %v1423
    %v2616 = vpop.f32.mrb[0].mxu0
    %v2617 = vadd.f32 0.0, %v2616
    %v2618 = vpop.f32.mrb[0].mxu0
    %2619 = vmatprep.mubr.f32.mxu0 0.0
    %2620 = vmatmul.mubr.f32.gmra.mrb[0].mxu0 %v1427
    %v2621 = vpop.f32.mrb[0].mxu0
    %v2622 = vadd.f32 0.0, %v2621
    %v2623 = vpop.f32.mrb[0].mxu0
    %2624 = vdwg.mxu0
    %v2625 = vmul.f32 %v2617, 0.088388346
    %v2626 = vmul.f32 %v2622, 0.088388346
    %v2627 = vsel %vm2548, %v2625, -1e+30
    %v2628 = vsel %vm2549, %v2626, -1e+30
    %v2629 = vsel %vm1858, %v2627, -inf
    %2630 = vmax.xlane.f32.xlu0 %v2629
    %v2631 = vpop.xlane.xlu0 %2630
    %v2632 = vsel %vm1858, %v2628, -inf
    %2633 = vmax.xlane.f32.xlu0 %v2632
    %v2634 = vpop.xlane.xlu0 %2633
    %v2635 = vsub.f32 %v2627, %v2631
    %v2636 = vsub.f32 %v2628, %v2634
    %v2637 = vmul.f32 %v2635, 1.442695
    %v2638 = vpow.pop %v2637
    %v2639 = vmul.f32 %v2636, 1.442695
    %v2640 = vpow.pop %v2639
    %v2641 = vsel %vm2548, %v2638, 0.0
    %v2642 = vsel %vm2549, %v2640, 0.0
    %v2643 = vsel %vm1858, %v2641, 0.0
    %2644 = vadd.xlane.f32.xlu0 %v2643
    %v2645 = vpop.xlane.xlu0 %2644
    %v2646 = vsel %vm1858, %v2642, 0.0
    %2647 = vadd.xlane.f32.xlu0 %v2646
    %v2648 = vpop.xlane.xlu0 %2647
    %vm2649 = vcmp.gt.f32.partialorder %v2645, 0.0
    %vm2650 = vcmp.gt.f32.partialorder %v2648, 0.0
    %v2651 = vrcp.pop %v2645
    %v2652 = vrcp.pop %v2648
    %v2653 = vsel %vm2649, %v2651, 0.0
    %v2654 = vsel %vm2650, %v2652, 0.0
    %v2655 = vmul.f32 %v2641, %v2653
    %v2656 = vmul.f32 %v2642, %v2654
    %2657 = vmatprep.subr.mxu0 0.0
    %2658 = vmatpush1.xpose.msra.mxu0 %v1554
    %2659 = vmatprep.subr.mxu0 0.0
    %2660 = vmatpush1.xpose.msra.mxu0 %v1558
    %2661 = vmatprep.subr.mxu0 0.0
    %2662 = vmatpush1.xpose.msra.mxu0 0.0
    %2663 = vmatprep.subr.mxu0 0.0
    %2664 = vmatpush1.xpose.msra.mxu0 0.0
    %2665 = vmatprep.subr.mxu0 0.0
    %2666 = vmatpush1.xpose.msra.mxu0 0.0
    %2667 = vmatprep.subr.mxu0 0.0
    %2668 = vmatpush1.xpose.msra.mxu0 0.0
    %2669 = vmatprep.subr.mxu0 0.0
    %2670 = vmatpush1.xpose.msra.mxu0 0.0
    %2671 = vmatprep.subr.mxu0 0.0
    %2672 = vmatpush1.xpose.msra.mxu0 0.0
    %2673 = vmatprep.subr.mxu0 0.0
    %2674 = vmatpush1.xpose.msra.mxu0 0.0
    %2675 = vmatprep.subr.mxu0 0.0
    %2676 = vmatpush1.xpose.msra.mxu0 0.0
    %2677 = vmatprep.subr.mxu0 0.0
    %2678 = vmatpush1.xpose.msra.mxu0 0.0
    %2679 = vmatprep.subr.mxu0 0.0
    %2680 = vmatpush1.xpose.msra.mxu0 0.0
    %2681 = vmatprep.subr.mxu0 0.0
    %2682 = vmatpush1.xpose.msra.mxu0 0.0
    %2683 = vmatprep.subr.mxu0 0.0
    %2684 = vmatpush1.xpose.msra.mxu0 0.0
    %2685 = vmatprep.subr.mxu0 0.0
    %2686 = vmatpush1.xpose.msra.mxu0 0.0
    %2687 = vmatprep.subr.mxu0 0.0
    %2688 = vmatpush1.xpose.msra.mxu0 0.0
    %2689 = vmatprep.subr.mxu0 0.0
    %2690 = vmatpush1.xpose.msra.mxu0 0.0
    %2691 = vmatprep.subr.mxu0 0.0
    %2692 = vmatpush1.xpose.msra.mxu0 0.0
    %2693 = vmatprep.subr.mxu0 0.0
    %2694 = vmatpush1.xpose.msra.mxu0 0.0
    %2695 = vmatprep.subr.mxu0 0.0
    %2696 = vmatpush1.xpose.msra.mxu0 0.0
    %2697 = vmatprep.subr.mxu0 0.0
    %2698 = vmatpush1.xpose.msra.mxu0 0.0
    %2699 = vmatprep.subr.mxu0 0.0
    %2700 = vmatpush1.xpose.msra.mxu0 0.0
    %2701 = vmatprep.subr.mxu0 0.0
    %2702 = vmatpush1.xpose.msra.mxu0 0.0
    %2703 = vmatprep.subr.mxu0 0.0
    %2704 = vmatpush1.xpose.msra.mxu0 0.0
    %2705 = vmatprep.subr.mxu0 0.0
    %2706 = vmatpush1.xpose.msra.mxu0 0.0
    %2707 = vmatprep.subr.mxu0 0.0
    %2708 = vmatpush1.xpose.msra.mxu0 0.0
    %2709 = vmatprep.subr.mxu0 0.0
    %2710 = vmatpush1.xpose.msra.mxu0 0.0
    %2711 = vmatprep.subr.mxu0 0.0
    %2712 = vmatpush1.xpose.msra.mxu0 0.0
    %2713 = vmatprep.subr.mxu0 0.0
    %2714 = vmatpush1.xpose.msra.mxu0 0.0
    %2715 = vmatprep.subr.mxu0 0.0
    %2716 = vmatpush1.xpose.msra.mxu0 0.0
    %2717 = vmatprep.subr.mxu0 0.0
    %2718 = vmatpush1.xpose.msra.mxu0 0.0
    %2719 = vmatprep.subr.mxu0 0.0
    %2720 = vmatpush1.xpose.msra.mxu0 0.0
    %2721 = vmatprep.mubr.f32.mxu0 0.0
    %2722 = vmatmul.mubr.f32.gmra.mrb[0].mxu0 %v1425
    %v2723 = vpop.f32.mrb[0].mxu0
    %v2724 = vadd.f32 0.0, %v2723
    %v2725 = vpop.f32.mrb[0].mxu0
    %2726 = vmatprep.mubr.f32.mxu0 0.0
    %2727 = vmatmul.mubr.f32.gmra.mrb[0].mxu0 %v1429
    %v2728 = vpop.f32.mrb[0].mxu0
    %v2729 = vadd.f32 0.0, %v2728
    %v2730 = vpop.f32.mrb[0].mxu0
    %2731 = vdwg.mxu0
    %v2732 = vmul.f32 %v2724, 0.088388346
    %v2733 = vmul.f32 %v2729, 0.088388346
    %v2734 = vsel %vm2548, %v2732, -1e+30
    %v2735 = vsel %vm2549, %v2733, -1e+30
    %v2736 = vsel %vm1858, %v2734, -inf
    %2737 = vmax.xlane.f32.xlu0 %v2736
    %v2738 = vpop.xlane.xlu0 %2737
    %v2739 = vsel %vm1858, %v2735, -inf
    %2740 = vmax.xlane.f32.xlu0 %v2739
    %v2741 = vpop.xlane.xlu0 %2740
    %v2742 = vsub.f32 %v2734, %v2738
    %v2743 = vsub.f32 %v2735, %v2741
    %v2744 = vmul.f32 %v2742, 1.442695
    %v2745 = vpow.pop %v2744
    %v2746 = vmul.f32 %v2743, 1.442695
    %v2747 = vpow.pop %v2746
    %v2748 = vsel %vm2548, %v2745, 0.0
    %v2749 = vsel %vm2549, %v2747, 0.0
    %v2750 = vsel %vm1858, %v2748, 0.0
    %2751 = vadd.xlane.f32.xlu0 %v2750
    %v2752 = vpop.xlane.xlu0 %2751
    %v2753 = vsel %vm1858, %v2749, 0.0
    %2754 = vadd.xlane.f32.xlu0 %v2753
    %v2755 = vpop.xlane.xlu0 %2754
    %vm2756 = vcmp.gt.f32.partialorder %v2752, 0.0
    %vm2757 = vcmp.gt.f32.partialorder %v2755, 0.0
    %v2758 = vrcp.pop %v2752
    %v2759 = vrcp.pop %v2755
    %v2760 = vsel %vm2756, %v2758, 0.0
    %v2761 = vsel %vm2757, %v2759, 0.0
    %v2762 = vmul.f32 %v2748, %v2760
    %v2763 = vmul.f32 %v2749, %v2761
    %v2765 = vsel %vm1858, %v2762, 0
    %v2768 = vsel %vm1858, %v2763, 0
    %2770 = vmatprep.subr.mxu0 0.0
    %2771 = vmatpush1.msra.mxu0 %v1683
    %2772 = vmatprep.subr.mxu0 0.0
    %2773 = vmatpush1.msra.mxu0 %v1687
    %2774 = vmatprep.subr.mxu0 0.0
    %2775 = vmatpush1.msra.mxu0 0.0
    %2776 = vmatprep.subr.mxu0 0.0
    %2777 = vmatpush1.msra.mxu0 0.0
    %2778 = vmatprep.subr.mxu0 0.0
    %2779 = vmatpush1.msra.mxu0 0.0
    %2780 = vmatprep.subr.mxu0 0.0
    %2781 = vmatpush1.msra.mxu0 0.0
    %2782 = vmatprep.subr.mxu0 0.0
    %2783 = vmatpush1.msra.mxu0 0.0
    %2784 = vmatprep.subr.mxu0 0.0
    %2785 = vmatpush1.msra.mxu0 0.0
    %2786 = vmatprep.subr.mxu0 0.0
    %2787 = vmatpush1.msra.mxu0 0.0
    %2788 = vmatprep.subr.mxu0 0.0
    %2789 = vmatpush1.msra.mxu0 0.0
    %2790 = vmatprep.subr.mxu0 0.0
    %2791 = vmatpush1.msra.mxu0 0.0
    %2792 = vmatprep.subr.mxu0 0.0
    %2793 = vmatpush1.msra.mxu0 0.0
    %2794 = vmatprep.subr.mxu0 0.0
    %2795 = vmatpush1.msra.mxu0 0.0
    %2796 = vmatprep.subr.mxu0 0.0
    %2797 = vmatpush1.msra.mxu0 0.0
    %2798 = vmatprep.subr.mxu0 0.0
    %2799 = vmatpush1.msra.mxu0 0.0
    %2800 = vmatprep.subr.mxu0 0.0
    %2801 = vmatpush1.msra.mxu0 0.0
    %2802 = vmatprep.subr.mxu0 0.0
    %2803 = vmatpush1.msra.mxu0 0.0
    %2804 = vmatprep.subr.mxu0 0.0
    %2805 = vmatpush1.msra.mxu0 0.0
    %2806 = vmatprep.subr.mxu0 0.0
    %2807 = vmatpush1.msra.mxu0 0.0
    %2808 = vmatprep.subr.mxu0 0.0
    %2809 = vmatpush1.msra.mxu0 0.0
    %2810 = vmatprep.subr.mxu0 0.0
    %2811 = vmatpush1.msra.mxu0 0.0
    %2812 = vmatprep.subr.mxu0 0.0
    %2813 = vmatpush1.msra.mxu0 0.0
    %2814 = vmatprep.subr.mxu0 0.0
    %2815 = vmatpush1.msra.mxu0 0.0
    %2816 = vmatprep.subr.mxu0 0.0
    %2817 = vmatpush1.msra.mxu0 0.0
    %2818 = vmatprep.subr.mxu0 0.0
    %2819 = vmatpush1.msra.mxu0 0.0
    %2820 = vmatprep.subr.mxu0 0.0
    %2821 = vmatpush1.msra.mxu0 0.0
    %2822 = vmatprep.subr.mxu0 0.0
    %2823 = vmatpush1.msra.mxu0 0.0
    %2824 = vmatprep.subr.mxu0 0.0
    %2825 = vmatpush1.msra.mxu0 0.0
    %2826 = vmatprep.subr.mxu0 0.0
    %2827 = vmatpush1.msra.mxu0 0.0
    %2828 = vmatprep.subr.mxu0 0.0
    %2829 = vmatpush1.msra.mxu0 0.0
    %2830 = vmatprep.subr.mxu0 0.0
    %2831 = vmatpush1.msra.mxu0 0.0
    %2832 = vmatprep.subr.mxu0 0.0
    %2833 = vmatpush1.msra.mxu0 0.0
    %2834 = vmatprep.mubr.f32.mxu0 0.0
    %2835 = vmatmul.mubr.f32.gmra.mrb[0].mxu0 %v2765
    %v2836 = vpop.f32.mrb[0].mxu0
    %v2837 = vadd.f32 0.0, %v2836
    %v2838 = vpop.f32.mrb[0].mxu0
    %2839 = vmatprep.mubr.f32.mxu0 0.0
    %2840 = vmatmul.mubr.f32.gmra.mrb[0].mxu0 %v2768
    %v2841 = vpop.f32.mrb[0].mxu0
    %v2842 = vadd.f32 0.0, %v2841
    %v2843 = vpop.f32.mrb[0].mxu0
    %2844 = vdwg.mxu0
    %v2846 = vsel %vm1858, %v2655, 0
    %v2849 = vsel %vm1858, %v2656, 0
    %2851 = vmatprep.subr.mxu0 0.0
    %2852 = vmatpush1.msra.mxu0 %v1681
    %2853 = vmatprep.subr.mxu0 0.0
    %2854 = vmatpush1.msra.mxu0 %v1685
    %2855 = vmatprep.subr.mxu0 0.0
    %2856 = vmatpush1.msra.mxu0 0.0
    %2857 = vmatprep.subr.mxu0 0.0
    %2858 = vmatpush1.msra.mxu0 0.0
    %2859 = vmatprep.subr.mxu0 0.0
    %2860 = vmatpush1.msra.mxu0 0.0
    %2861 = vmatprep.subr.mxu0 0.0
    %2862 = vmatpush1.msra.mxu0 0.0
    %2863 = vmatprep.subr.mxu0 0.0
    %2864 = vmatpush1.msra.mxu0 0.0
    %2865 = vmatprep.subr.mxu0 0.0
    %2866 = vmatpush1.msra.mxu0 0.0
    %2867 = vmatprep.subr.mxu0 0.0
    %2868 = vmatpush1.msra.mxu0 0.0
    %2869 = vmatprep.subr.mxu0 0.0
    %2870 = vmatpush1.msra.mxu0 0.0
    %2871 = vmatprep.subr.mxu0 0.0
    %2872 = vmatpush1.msra.mxu0 0.0
    %2873 = vmatprep.subr.mxu0 0.0
    %2874 = vmatpush1.msra.mxu0 0.0
    %2875 = vmatprep.subr.mxu0 0.0
    %2876 = vmatpush1.msra.mxu0 0.0
    %2877 = vmatprep.subr.mxu0 0.0
    %2878 = vmatpush1.msra.mxu0 0.0
    %2879 = vmatprep.subr.mxu0 0.0
    %2880 = vmatpush1.msra.mxu0 0.0
    %2881 = vmatprep.subr.mxu0 0.0
    %2882 = vmatpush1.msra.mxu0 0.0
    %2883 = vmatprep.subr.mxu0 0.0
    %2884 = vmatpush1.msra.mxu0 0.0
    %2885 = vmatprep.subr.mxu0 0.0
    %2886 = vmatpush1.msra.mxu0 0.0
    %2887 = vmatprep.subr.mxu0 0.0
    %2888 = vmatpush1.msra.mxu0 0.0
    %2889 = vmatprep.subr.mxu0 0.0
    %2890 = vmatpush1.msra.mxu0 0.0
    %2891 = vmatprep.subr.mxu0 0.0
    %2892 = vmatpush1.msra.mxu0 0.0
    %2893 = vmatprep.subr.mxu0 0.0
    %2894 = vmatpush1.msra.mxu0 0.0
    %2895 = vmatprep.subr.mxu0 0.0
    %2896 = vmatpush1.msra.mxu0 0.0
    %2897 = vmatprep.subr.mxu0 0.0
    %2898 = vmatpush1.msra.mxu0 0.0
    %2899 = vmatprep.subr.mxu0 0.0
    %2900 = vmatpush1.msra.mxu0 0.0
    %2901 = vmatprep.subr.mxu0 0.0
    %2902 = vmatpush1.msra.mxu0 0.0
    %2903 = vmatprep.subr.mxu0 0.0
    %2904 = vmatpush1.msra.mxu0 0.0
    %2905 = vmatprep.subr.mxu0 0.0
    %2906 = vmatpush1.msra.mxu0 0.0
    %2907 = vmatprep.subr.mxu0 0.0
    %2908 = vmatpush1.msra.mxu0 0.0
    %2909 = vmatprep.subr.mxu0 0.0
    %2910 = vmatpush1.msra.mxu0 0.0
    %2911 = vmatprep.subr.mxu0 0.0
    %2912 = vmatpush1.msra.mxu0 0.0
    %2913 = vmatprep.subr.mxu0 0.0
    %2914 = vmatpush1.msra.mxu0 0.0
    %2915 = vmatprep.mubr.f32.mxu0 0.0
    %2916 = vmatmul.mubr.f32.gmra.mrb[0].mxu0 %v2846
    %v2917 = vpop.f32.mrb[0].mxu0
    %v2918 = vadd.f32 %v2837, %v2917
    %v2919 = vpop.f32.mrb[0].mxu0
    %2920 = vmatprep.mubr.f32.mxu0 0.0
    %2921 = vmatmul.mubr.f32.gmra.mrb[0].mxu0 %v2849
    %v2922 = vpop.f32.mrb[0].mxu0
    %v2923 = vadd.f32 %v2842, %v2922
    %v2924 = vpop.f32.mrb[0].mxu0
    %2925 = vdwg.mxu0
    %v2926 = vmul.f32 %v2918, 0.5
    %v2927 = vmul.f32 %v2923, 0.5
    %v2928 = vadd.f32 %v2926, %v1767
    %v2929 = vadd.f32 %v2927, %v1771
    %v2930 = vpack.c.bf16 %v2159, %v2158
    %v2931 = vpack.c.bf16 %v2544, %v2543
    %v2932 = vpack.c.bf16 %v2929, %v2928
    %v2933 = vld [vmem:[#allocation10] sm:$0xf]
    %v2934 = vld [vmem:[#allocation10 + $0x4] sm:$0xf]
    %v2935 = vld [vmem:[#allocation10 + $0x8] sm:$0xf]
    %v2936 = vld [vmem:[#allocation10 + $0xc] sm:$0xf]
    %v2937 = vld [vmem:[#allocation10 + $0x10] sm:$0xf]
    %v2938 = vld [vmem:[#allocation10 + $0x14] sm:$0xf]
    %v2939 = vld [vmem:[#allocation10 + $0x18] sm:$0xf]
    %v2940 = vld [vmem:[#allocation10 + $0x1c] sm:$0xf]
    %v2941 = vld [vmem:[#allocation10 + $0x20] sm:$0xf]
    %v2942 = vld [vmem:[#allocation10 + $0x24] sm:$0xf]
    %v2943 = vld [vmem:[#allocation10 + $0x28] sm:$0xf]
    %v2944 = vld [vmem:[#allocation10 + $0x2c] sm:$0xf]
    %v2945 = vld [vmem:[#allocation10 + $0x30] sm:$0xf]
    %v2946 = vld [vmem:[#allocation10 + $0x34] sm:$0xf]
    %v2947 = vld [vmem:[#allocation10 + $0x38] sm:$0xf]
    %v2948 = vld [vmem:[#allocation10 + $0x3c] sm:$0xf]
    %v2965 = vunpack.c.l.b16 %v2933
    %v2966 = vunpack.c.l.b16 %v2934
    %v2967 = vunpack.c.l.b16 %v2935
    %v2968 = vunpack.c.l.b16 %v2936
    %v2969 = vunpack.c.l.b16 %v2937
    %v2970 = vunpack.c.l.b16 %v2938
    %v2971 = vunpack.c.l.b16 %v2939
    %v2972 = vunpack.c.l.b16 %v2940
    %v2973 = vunpack.c.l.b16 %v2941
    %v2974 = vunpack.c.l.b16 %v2942
    %v2975 = vunpack.c.l.b16 %v2943
    %v2976 = vunpack.c.l.b16 %v2944
    %v2977 = vunpack.c.l.b16 %v2945
    %v2978 = vunpack.c.l.b16 %v2946
    %v2979 = vunpack.c.l.b16 %v2947
    %v2980 = vunpack.c.l.b16 %v2948
    %v2981 = vpack.c.b16 %v2966, %v2965
    %v2982 = vpack.c.b16 %v2968, %v2967
    %v2983 = vpack.c.b16 %v2970, %v2969
    %v2984 = vpack.c.b16 %v2972, %v2971
    %v2985 = vpack.c.b16 %v2974, %v2973
    %v2986 = vpack.c.b16 %v2976, %v2975
    %v2987 = vpack.c.b16 %v2978, %v2977
    %v2988 = vpack.c.b16 %v2980, %v2979
    %2997 = vmatprep.subr.bf16.mxu0 0
    %2998 = vmatpush1.bf16.msra.mxu0 %v2981
    %2999 = vmatprep.subr.bf16.mxu0 0
    %3000 = vmatpush1.bf16.msra.mxu0 %v2982
    %3001 = vmatprep.subr.bf16.mxu0 0
    %3002 = vmatpush1.bf16.msra.mxu0 %v2983
    %3003 = vmatprep.subr.bf16.mxu0 0
    %3004 = vmatpush1.bf16.msra.mxu0 %v2984
    %3005 = vmatprep.subr.bf16.mxu0 0
    %3006 = vmatpush1.bf16.msra.mxu0 %v2985
    %3007 = vmatprep.subr.bf16.mxu0 0
    %3008 = vmatpush1.bf16.msra.mxu0 %v2986
    %3009 = vmatprep.subr.bf16.mxu0 0
    %3010 = vmatpush1.bf16.msra.mxu0 %v2987
    %3011 = vmatprep.subr.bf16.mxu0 0
    %3012 = vmatpush1.bf16.msra.mxu0 %v2988
    %3013 = vmatprep.subr.bf16.mxu0 0
    %3014 = vmatpush1.bf16.msra.mxu0 0
    %3015 = vmatprep.subr.bf16.mxu0 0
    %3016 = vmatpush1.bf16.msra.mxu0 0
    %3017 = vmatprep.subr.bf16.mxu0 0
    %3018 = vmatpush1.bf16.msra.mxu0 0
    %3019 = vmatprep.subr.bf16.mxu0 0
    %3020 = vmatpush1.bf16.msra.mxu0 0
    %3021 = vmatprep.subr.bf16.mxu0 0
    %3022 = vmatpush1.bf16.msra.mxu0 0
    %3023 = vmatprep.subr.bf16.mxu0 0
    %3024 = vmatpush1.bf16.msra.mxu0 0
    %3025 = vmatprep.subr.bf16.mxu0 0
    %3026 = vmatpush1.bf16.msra.mxu0 0
    %3027 = vmatprep.subr.bf16.mxu0 0
    %3028 = vmatpush1.bf16.msra.mxu0 0
    %3029 = vmatprep.mubr.bf16.mxu0 0
    %3030 = vmatmul.mubr.bf16.gmra.mrb[0].mxu0 %v2930
    %v3031 = vpop.f32.mrb[0].mxu0
    %v3032 = vadd.f32 %v1769, %v3031
    %v3033 = vpop.f32.mrb[0].mxu0
    %v3034 = vpop.f32.mrb[0].mxu0
    %v3035 = vadd.f32 %v1773, %v3034
    %v3036 = vpop.f32.mrb[0].mxu0
    %3037 = vmatprep.mubr.bf16.mxu0 0
    %3038 = vmatmul.mubr.bf16.gmra.mrb[0].mxu0 %v2931
    %v3039 = vpop.f32.mrb[0].mxu0
    %v3040 = vadd.f32 %v1769, %v3039
    %v3041 = vpop.f32.mrb[0].mxu0
    %v3042 = vpop.f32.mrb[0].mxu0
    %v3043 = vadd.f32 %v1773, %v3042
    %v3044 = vpop.f32.mrb[0].mxu0
    %3045 = vmatprep.mubr.bf16.mxu0 0
    %3046 = vmatmul.mubr.bf16.gmra.mrb[0].mxu0 %v2932
    %v3047 = vpop.f32.mrb[0].mxu0
    %v3048 = vadd.f32 %v1769, %v3047
    %v3049 = vpop.f32.mrb[0].mxu0
    %v3050 = vpop.f32.mrb[0].mxu0
    %v3051 = vadd.f32 %v1773, %v3050
    %v3052 = vpop.f32.mrb[0].mxu0
    %3053 = vdwg.mxu0
    %v3054 = vxor.u32 %v3032, 2147483648
    %v3055 = vxor.u32 %v3035, 2147483648
    %v3056 = vxor.u32 %v3040, 2147483648
    %v3057 = vxor.u32 %v3043, 2147483648
    %v3058 = vxor.u32 %v3048, 2147483648
    %v3059 = vxor.u32 %v3051, 2147483648
    %v3060 = vmul.f32 %v3054, 1.442695
    %v3061 = vpow.pop %v3060
    %v3062 = vmul.f32 %v3055, 1.442695
    %v3063 = vpow.pop %v3062
    %v3064 = vmul.f32 %v3056, 1.442695
    %v3065 = vpow.pop %v3064
    %v3066 = vmul.f32 %v3057, 1.442695
    %v3067 = vpow.pop %v3066
    %v3068 = vmul.f32 %v3058, 1.442695
    %v3069 = vpow.pop %v3068
    %v3070 = vmul.f32 %v3059, 1.442695
    %v3071 = vpow.pop %v3070
    %v3072 = vadd.f32 %v3061, 1.0
    %v3073 = vadd.f32 %v3063, 1.0
    %v3074 = vadd.f32 %v3065, 1.0
    %v3075 = vadd.f32 %v3067, 1.0
    %v3076 = vadd.f32 %v3069, 1.0
    %v3077 = vadd.f32 %v3071, 1.0
    %v3078 = vrcp.pop %v3072
    %v3079 = vmul.f32 1.0, %v3078
    %v3080 = vrcp.pop %v3073
    %v3081 = vmul.f32 1.0, %v3080
    %v3082 = vrcp.pop %v3074
    %v3083 = vmul.f32 1.0, %v3082
    %v3084 = vrcp.pop %v3075
    %v3085 = vmul.f32 1.0, %v3084
    %v3086 = vrcp.pop %v3076
    %v3087 = vmul.f32 1.0, %v3086
    %v3088 = vrcp.pop %v3077
    %v3089 = vmul.f32 1.0, %v3088
    %v3090 = vtanh.pop %v2158
    %v3091 = vtanh.pop %v2159
    %v3092 = vtanh.pop %v2543
    %v3093 = vtanh.pop %v2544
    %v3094 = vtanh.pop %v2928
    %v3095 = vtanh.pop %v2929
    %v3096 = vmul.f32 %v3090, %v3079
    %v3097 = vmul.f32 %v3091, %v3081
    %v3098 = vmul.f32 %v3092, %v3083
    %v3099 = vmul.f32 %v3093, %v3085
    %v3100 = vmul.f32 %v3094, %v3087
    %v3101 = vmul.f32 %v3095, %v3089
    %v3102 = vsub.f32 1.0, %v3079
    %v3103 = vsub.f32 1.0, %v3081
    %v3104 = vsub.f32 1.0, %v3083
    %v3105 = vsub.f32 1.0, %v3085
    %v3106 = vsub.f32 1.0, %v3087
    %v3107 = vsub.f32 1.0, %v3089
    %v3108 = vmul.f32 %v127, %v3102
    %v3109 = vmul.f32 %v128, %v3103
    %v3110 = vmul.f32 %v127, %v3104
    %v3111 = vmul.f32 %v128, %v3105
    %v3112 = vmul.f32 %v127, %v3106
    %v3113 = vmul.f32 %v128, %v3107
    %v3114 = vadd.f32 %v3096, %v3108
    %v3115 = vadd.f32 %v3097, %v3109
    %v3116 = vadd.f32 %v3098, %v3110
    %v3117 = vadd.f32 %v3099, %v3111
    %v3118 = vadd.f32 %v3100, %v3112
    %v3119 = vadd.f32 %v3101, %v3113
    %v3120 = vld [vmem:[#allocation11] sm:$0xff]
    %v3121 = vld [vmem:[#allocation11 + $0x8] sm:$0xff]
    %v3122 = vld [vmem:[#allocation11 + $0x10] sm:$0xff]
    %v3123 = vld [vmem:[#allocation11 + $0x18] sm:$0xff]
    %v3124 = vld [vmem:[#allocation11 + $0x20] sm:$0xff]
    %v3125 = vld [vmem:[#allocation11 + $0x28] sm:$0xff]
    %v3126 = vld [vmem:[#allocation11 + $0x30] sm:$0xff]
    %v3127 = vld [vmem:[#allocation11 + $0x38] sm:$0xff]
    %v3128 = vld [vmem:[#allocation11 + $0x40] sm:$0xff]
    %v3129 = vld [vmem:[#allocation11 + $0x48] sm:$0xff]
    %v3130 = vld [vmem:[#allocation11 + $0x50] sm:$0xff]
    %v3131 = vld [vmem:[#allocation11 + $0x58] sm:$0xff]
    %v3132 = vld [vmem:[#allocation11 + $0x60] sm:$0xff]
    %v3133 = vld [vmem:[#allocation11 + $0x68] sm:$0xff]
    %v3134 = vld [vmem:[#allocation11 + $0x70] sm:$0xff]
    %v3135 = vld [vmem:[#allocation11 + $0x78] sm:$0xff]
    %v3136 = vld [vmem:[#allocation11 + $0x80] sm:$0xff]
    %v3137 = vld [vmem:[#allocation11 + $0x88] sm:$0xff]
    %v3138 = vld [vmem:[#allocation11 + $0x90] sm:$0xff]
    %v3139 = vld [vmem:[#allocation11 + $0x98] sm:$0xff]
    %v3140 = vld [vmem:[#allocation11 + $0xa0] sm:$0xff]
    %v3141 = vld [vmem:[#allocation11 + $0xa8] sm:$0xff]
    %v3142 = vld [vmem:[#allocation11 + $0xb0] sm:$0xff]
    %v3143 = vld [vmem:[#allocation11 + $0xb8] sm:$0xff]
    %v3144 = vld [vmem:[#allocation11 + $0xc0] sm:$0xff]
    %v3145 = vld [vmem:[#allocation11 + $0xc8] sm:$0xff]
    %v3146 = vld [vmem:[#allocation11 + $0xd0] sm:$0xff]
    %v3147 = vld [vmem:[#allocation11 + $0xd8] sm:$0xff]
    %v3148 = vld [vmem:[#allocation11 + $0xe0] sm:$0xff]
    %v3149 = vld [vmem:[#allocation11 + $0xe8] sm:$0xff]
    %v3150 = vld [vmem:[#allocation11 + $0xf0] sm:$0xff]
    %v3151 = vld [vmem:[#allocation11 + $0xf8] sm:$0xff]
    %v3152 = vld [vmem:[#allocation11 + $0x100] sm:$0xff]
    %v3153 = vld [vmem:[#allocation11 + $0x108] sm:$0xff]
    %v3154 = vld [vmem:[#allocation11 + $0x110] sm:$0xff]
    %v3155 = vld [vmem:[#allocation11 + $0x118] sm:$0xff]
    %v3156 = vld [vmem:[#allocation11 + $0x120] sm:$0xff]
    %v3157 = vld [vmem:[#allocation11 + $0x128] sm:$0xff]
    %v3158 = vld [vmem:[#allocation11 + $0x130] sm:$0xff]
    %v3159 = vld [vmem:[#allocation11 + $0x138] sm:$0xff]
    %v3160 = vld [vmem:[#allocation11 + $0x140] sm:$0xff]
    %v3161 = vld [vmem:[#allocation11 + $0x148] sm:$0xff]
    %v3162 = vld [vmem:[#allocation11 + $0x150] sm:$0xff]
    %v3163 = vld [vmem:[#allocation11 + $0x158] sm:$0xff]
    %v3164 = vld [vmem:[#allocation11 + $0x160] sm:$0xff]
    %v3165 = vld [vmem:[#allocation11 + $0x168] sm:$0xff]
    %v3166 = vld [vmem:[#allocation11 + $0x170] sm:$0xff]
    %v3167 = vld [vmem:[#allocation11 + $0x178] sm:$0xff]
    %v3168 = vld [vmem:[#allocation11 + $0x180] sm:$0xff]
    %v3169 = vld [vmem:[#allocation11 + $0x188] sm:$0xff]
    %v3170 = vld [vmem:[#allocation11 + $0x190] sm:$0xff]
    %v3171 = vld [vmem:[#allocation11 + $0x198] sm:$0xff]
    %v3172 = vld [vmem:[#allocation11 + $0x1a0] sm:$0xff]
    %v3173 = vld [vmem:[#allocation11 + $0x1a8] sm:$0xff]
    %v3174 = vld [vmem:[#allocation11 + $0x1b0] sm:$0xff]
    %v3175 = vld [vmem:[#allocation11 + $0x1b8] sm:$0xff]
    %v3176 = vld [vmem:[#allocation11 + $0x1c0] sm:$0xff]
    %v3177 = vld [vmem:[#allocation11 + $0x1c8] sm:$0xff]
    %v3178 = vld [vmem:[#allocation11 + $0x1d0] sm:$0xff]
    %v3179 = vld [vmem:[#allocation11 + $0x1d8] sm:$0xff]
    %v3180 = vld [vmem:[#allocation11 + $0x1e0] sm:$0xff]
    %v3181 = vld [vmem:[#allocation11 + $0x1e8] sm:$0xff]
    %v3182 = vld [vmem:[#allocation11 + $0x1f0] sm:$0xff]
    %v3183 = vld [vmem:[#allocation11 + $0x1f8] sm:$0xff]
    %v3184 = vld [vmem:[#allocation11 + $0x200] sm:$0xff]
    %v3185 = vld [vmem:[#allocation11 + $0x208] sm:$0xff]
    %v3186 = vld [vmem:[#allocation11 + $0x210] sm:$0xff]
    %v3187 = vld [vmem:[#allocation11 + $0x218] sm:$0xff]
    %v3188 = vld [vmem:[#allocation11 + $0x220] sm:$0xff]
    %v3189 = vld [vmem:[#allocation11 + $0x228] sm:$0xff]
    %v3190 = vld [vmem:[#allocation11 + $0x230] sm:$0xff]
    %v3191 = vld [vmem:[#allocation11 + $0x238] sm:$0xff]
    %v3192 = vld [vmem:[#allocation11 + $0x240] sm:$0xff]
    %v3193 = vld [vmem:[#allocation11 + $0x248] sm:$0xff]
    %v3194 = vld [vmem:[#allocation11 + $0x250] sm:$0xff]
    %v3195 = vld [vmem:[#allocation11 + $0x258] sm:$0xff]
    %v3196 = vld [vmem:[#allocation11 + $0x260] sm:$0xff]
    %v3197 = vld [vmem:[#allocation11 + $0x268] sm:$0xff]
    %v3198 = vld [vmem:[#allocation11 + $0x270] sm:$0xff]
    %v3199 = vld [vmem:[#allocation11 + $0x278] sm:$0xff]
    %v3200 = vld [vmem:[#allocation11 + $0x280] sm:$0xff]
    %v3201 = vld [vmem:[#allocation11 + $0x288] sm:$0xff]
    %v3202 = vld [vmem:[#allocation11 + $0x290] sm:$0xff]
    %v3203 = vld [vmem:[#allocation11 + $0x298] sm:$0xff]
    %v3204 = vld [vmem:[#allocation11 + $0x2a0] sm:$0xff]
    %v3205 = vld [vmem:[#allocation11 + $0x2a8] sm:$0xff]
    %v3206 = vld [vmem:[#allocation11 + $0x2b0] sm:$0xff]
    %v3207 = vld [vmem:[#allocation11 + $0x2b8] sm:$0xff]
    %v3208 = vld [vmem:[#allocation11 + $0x2c0] sm:$0xff]
    %v3209 = vld [vmem:[#allocation11 + $0x2c8] sm:$0xff]
    %v3210 = vld [vmem:[#allocation11 + $0x2d0] sm:$0xff]
    %v3211 = vld [vmem:[#allocation11 + $0x2d8] sm:$0xff]
    %v3212 = vld [vmem:[#allocation11 + $0x2e0] sm:$0xff]
    %v3213 = vld [vmem:[#allocation11 + $0x2e8] sm:$0xff]
    %v3214 = vld [vmem:[#allocation11 + $0x2f0] sm:$0xff]
    %v3215 = vld [vmem:[#allocation11 + $0x2f8] sm:$0xff]
    %v3216 = vld [vmem:[#allocation11 + $0x300] sm:$0xff]
    %v3217 = vld [vmem:[#allocation11 + $0x308] sm:$0xff]
    %v3218 = vld [vmem:[#allocation11 + $0x310] sm:$0xff]
    %v3219 = vld [vmem:[#allocation11 + $0x318] sm:$0xff]
    %v3220 = vld [vmem:[#allocation11 + $0x320] sm:$0xff]
    %v3221 = vld [vmem:[#allocation11 + $0x328] sm:$0xff]
    %v3222 = vld [vmem:[#allocation11 + $0x330] sm:$0xff]
    %v3223 = vld [vmem:[#allocation11 + $0x338] sm:$0xff]
    %v3224 = vld [vmem:[#allocation11 + $0x340] sm:$0xff]
    %v3225 = vld [vmem:[#allocation11 + $0x348] sm:$0xff]
    %v3226 = vld [vmem:[#allocation11 + $0x350] sm:$0xff]
    %v3227 = vld [vmem:[#allocation11 + $0x358] sm:$0xff]
    %v3228 = vld [vmem:[#allocation11 + $0x360] sm:$0xff]
    %v3229 = vld [vmem:[#allocation11 + $0x368] sm:$0xff]
    %v3230 = vld [vmem:[#allocation11 + $0x370] sm:$0xff]
    %v3231 = vld [vmem:[#allocation11 + $0x378] sm:$0xff]
    %v3232 = vld [vmem:[#allocation11 + $0x380] sm:$0xff]
    %v3233 = vld [vmem:[#allocation11 + $0x388] sm:$0xff]
    %v3234 = vld [vmem:[#allocation11 + $0x390] sm:$0xff]
    %v3235 = vld [vmem:[#allocation11 + $0x398] sm:$0xff]
    %v3236 = vld [vmem:[#allocation11 + $0x3a0] sm:$0xff]
    %v3237 = vld [vmem:[#allocation11 + $0x3a8] sm:$0xff]
    %v3238 = vld [vmem:[#allocation11 + $0x3b0] sm:$0xff]
    %v3239 = vld [vmem:[#allocation11 + $0x3b8] sm:$0xff]
    %v3240 = vld [vmem:[#allocation11 + $0x3c0] sm:$0xff]
    %v3241 = vld [vmem:[#allocation11 + $0x3c8] sm:$0xff]
    %v3242 = vld [vmem:[#allocation11 + $0x3d0] sm:$0xff]
    %v3243 = vld [vmem:[#allocation11 + $0x3d8] sm:$0xff]
    %v3244 = vld [vmem:[#allocation11 + $0x3e0] sm:$0xff]
    %v3245 = vld [vmem:[#allocation11 + $0x3e8] sm:$0xff]
    %v3246 = vld [vmem:[#allocation11 + $0x3f0] sm:$0xff]
    %v3247 = vld [vmem:[#allocation11 + $0x3f8] sm:$0xff]
    %v3248 = vld [vmem:[#allocation11 + $0x400] sm:$0xff]
    %v3249 = vld [vmem:[#allocation11 + $0x408] sm:$0xff]
    %v3250 = vld [vmem:[#allocation11 + $0x410] sm:$0xff]
    %v3251 = vld [vmem:[#allocation11 + $0x418] sm:$0xff]
    %v3252 = vld [vmem:[#allocation11 + $0x420] sm:$0xff]
    %v3253 = vld [vmem:[#allocation11 + $0x428] sm:$0xff]
    %v3254 = vld [vmem:[#allocation11 + $0x430] sm:$0xff]
    %v3255 = vld [vmem:[#allocation11 + $0x438] sm:$0xff]
    %v3256 = vld [vmem:[#allocation11 + $0x440] sm:$0xff]
    %v3257 = vld [vmem:[#allocation11 + $0x448] sm:$0xff]
    %v3258 = vld [vmem:[#allocation11 + $0x450] sm:$0xff]
    %v3259 = vld [vmem:[#allocation11 + $0x458] sm:$0xff]
    %v3260 = vld [vmem:[#allocation11 + $0x460] sm:$0xff]
    %v3261 = vld [vmem:[#allocation11 + $0x468] sm:$0xff]
    %v3262 = vld [vmem:[#allocation11 + $0x470] sm:$0xff]
    %v3263 = vld [vmem:[#allocation11 + $0x478] sm:$0xff]
    %3264 = vmatprep.subr.mxu0 %v3121
    %3265 = vmatpush1.msra.mxu0 %v3120
    %3266 = vmatprep.subr.mxu0 %v3124
    %3267 = vmatpush1.msra.mxu0 %v3123
    %3268 = vmatprep.subr.mxu0 %v3127
    %3269 = vmatpush1.msra.mxu0 %v3126
    %3270 = vmatprep.subr.mxu0 %v3130
    %3271 = vmatpush1.msra.mxu0 %v3129
    %3272 = vmatprep.subr.mxu0 %v3133
    %3273 = vmatpush1.msra.mxu0 %v3132
    %3274 = vmatprep.subr.mxu0 %v3136
    %3275 = vmatpush1.msra.mxu0 %v3135
    %3276 = vmatprep.subr.mxu0 %v3139
    %3277 = vmatpush1.msra.mxu0 %v3138
    %3278 = vmatprep.subr.mxu0 %v3142
    %3279 = vmatpush1.msra.mxu0 %v3141
    %3280 = vmatprep.subr.mxu0 %v3145
    %3281 = vmatpush1.msra.mxu0 %v3144
    %3282 = vmatprep.subr.mxu0 %v3148
    %3283 = vmatpush1.msra.mxu0 %v3147
    %3284 = vmatprep.subr.mxu0 %v3151
    %3285 = vmatpush1.msra.mxu0 %v3150
    %3286 = vmatprep.subr.mxu0 %v3154
    %3287 = vmatpush1.msra.mxu0 %v3153
    %3288 = vmatprep.subr.mxu0 %v3157
    %3289 = vmatpush1.msra.mxu0 %v3156
    %3290 = vmatprep.subr.mxu0 %v3160
    %3291 = vmatpush1.msra.mxu0 %v3159
    %3292 = vmatprep.subr.mxu0 %v3163
    %3293 = vmatpush1.msra.mxu0 %v3162
    %3294 = vmatprep.subr.mxu0 %v3166
    %3295 = vmatpush1.msra.mxu0 %v3165
    %3296 = vmatprep.subr.mxu0 %v3169
    %3297 = vmatpush1.msra.mxu0 %v3168
    %3298 = vmatprep.subr.mxu0 %v3172
    %3299 = vmatpush1.msra.mxu0 %v3171
    %3300 = vmatprep.subr.mxu0 %v3175
    %3301 = vmatpush1.msra.mxu0 %v3174
    %3302 = vmatprep.subr.mxu0 %v3178
    %3303 = vmatpush1.msra.mxu0 %v3177
    %3304 = vmatprep.subr.mxu0 %v3181
    %3305 = vmatpush1.msra.mxu0 %v3180
    %3306 = vmatprep.subr.mxu0 %v3184
    %3307 = vmatpush1.msra.mxu0 %v3183
    %3308 = vmatprep.subr.mxu0 %v3187
    %3309 = vmatpush1.msra.mxu0 %v3186
    %3310 = vmatprep.subr.mxu0 %v3190
    %3311 = vmatpush1.msra.mxu0 %v3189
    %3312 = vmatprep.subr.mxu0 %v3193
    %3313 = vmatpush1.msra.mxu0 %v3192
    %3314 = vmatprep.subr.mxu0 %v3196
    %3315 = vmatpush1.msra.mxu0 %v3195
    %3316 = vmatprep.subr.mxu0 %v3199
    %3317 = vmatpush1.msra.mxu0 %v3198
    %3318 = vmatprep.subr.mxu0 %v3202
    %3319 = vmatpush1.msra.mxu0 %v3201
    %3320 = vmatprep.subr.mxu0 %v3205
    %3321 = vmatpush1.msra.mxu0 %v3204
    %3322 = vmatprep.subr.mxu0 %v3208
    %3323 = vmatpush1.msra.mxu0 %v3207
    %3324 = vmatprep.subr.mxu0 %v3211
    %3325 = vmatpush1.msra.mxu0 %v3210
    %3326 = vmatprep.subr.mxu0 %v3214
    %3327 = vmatpush1.msra.mxu0 %v3213
    %3328 = vmatprep.mubr.f32.mxu0 %v3116
    %3329 = vmatmul.mubr.f32.gmra.mrb[0].mxu0 %v3114
    %v3330 = vpop.f32.mrb[0].mxu0
    %v3331 = vadd.f32 0.0, %v3330
    %v3332 = vpop.f32.mrb[0].mxu0
    %v3333 = vadd.f32 0.0, %v3332
    %3334 = vmatprep.mubr.f32.mxu0 %v3117
    %3335 = vmatmul.mubr.f32.gmra.mrb[0].mxu0 %v3115
    %v3336 = vpop.f32.mrb[0].mxu0
    %v3337 = vadd.f32 0.0, %v3336
    %v3338 = vpop.f32.mrb[0].mxu0
    %v3339 = vadd.f32 0.0, %v3338
    %3340 = vdwg.mxu0
    %3341 = vmatprep.subr.mxu0 %v3217
    %3342 = vmatpush1.msra.mxu0 %v3216
    %3343 = vmatprep.subr.mxu0 %v3220
    %3344 = vmatpush1.msra.mxu0 %v3219
    %3345 = vmatprep.subr.mxu0 %v3223
    %3346 = vmatpush1.msra.mxu0 %v3222
    %3347 = vmatprep.subr.mxu0 %v3226
    %3348 = vmatpush1.msra.mxu0 %v3225
    %3349 = vmatprep.subr.mxu0 %v3229
    %3350 = vmatpush1.msra.mxu0 %v3228
    %3351 = vmatprep.subr.mxu0 %v3232
    %3352 = vmatpush1.msra.mxu0 %v3231
    %3353 = vmatprep.subr.mxu0 %v3235
    %3354 = vmatpush1.msra.mxu0 %v3234
    %3355 = vmatprep.subr.mxu0 %v3238
    %3356 = vmatpush1.msra.mxu0 %v3237
    %3357 = vmatprep.subr.mxu0 %v3241
    %3358 = vmatpush1.msra.mxu0 %v3240
    %3359 = vmatprep.subr.mxu0 %v3244
    %3360 = vmatpush1.msra.mxu0 %v3243
    %3361 = vmatprep.subr.mxu0 %v3247
    %3362 = vmatpush1.msra.mxu0 %v3246
    %3363 = vmatprep.subr.mxu0 %v3250
    %3364 = vmatpush1.msra.mxu0 %v3249
    %3365 = vmatprep.subr.mxu0 %v3253
    %3366 = vmatpush1.msra.mxu0 %v3252
    %3367 = vmatprep.subr.mxu0 %v3256
    %3368 = vmatpush1.msra.mxu0 %v3255
    %3369 = vmatprep.subr.mxu0 %v3259
    %3370 = vmatpush1.msra.mxu0 %v3258
    %3371 = vmatprep.subr.mxu0 %v3262
    %3372 = vmatpush1.msra.mxu0 %v3261
    %3373 = vmatprep.subr.mxu0 0.0
    %3374 = vmatpush1.msra.mxu0 0.0
    %3375 = vmatprep.subr.mxu0 0.0
    %3376 = vmatpush1.msra.mxu0 0.0
    %3377 = vmatprep.subr.mxu0 0.0
    %3378 = vmatpush1.msra.mxu0 0.0
    %3379 = vmatprep.subr.mxu0 0.0
    %3380 = vmatpush1.msra.mxu0 0.0
    %3381 = vmatprep.subr.mxu0 0.0
    %3382 = vmatpush1.msra.mxu0 0.0
    %3383 = vmatprep.subr.mxu0 0.0
    %3384 = vmatpush1.msra.mxu0 0.0
    %3385 = vmatprep.subr.mxu0 0.0
    %3386 = vmatpush1.msra.mxu0 0.0
    %3387 = vmatprep.subr.mxu0 0.0
    %3388 = vmatpush1.msra.mxu0 0.0
    %3389 = vmatprep.subr.mxu0 0.0
    %3390 = vmatpush1.msra.mxu0 0.0
    %3391 = vmatprep.subr.mxu0 0.0
    %3392 = vmatpush1.msra.mxu0 0.0
    %3393 = vmatprep.subr.mxu0 0.0
    %3394 = vmatpush1.msra.mxu0 0.0
    %3395 = vmatprep.subr.mxu0 0.0
    %3396 = vmatpush1.msra.mxu0 0.0
    %3397 = vmatprep.subr.mxu0 0.0
    %3398 = vmatpush1.msra.mxu0 0.0
    %3399 = vmatprep.subr.mxu0 0.0
    %3400 = vmatpush1.msra.mxu0 0.0
    %3401 = vmatprep.subr.mxu0 0.0
    %3402 = vmatpush1.msra.mxu0 0.0
    %3403 = vmatprep.subr.mxu0 0.0
    %3404 = vmatpush1.msra.mxu0 0.0
    %3405 = vmatprep.mubr.f32.mxu0 0.0
    %3406 = vmatmul.mubr.f32.gmra.mrb[0].mxu0 %v3118
    %v3407 = vpop.f32.mrb[0].mxu0
    %v3408 = vadd.f32 %v3331, %v3407
    %v3409 = vpop.f32.mrb[0].mxu0
    %v3410 = vadd.f32 %v3333, %v3409
    %3411 = vmatprep.mubr.f32.mxu0 0.0
    %3412 = vmatmul.mubr.f32.gmra.mrb[0].mxu0 %v3119
    %v3413 = vpop.f32.mrb[0].mxu0
    %v3414 = vadd.f32 %v3337, %v3413
    %v3415 = vpop.f32.mrb[0].mxu0
    %v3416 = vadd.f32 %v3339, %v3415
    %3417 = vdwg.mxu0
    %3418 = vmatprep.subr.mxu0 0.0
    %3419 = vmatpush1.msra.mxu0 %v3122
    %3420 = vmatprep.subr.mxu0 0.0
    %3421 = vmatpush1.msra.mxu0 %v3125
    %3422 = vmatprep.subr.mxu0 0.0
    %3423 = vmatpush1.msra.mxu0 %v3128
    %3424 = vmatprep.subr.mxu0 0.0
    %3425 = vmatpush1.msra.mxu0 %v3131
    %3426 = vmatprep.subr.mxu0 0.0
    %3427 = vmatpush1.msra.mxu0 %v3134
    %3428 = vmatprep.subr.mxu0 0.0
    %3429 = vmatpush1.msra.mxu0 %v3137
    %3430 = vmatprep.subr.mxu0 0.0
    %3431 = vmatpush1.msra.mxu0 %v3140
    %3432 = vmatprep.subr.mxu0 0.0
    %3433 = vmatpush1.msra.mxu0 %v3143
    %3434 = vmatprep.subr.mxu0 0.0
    %3435 = vmatpush1.msra.mxu0 %v3146
    %3436 = vmatprep.subr.mxu0 0.0
    %3437 = vmatpush1.msra.mxu0 %v3149
    %3438 = vmatprep.subr.mxu0 0.0
    %3439 = vmatpush1.msra.mxu0 %v3152
    %3440 = vmatprep.subr.mxu0 0.0
    %3441 = vmatpush1.msra.mxu0 %v3155
    %3442 = vmatprep.subr.mxu0 0.0
    %3443 = vmatpush1.msra.mxu0 %v3158
    %3444 = vmatprep.subr.mxu0 0.0
    %3445 = vmatpush1.msra.mxu0 %v3161
    %3446 = vmatprep.subr.mxu0 0.0
    %3447 = vmatpush1.msra.mxu0 %v3164
    %3448 = vmatprep.subr.mxu0 0.0
    %3449 = vmatpush1.msra.mxu0 %v3167
    %3450 = vmatprep.subr.mxu0 0.0
    %3451 = vmatpush1.msra.mxu0 %v3170
    %3452 = vmatprep.subr.mxu0 0.0
    %3453 = vmatpush1.msra.mxu0 %v3173
    %3454 = vmatprep.subr.mxu0 0.0
    %3455 = vmatpush1.msra.mxu0 %v3176
    %3456 = vmatprep.subr.mxu0 0.0
    %3457 = vmatpush1.msra.mxu0 %v3179
    %3458 = vmatprep.subr.mxu0 0.0
    %3459 = vmatpush1.msra.mxu0 %v3182
    %3460 = vmatprep.subr.mxu0 0.0
    %3461 = vmatpush1.msra.mxu0 %v3185
    %3462 = vmatprep.subr.mxu0 0.0
    %3463 = vmatpush1.msra.mxu0 %v3188
    %3464 = vmatprep.subr.mxu0 0.0
    %3465 = vmatpush1.msra.mxu0 %v3191
    %3466 = vmatprep.subr.mxu0 0.0
    %3467 = vmatpush1.msra.mxu0 %v3194
    %3468 = vmatprep.subr.mxu0 0.0
    %3469 = vmatpush1.msra.mxu0 %v3197
    %3470 = vmatprep.subr.mxu0 0.0
    %3471 = vmatpush1.msra.mxu0 %v3200
    %3472 = vmatprep.subr.mxu0 0.0
    %3473 = vmatpush1.msra.mxu0 %v3203
    %3474 = vmatprep.subr.mxu0 0.0
    %3475 = vmatpush1.msra.mxu0 %v3206
    %3476 = vmatprep.subr.mxu0 0.0
    %3477 = vmatpush1.msra.mxu0 %v3209
    %3478 = vmatprep.subr.mxu0 0.0
    %3479 = vmatpush1.msra.mxu0 %v3212
    %3480 = vmatprep.subr.mxu0 0.0
    %3481 = vmatpush1.msra.mxu0 %v3215
    %3482 = vmatprep.mubr.f32.mxu0 %v3116
    %3483 = vmatmul.mubr.f32.gmra.mrb[0].mxu0 %v3114
    %v3484 = vpop.f32.mrb[0].mxu0
    %v3485 = vadd.f32 0.0, %v3484
    %v3486 = vpop.f32.mrb[0].mxu0
    %3487 = vmatprep.mubr.f32.mxu0 %v3117
    %3488 = vmatmul.mubr.f32.gmra.mrb[0].mxu0 %v3115
    %v3489 = vpop.f32.mrb[0].mxu0
    %v3490 = vadd.f32 0.0, %v3489
    %v3491 = vpop.f32.mrb[0].mxu0
    %3492 = vdwg.mxu0
    %3493 = vmatprep.subr.mxu0 0.0
    %3494 = vmatpush1.msra.mxu0 %v3218
    %3495 = vmatprep.subr.mxu0 0.0
    %3496 = vmatpush1.msra.mxu0 %v3221
    %3497 = vmatprep.subr.mxu0 0.0
    %3498 = vmatpush1.msra.mxu0 %v3224
    %3499 = vmatprep.subr.mxu0 0.0
    %3500 = vmatpush1.msra.mxu0 %v3227
    %3501 = vmatprep.subr.mxu0 0.0
    %3502 = vmatpush1.msra.mxu0 %v3230
    %3503 = vmatprep.subr.mxu0 0.0
    %3504 = vmatpush1.msra.mxu0 %v3233
    %3505 = vmatprep.subr.mxu0 0.0
    %3506 = vmatpush1.msra.mxu0 %v3236
    %3507 = vmatprep.subr.mxu0 0.0
    %3508 = vmatpush1.msra.mxu0 %v3239
    %3509 = vmatprep.subr.mxu0 0.0
    %3510 = vmatpush1.msra.mxu0 %v3242
    %3511 = vmatprep.subr.mxu0 0.0
    %3512 = vmatpush1.msra.mxu0 %v3245
    %3513 = vmatprep.subr.mxu0 0.0
    %3514 = vmatpush1.msra.mxu0 %v3248
    %3515 = vmatprep.subr.mxu0 0.0
    %3516 = vmatpush1.msra.mxu0 %v3251
    %3517 = vmatprep.subr.mxu0 0.0
    %3518 = vmatpush1.msra.mxu0 %v3254
    %3519 = vmatprep.subr.mxu0 0.0
    %3520 = vmatpush1.msra.mxu0 %v3257
    %3521 = vmatprep.subr.mxu0 0.0
    %3522 = vmatpush1.msra.mxu0 %v3260
    %3523 = vmatprep.subr.mxu0 0.0
    %3524 = vmatpush1.msra.mxu0 %v3263
    %3525 = vmatprep.subr.mxu0 0.0
    %3526 = vmatpush1.msra.mxu0 0.0
    %3527 = vmatprep.subr.mxu0 0.0
    %3528 = vmatpush1.msra.mxu0 0.0
    %3529 = vmatprep.subr.mxu0 0.0
    %3530 = vmatpush1.msra.mxu0 0.0
    %3531 = vmatprep.subr.mxu0 0.0
    %3532 = vmatpush1.msra.mxu0 0.0
    %3533 = vmatprep.subr.mxu0 0.0
    %3534 = vmatpush1.msra.mxu0 0.0
    %3535 = vmatprep.subr.mxu0 0.0
    %3536 = vmatpush1.msra.mxu0 0.0
    %3537 = vmatprep.subr.mxu0 0.0
    %3538 = vmatpush1.msra.mxu0 0.0
    %3539 = vmatprep.subr.mxu0 0.0
    %3540 = vmatpush1.msra.mxu0 0.0
    %3541 = vmatprep.subr.mxu0 0.0
    %3542 = vmatpush1.msra.mxu0 0.0
    %3543 = vmatprep.subr.mxu0 0.0
    %3544 = vmatpush1.msra.mxu0 0.0
    %3545 = vmatprep.subr.mxu0 0.0
    %3546 = vmatpush1.msra.mxu0 0.0
    %3547 = vmatprep.subr.mxu0 0.0
    %3548 = vmatpush1.msra.mxu0 0.0
    %3549 = vmatprep.subr.mxu0 0.0
    %3550 = vmatpush1.msra.mxu0 0.0
    %3551 = vmatprep.subr.mxu0 0.0
    %3552 = vmatpush1.msra.mxu0 0.0
    %3553 = vmatprep.subr.mxu0 0.0
    %3554 = vmatpush1.msra.mxu0 0.0
    %3555 = vmatprep.subr.mxu0 0.0
    %3556 = vmatpush1.msra.mxu0 0.0
    %3557 = vmatprep.mubr.f32.mxu0 0.0
    %3558 = vmatmul.mubr.f32.gmra.mrb[0].mxu0 %v3118
    %v3559 = vpop.f32.mrb[0].mxu0
    %v3560 = vadd.f32 %v3485, %v3559
    %v3561 = vpop.f32.mrb[0].mxu0
    %3562 = vmatprep.mubr.f32.mxu0 0.0
    %3563 = vmatmul.mubr.f32.gmra.mrb[0].mxu0 %v3119
    %v3564 = vpop.f32.mrb[0].mxu0
    %v3565 = vadd.f32 %v3490, %v3564
    %v3566 = vpop.f32.mrb[0].mxu0
    %3567 = vdwg.mxu0
    %v3568 = vpack.c.bf16 %v3414, %v3408
    %v3569 = vpack.c.bf16 %v3416, %v3410
    %v3570 = vpack.c.bf16 %v3565, %v3560
    %v3571 = vld [vmem:[#allocation13] sm:$0xff]
    %v3572 = vld [vmem:[#allocation13 + $0x8] sm:$0xff]
    %v3573 = vld [vmem:[#allocation13 + $0x10] sm:$0xff]
    %v3574 = vld [vmem:[#allocation13 + $0x18] sm:$0xff]
    %v3575 = vld [vmem:[#allocation13 + $0x20] sm:$0xff]
    %v3576 = vld [vmem:[#allocation13 + $0x28] sm:$0xff]
    %v3577 = vld [vmem:[#allocation13 + $0x30] sm:$0xff]
    %v3578 = vld [vmem:[#allocation13 + $0x38] sm:$0xff]
    %v3579 = vld [vmem:[#allocation13 + $0x40] sm:$0xff]
    %v3580 = vld [vmem:[#allocation13 + $0x48] sm:$0xff]
    %v3581 = vld [vmem:[#allocation13 + $0x50] sm:$0xff]
    %v3582 = vld [vmem:[#allocation13 + $0x58] sm:$0xff]
    %v3583 = vld [vmem:[#allocation13 + $0x60] sm:$0xff]
    %v3584 = vld [vmem:[#allocation13 + $0x68] sm:$0xff]
    %v3585 = vld [vmem:[#allocation13 + $0x70] sm:$0xff]
    %v3586 = vld [vmem:[#allocation13 + $0x78] sm:$0xff]
    %v3587 = vld [vmem:[%s7] sm:$0x3]
    %v3589 = vlaneseq
    %v3590 = vshrl.u32 %v3589, 7
    %v3591 = vsub.s32 0, %v3590
    %v3592 = vrot.slane %v3587, %v3591
    %v3593 = vlaneseq
    %v3594 = vshrl.u32 %v3593, 7
    %v3595 = vsub.s32 1, %v3594
    %v3596 = vrot.slane %v3587, %v3595
    %v3615 = vunpack.c.l.b16 %v3571
    %v3616 = vunpack.c.h.b16 %v3571
    %v3617 = vunpack.c.l.b16 %v3572
    %v3618 = vunpack.c.h.b16 %v3572
    %v3619 = vunpack.c.l.b16 %v3573
    %v3620 = vunpack.c.h.b16 %v3573
    %v3621 = vunpack.c.l.b16 %v3574
    %v3622 = vunpack.c.h.b16 %v3574
    %v3623 = vunpack.c.l.b16 %v3575
    %v3624 = vunpack.c.h.b16 %v3575
    %v3625 = vunpack.c.l.b16 %v3576
    %v3626 = vunpack.c.h.b16 %v3576
    %v3627 = vunpack.c.l.b16 %v3577
    %v3628 = vunpack.c.h.b16 %v3577
    %v3629 = vunpack.c.l.b16 %v3578
    %v3630 = vunpack.c.h.b16 %v3578
    %v3631 = vunpack.c.l.b16 %v3579
    %v3632 = vunpack.c.h.b16 %v3579
    %v3633 = vunpack.c.l.b16 %v3580
    %v3634 = vunpack.c.h.b16 %v3580
    %v3635 = vunpack.c.l.b16 %v3581
    %v3636 = vunpack.c.h.b16 %v3581
    %v3637 = vunpack.c.l.b16 %v3582
    %v3638 = vunpack.c.h.b16 %v3582
    %v3639 = vunpack.c.l.b16 %v3583
    %v3640 = vunpack.c.h.b16 %v3583
    %v3641 = vunpack.c.l.b16 %v3584
    %v3642 = vunpack.c.h.b16 %v3584
    %v3643 = vunpack.c.l.b16 %v3585
    %v3644 = vunpack.c.h.b16 %v3585
    %v3645 = vunpack.c.l.b16 %v3586
    %v3646 = vunpack.c.h.b16 %v3586
    %v3647 = vpack.c.b16 %v3617, %v3615
    %v3648 = vpack.c.b16 %v3618, %v3616
    %v3649 = vpack.c.b16 %v3621, %v3619
    %v3650 = vpack.c.b16 %v3622, %v3620
    %v3651 = vpack.c.b16 %v3625, %v3623
    %v3652 = vpack.c.b16 %v3626, %v3624
    %v3653 = vpack.c.b16 %v3629, %v3627
    %v3654 = vpack.c.b16 %v3630, %v3628
    %v3655 = vpack.c.b16 %v3633, %v3631
    %v3656 = vpack.c.b16 %v3634, %v3632
    %v3657 = vpack.c.b16 %v3637, %v3635
    %v3658 = vpack.c.b16 %v3638, %v3636
    %v3659 = vpack.c.b16 %v3641, %v3639
    %v3660 = vpack.c.b16 %v3642, %v3640
    %v3661 = vpack.c.b16 %v3645, %v3643
    %v3662 = vpack.c.b16 %v3646, %v3644
    %3679 = vmatprep.subr.bf16.mxu0 %v3648
    %3680 = vmatpush1.bf16.msra.mxu0 %v3647
    %3681 = vmatprep.subr.bf16.mxu0 %v3650
    %3682 = vmatpush1.bf16.msra.mxu0 %v3649
    %3683 = vmatprep.subr.bf16.mxu0 %v3652
    %3684 = vmatpush1.bf16.msra.mxu0 %v3651
    %3685 = vmatprep.subr.bf16.mxu0 %v3654
    %3686 = vmatpush1.bf16.msra.mxu0 %v3653
    %3687 = vmatprep.subr.bf16.mxu0 %v3656
    %3688 = vmatpush1.bf16.msra.mxu0 %v3655
    %3689 = vmatprep.subr.bf16.mxu0 %v3658
    %3690 = vmatpush1.bf16.msra.mxu0 %v3657
    %3691 = vmatprep.subr.bf16.mxu0 %v3660
    %3692 = vmatpush1.bf16.msra.mxu0 %v3659
    %3693 = vmatprep.subr.bf16.mxu0 %v3662
    %3694 = vmatpush1.bf16.msra.mxu0 %v3661
    %3695 = vmatprep.subr.bf16.mxu0 0
    %3696 = vmatpush1.bf16.msra.mxu0 0
    %3697 = vmatprep.subr.bf16.mxu0 0
    %3698 = vmatpush1.bf16.msra.mxu0 0
    %3699 = vmatprep.subr.bf16.mxu0 0
    %3700 = vmatpush1.bf16.msra.mxu0 0
    %3701 = vmatprep.subr.bf16.mxu0 0
    %3702 = vmatpush1.bf16.msra.mxu0 0
    %3703 = vmatprep.subr.bf16.mxu0 0
    %3704 = vmatpush1.bf16.msra.mxu0 0
    %3705 = vmatprep.subr.bf16.mxu0 0
    %3706 = vmatpush1.bf16.msra.mxu0 0
    %3707 = vmatprep.subr.bf16.mxu0 0
    %3708 = vmatpush1.bf16.msra.mxu0 0
    %3709 = vmatprep.subr.bf16.mxu0 0
    %3710 = vmatpush1.bf16.msra.mxu0 0
    %3711 = vmatprep.mubr.bf16.mxu0 0
    %3712 = vmatmul.mubr.bf16.gmra.mrb[0].mxu0 %v3568
    %v3713 = vpop.f32.mrb[0].mxu0
    %v3714 = vadd.f32 %v3592, %v3713
    %v3715 = vpop.f32.mrb[0].mxu0
    %v3716 = vadd.f32 %v3596, %v3715
    %v3717 = vpop.f32.mrb[0].mxu0
    %v3718 = vadd.f32 %v3592, %v3717
    %v3719 = vpop.f32.mrb[0].mxu0
    %v3720 = vadd.f32 %v3596, %v3719
    %3721 = vmatprep.mubr.bf16.mxu0 0
    %3722 = vmatmul.mubr.bf16.gmra.mrb[0].mxu0 %v3569
    %v3723 = vpop.f32.mrb[0].mxu0
    %v3724 = vadd.f32 %v3592, %v3723
    %v3725 = vpop.f32.mrb[0].mxu0
    %v3726 = vadd.f32 %v3596, %v3725
    %v3727 = vpop.f32.mrb[0].mxu0
    %v3728 = vadd.f32 %v3592, %v3727
    %v3729 = vpop.f32.mrb[0].mxu0
    %v3730 = vadd.f32 %v3596, %v3729
    %3731 = vmatprep.mubr.bf16.mxu0 0
    %3732 = vmatmul.mubr.bf16.gmra.mrb[0].mxu0 %v3570
    %v3733 = vpop.f32.mrb[0].mxu0
    %v3734 = vadd.f32 %v3592, %v3733
    %v3735 = vpop.f32.mrb[0].mxu0
    %v3736 = vadd.f32 %v3596, %v3735
    %v3737 = vpop.f32.mrb[0].mxu0
    %v3738 = vadd.f32 %v3592, %v3737
    %v3739 = vpop.f32.mrb[0].mxu0
    %v3740 = vadd.f32 %v3596, %v3739
    %3741 = vdwg.mxu0
    %v3742 = vtanh.pop %v3714
    %v3743 = vtanh.pop %v3716
    %v3744 = vtanh.pop %v3718
    %v3745 = vtanh.pop %v3720
    %v3746 = vtanh.pop %v3724
    %v3747 = vtanh.pop %v3726
    %v3748 = vtanh.pop %v3728
    %v3749 = vtanh.pop %v3730
    %v3750 = vtanh.pop %v3734
    %v3751 = vtanh.pop %v3736
    %v3752 = vtanh.pop %v3738
    %v3753 = vtanh.pop %v3740
    %v3754 = vld [vmem:[%s8] sm:$0x3]
    %v3756 = vlaneseq
    %v3757 = vshrl.u32 %v3756, 7
    %v3758 = vsub.s32 0, %v3757
    %v3759 = vrot.slane %v3754, %v3758
    %v3760 = vlaneseq
    %v3761 = vshrl.u32 %v3760, 7
    %v3762 = vsub.s32 1, %v3761
    %v3763 = vrot.slane %v3754, %v3762
    %v3766 = vmul.f32 %v3742, %v3759
    %v3767 = vmul.f32 %v3743, %v3763
    %v3768 = vmul.f32 %v3744, %v3759
    %v3769 = vmul.f32 %v3745, %v3763
    %v3770 = vmul.f32 %v3746, %v3759
    %v3771 = vmul.f32 %v3747, %v3763
    %v3772 = vmul.f32 %v3748, %v3759
    %v3773 = vmul.f32 %v3749, %v3763
    %v3774 = vmul.f32 %v3750, %v3759
    %v3775 = vmul.f32 %v3751, %v3763
    %v3776 = vmul.f32 %v3752, %v3759
    %v3777 = vmul.f32 %v3753, %v3763
    %v3778 = vadd.f32 %v3766, %v3768
    %v3779 = vrot.slane %v3778, 4
    %v3780 = vadd.f32 %v3778, %v3779
    %v3781 = vrot.slane %v3780, 2
    %v3782 = vadd.f32 %v3780, %v3781
    %v3783 = vrot.slane %v3782, 1
    %v3784 = vadd.f32 %v3782, %v3783
    %v3785 = vadd.f32 %v3767, %v3769
    %v3786 = vrot.slane %v3785, 4
    %v3787 = vadd.f32 %v3785, %v3786
    %v3788 = vrot.slane %v3787, 2
    %v3789 = vadd.f32 %v3787, %v3788
    %v3790 = vrot.slane %v3789, 1
    %v3791 = vadd.f32 %v3789, %v3790
    %v3792 = vmul.f32 %v3784, 0.0625
    %v3793 = vmul.f32 %v3791, 0.0625
    %3794 = vadd.xlane.f32.xlu0 %v3792
    %v3795 = vpop.xlane.xlu0 %3794
    %3796 = vadd.xlane.f32.xlu0 %v3793
    %v3797 = vpop.xlane.xlu0 %3796
    %v3798 = vadd.f32 %v3770, %v3772
    %v3799 = vrot.slane %v3798, 4
    %v3800 = vadd.f32 %v3798, %v3799
    %v3801 = vrot.slane %v3800, 2
    %v3802 = vadd.f32 %v3800, %v3801
    %v3803 = vrot.slane %v3802, 1
    %v3804 = vadd.f32 %v3802, %v3803
    %v3805 = vadd.f32 %v3771, %v3773
    %v3806 = vrot.slane %v3805, 4
    %v3807 = vadd.f32 %v3805, %v3806
    %v3808 = vrot.slane %v3807, 2
    %v3809 = vadd.f32 %v3807, %v3808
    %v3810 = vrot.slane %v3809, 1
    %v3811 = vadd.f32 %v3809, %v3810
    %v3812 = vmul.f32 %v3804, 0.0625
    %v3813 = vmul.f32 %v3811, 0.0625
    %3814 = vadd.xlane.f32.xlu0 %v3812
    %v3815 = vpop.xlane.xlu0 %3814
    %3816 = vadd.xlane.f32.xlu0 %v3813
    %v3817 = vpop.xlane.xlu0 %3816
    %v3818 = vadd.f32 %v3774, %v3776
    %v3819 = vrot.slane %v3818, 4
    %v3820 = vadd.f32 %v3818, %v3819
    %v3821 = vrot.slane %v3820, 2
    %v3822 = vadd.f32 %v3820, %v3821
    %v3823 = vrot.slane %v3822, 1
    %v3824 = vadd.f32 %v3822, %v3823
    %v3825 = vadd.f32 %v3775, %v3777
    %v3826 = vrot.slane %v3825, 4
    %v3827 = vadd.f32 %v3825, %v3826
    %v3828 = vrot.slane %v3827, 2
    %v3829 = vadd.f32 %v3827, %v3828
    %v3830 = vrot.slane %v3829, 1
    %v3831 = vadd.f32 %v3829, %v3830
    %v3832 = vmul.f32 %v3824, 0.0625
    %v3833 = vmul.f32 %v3831, 0.0625
    %3834 = vadd.xlane.f32.xlu0 %v3832
    %v3835 = vpop.xlane.xlu0 %3834
    %3836 = vadd.xlane.f32.xlu0 %v3833
    %v3837 = vpop.xlane.xlu0 %3836
    %v3838 = vmax.f32 %v3795, %v3815
    %v3839 = vmax.f32 %v3838, %v3835
    %v3840 = vsub.f32 %v3795, %v3839
    %v3841 = vmul.f32 %v3840, 1.442695
    %v3842 = vpow.pop %v3841
    %v3843 = vsub.f32 %v3815, %v3839
    %v3844 = vmul.f32 %v3843, 1.442695
    %v3845 = vpow.pop %v3844
    %v3846 = vsub.f32 %v3835, %v3839
    %v3847 = vmul.f32 %v3846, 1.442695
    %v3848 = vpow.pop %v3847
    %v3849 = vadd.f32 %v3842, %v3845
    %v3850 = vadd.f32 %v3849, %v3848
    %v3851 = vrcp.pop %v3850
    %v3852 = vmul.f32 %v3842, %v3851
    %v3853 = vadd.f32 %v3852, 0.0
    %v3854 = vmul.f32 %v3845, %v3851
    %v3855 = vadd.f32 %v3854, 0.0
    %v3856 = vmul.f32 %v3848, %v3851
    %v3857 = vadd.f32 %v3856, 0.0
    %v3858 = vmax.f32 %v3797, %v3817
    %v3859 = vmax.f32 %v3858, %v3837
    %v3860 = vsub.f32 %v3797, %v3859
    %v3861 = vmul.f32 %v3860, 1.442695
    %v3862 = vpow.pop %v3861
    %v3863 = vsub.f32 %v3817, %v3859
    %v3864 = vmul.f32 %v3863, 1.442695
    %v3865 = vpow.pop %v3864
    %v3866 = vsub.f32 %v3837, %v3859
    %v3867 = vmul.f32 %v3866, 1.442695
    %v3868 = vpow.pop %v3867
    %v3869 = vadd.f32 %v3862, %v3865
    %v3870 = vadd.f32 %v3869, %v3868
    %v3871 = vrcp.pop %v3870
    %v3872 = vmul.f32 %v3862, %v3871
    %v3873 = vadd.f32 %v3853, %v3872
    %v3874 = vmul.f32 %v3865, %v3871
    %v3875 = vadd.f32 %v3855, %v3874
    %v3876 = vmul.f32 %v3868, %v3871
    %v3877 = vadd.f32 %v3857, %v3876
    %v3878 = vmul.f32 %v3873, 0.5
    %v3879 = vmul.f32 %v3878, %v3408
    %v3880 = vmul.f32 %v3878, %v3414
    %v3881 = vadd.f32 %v3879, 0.0
    %v3882 = vadd.f32 %v3880, 0.0
    %v3883 = vmul.f32 %v3875, 0.5
    %v3884 = vmul.f32 %v3883, %v3410
    %v3885 = vmul.f32 %v3883, %v3416
    %v3886 = vadd.f32 %v3881, %v3884
    %v3887 = vadd.f32 %v3882, %v3885
    %v3888 = vmul.f32 %v3877, 0.5
    %v3889 = vmul.f32 %v3888, %v3560
    %v3890 = vmul.f32 %v3888, %v3565
    %v3891 = vadd.f32 %v3886, %v3889
    %v3892 = vadd.f32 %v3887, %v3890
    %3893 = vst [vmem:[#allocation14] sm:$0xff] %v3891
    %3894 = vst [vmem:[#allocation14 + $0x8] sm:$0xff] %v3892
    // Predicated region
    $region66: #{tpu_custom_call.1} parent=1 // pred_check
      _
    $region67: #{tpu_custom_call.1} parent=1 // pred_check_branch
      %3896 = sbr.rel (0) target = $region69
    $region68: #{tpu_custom_call.1} parent=1 // pred_region
      %s3898 = ssub.s32 256, 256
      %3899 = vsyncadd [#allocation4], %s3898
      %s3900 = sshll.u32 [#allocation14], 4
      %s3901 = int_to_ptr.vmem [resolvable:$true] %s3900
      %3906 = dma.vmem_to_hbm [thread:$0]  %s3901, 256, %s9, [#allocation4], 128, 128, 8
    $region69: #{tpu_custom_call.1} parent=1 // pred_fallthru
      _
    // Predicated region
    $region70: #{tpu_custom_call.1} parent=1 // pred_check
      _
    $region71: #{tpu_custom_call.1} parent=1 // pred_check_branch
      %3908 = sbr.rel (0) target = $region73
    $region72: #{tpu_custom_call.1} parent=1 // pred_region
      %3909 = dma.done [#allocation4], 256
    $region73: #{tpu_custom_call.1} parent=1 // pred_fallthru
      _
    %3910 = vsyncpa [#allocation3], 1
    %3911 = vsyncpa [#allocation6], 1
    %3912 = vsyncpa [#allocation9], 1
    %3913 = vsyncpa [#allocation12], 1
    %3914 = vsyncpa [#allocation4], 1

</llo_original>
